<compile_context>
chip_gen: v6e
topology: v6e:2x2x1
jax: 0.10.0
libtpu: 0.0.40
codegen_flags: <defaults>
</compile_context>

<pallas_src>
import functools

import jax
import jax.numpy as jnp
from jax.experimental import pallas as pl
from jax.experimental.pallas import tpu as pltpu


def _clip_kernel(image_ref, text_ref, w_img_ref, b_img_ref, w_txt_ref, b_txt_ref,
                 loss_ref, img_feat_ref, txt_feat_ref,
                 txt_t_sc, posd_sc, mcol_sc, scolm_sc, maxcol_sc,
                 miw_sc, ziw_sc, numiw_sc, cerow_sc, focrow_sc,
                 *, temperature, gamma, use_hard_pairs, use_focal, col_exp_rescale):
    TB = image_ref.shape[0]            # rows per block
    B = text_ref.shape[0]              # full batch
    i = pl.program_id(0)
    nblk = pl.num_programs(0)
    inv_t = 1.0 / float(temperature)
    f32 = jnp.float32
    mxu_dtype = txt_t_sc.dtype         # bf16 (default) or f32

    # -------- one-time prologue: text encoder + normalize, scratch init --------
    @pl.when(i == 0)
    def _init():
        txt_feat = jnp.dot(text_ref[...], w_txt_ref[...],
                           preferred_element_type=f32) + b_txt_ref[...]
        ssq = jnp.sum(txt_feat * txt_feat, axis=1, keepdims=True)
        # F.normalize(p=2, dim=1, eps=1e-12): x * rsqrt(max(||x||^2, eps^2))
        txt_n = txt_feat * jax.lax.rsqrt(jnp.maximum(ssq, 1e-24))
        txt_feat_ref[...] = txt_n
        # one-time transpose + cast: K-major (E, B) RHS reused by every step
        txt_t_sc[...] = jnp.transpose(txt_n, (1, 0)).astype(mxu_dtype)

        posd_sc[...] = jnp.zeros(posd_sc.shape, f32)
        mcol_sc[...] = jnp.full(mcol_sc.shape, -jnp.inf, f32)
        scolm_sc[...] = jnp.zeros(scolm_sc.shape, f32)
        cerow_sc[...] = jnp.zeros(cerow_sc.shape, f32)
        focrow_sc[...] = jnp.zeros(focrow_sc.shape, f32)
        if use_hard_pairs:
            maxcol_sc[...] = jnp.full(maxcol_sc.shape, -jnp.inf, f32)
            miw_sc[...] = jnp.full(miw_sc.shape, -jnp.inf, f32)
            ziw_sc[...] = jnp.zeros(ziw_sc.shape, f32)
            numiw_sc[...] = jnp.zeros(numiw_sc.shape, f32)

    # -------- image encoder for this row block --------
    img_feat = jnp.dot(image_ref[...], w_img_ref[...],
                       preferred_element_type=f32) + b_img_ref[...]
    ssq = jnp.sum(img_feat * img_feat, axis=1, keepdims=True)
    img_n = img_feat * jax.lax.rsqrt(jnp.maximum(ssq, 1e-24))
    img_feat_ref[...] = img_n

    # -------- (TB, B) logits tile: single MXU pass on the pre-transposed RHS ----
    logits = jnp.dot(img_n.astype(mxu_dtype), txt_t_sc[...],
                     preferred_element_type=f32) * inv_t

    row_g = i * TB + jax.lax.broadcasted_iota(jnp.int32, (TB, B), 0)
    col_g = jax.lax.broadcasted_iota(jnp.int32, (TB, B), 1)
    is_diag = row_g == col_g                       # bool mask, never stored

    # diagonal (positive) logits, both orientations, from one select
    pos_sel = jnp.where(is_diag, logits, 0.0)
    pos_row = jnp.sum(pos_sel, axis=1, keepdims=True)                       # (TB,1)
    posd_sc[...] = posd_sc[...] + jnp.sum(pos_sel, axis=0, keepdims=True)   # (1,B)

    # ---- row (i2t) statistics: complete inside the block ----
    m_row = jnp.max(logits, axis=1, keepdims=True)            # (TB,1)
    e_row = jnp.exp(logits - m_row)                           # the only (TB,B) exp
    e_row_m = jnp.where(is_diag, 0.0, e_row)                  # masked (diag zeroed)
    s_row_m = jnp.sum(e_row_m, axis=1, keepdims=True)         # masked row sum (shifted)

    # ---- column (t2i) statistics: flash-style online accumulation ----
    mcol_old = mcol_sc[...]
    mcol_new = jnp.maximum(mcol_old, jnp.max(logits, axis=0, keepdims=True))
    if col_exp_rescale:
        # rescale e_row instead of a second full-tile exp (EUP is the binding unit)
        unshifted = jnp.sum(e_row_m * jnp.exp(m_row), axis=0, keepdims=True)
        col_contrib = unshifted * jnp.exp(-mcol_new)
    else:
        col_contrib = jnp.sum(jnp.where(is_diag, 0.0, jnp.exp(logits - mcol_new)),
                              axis=0, keepdims=True)
    scolm_sc[...] = scolm_sc[...] * jnp.exp(mcol_old - mcol_new) + col_contrib
    mcol_sc[...] = mcol_new

    # ---- row-direction loss terms collapse into scalar accumulators ----
    if use_focal or not use_hard_pairs:
        ep_r = jnp.exp(pos_row - m_row)
        s_row_u = s_row_m + ep_r          # unmasked row sum (no cancellation)

    if use_hard_pairs:
        logits_z = jnp.where(is_diag, 0.0, logits)            # matches (logits * mask)
        maxi2t = jnp.max(logits_z, axis=1, keepdims=True)     # (TB,1)
        maxcol_sc[...] = jnp.maximum(maxcol_sc[...],
                                     jnp.max(logits_z, axis=0, keepdims=True))
        # online softmax(maxi2t)-weighted sum of (pos - log masked_denominator)
        term = pos_row - (jnp.log(s_row_m) + m_row)
        m_old = miw_sc[...]
        m_new = jnp.maximum(m_old, jnp.max(maxi2t, axis=0, keepdims=True))
        w = jnp.exp(maxi2t - m_new)
        scale = jnp.exp(m_old - m_new)
        ziw_sc[...] = ziw_sc[...] * scale + jnp.sum(w, axis=0, keepdims=True)
        numiw_sc[...] = numiw_sc[...] * scale + jnp.sum(w * term, axis=0, keepdims=True)
        miw_sc[...] = m_new
    else:
        lse_r = jnp.log(s_row_u) + m_row
        cerow_sc[...] = cerow_sc[...] + jnp.sum(lse_r - pos_row, axis=0, keepdims=True)

    if use_focal:
        p_i = ep_r / s_row_u              # diag of softmax(logits, dim=1)
        if float(gamma) == 2.0:
            fw_i = (1.0 - p_i) * (1.0 - p_i)
        else:
            fw_i = (1.0 - p_i) ** gamma
        focrow_sc[...] = focrow_sc[...] + jnp.sum(fw_i * jnp.log(p_i + 1e-8),
                                                  axis=0, keepdims=True)

    # -------- finalize loss on the last block --------
    @pl.when(i == nblk - 1)
    def _finalize():
        pos_c = posd_sc[...]              # (1,B) diagonal logits (lane-dense)
        mcol = mcol_sc[...]
        scol_m = scolm_sc[...]            # masked column sums (shifted by mcol)
        ep_c = jnp.exp(pos_c - mcol)
        s_col_u = scol_m + ep_c
        binv = 1.0 / float(B)

        if use_hard_pairs:
            i2t = -(numiw_sc[...] / ziw_sc[...])              # (1,1)
            logden_t = jnp.log(scol_m) + mcol
            mt = maxcol_sc[...]
            tw = jnp.exp(mt - jnp.max(mt, axis=1, keepdims=True))
            t2i = -(jnp.sum(tw * (pos_c - logden_t), axis=1, keepdims=True)
                    / jnp.sum(tw, axis=1, keepdims=True))
            loss = (i2t + t2i) * 0.5
        else:
            lse_c = jnp.log(s_col_u) + mcol
            i2t = cerow_sc[...] * binv
            t2i = jnp.sum(lse_c - pos_c, axis=1, keepdims=True) * binv
            loss = (i2t + t2i) * 0.5

        if use_focal:
            p_t = ep_c / s_col_u          # diag of softmax(logits.T, dim=1)
            if float(gamma) == 2.0:
                fw_t = (1.0 - p_t) * (1.0 - p_t)
            else:
                fw_t = (1.0 - p_t) ** gamma
            fl_t = -jnp.sum(fw_t * jnp.log(p_t + 1e-8), axis=1, keepdims=True) * binv
            fl_i = -focrow_sc[...] * binv
            loss = 0.5 * loss + 0.25 * (fl_i + fl_t)

        loss_ref[...] = loss              # (1,1)


def _vmem_limit_bytes():
    """Generation-aware VMEM budget: ~75% of physical (v6e/v5e -> ~96 MiB, v7x -> ~48 MiB)."""
    try:
        cap = int(pltpu.get_tpu_info().vmem_capacity_bytes)
    except Exception:
        cap = 64 * 1024 * 1024
    return min(int(cap * 3 // 4), 112 * 1024 * 1024)


def _pick_block_rows(batch, d_img, embed_dim, vmem_limit, mxu_itemsize):
    """Largest row block (<=512, multiple of 8, divides batch) whose live tile set
    fits comfortably inside the VMEM budget."""
    cand = min(batch, 512)
    while cand > 8:
        tile_bytes = (6 * cand * batch * 4
                      + 2 * cand * (d_img + embed_dim) * max(int(mxu_itemsize), 4))
        if batch % cand == 0 and cand % 8 == 0 and tile_bytes <= vmem_limit // 2:
            break
        cand = max(8, cand // 2)
    return cand


def clip_forward(image, text, params, *, temperature=0.07, gamma=2.0,
                 use_hard_pairs=True, use_focal=True, block_rows=None,
                 use_bf16_mxu=True, vmem_limit_bytes=None):
    B, D_img = image.shape
    B2, D_txt = text.shape
    assert B == B2, "image / text batch mismatch"
    E = params["w_img"].shape[1]

    f32 = jnp.float32
    mxu_dtype = jnp.bfloat16 if use_bf16_mxu else f32

    # One-time casts in the wrapper (not per grid step); biases stay f32.
    image_in = image.astype(mxu_dtype)
    text_in = text.astype(mxu_dtype)
    w_img = params["w_img"].astype(mxu_dtype)
    w_txt = params["w_txt"].astype(mxu_dtype)
    b_img = params["b_img"].astype(f32).reshape(1, E)
    b_txt = params["b_txt"].astype(f32).reshape(1, E)

    vmem_limit = int(vmem_limit_bytes) if vmem_limit_bytes else _vmem_limit_bytes()
    if block_rows is None:
        block_rows = _pick_block_rows(B, D_img, E, vmem_limit,
                                      jnp.dtype(mxu_dtype).itemsize)
    TB = int(block_rows)
    assert B % TB == 0 and TB % 8 == 0, "batch must tile into 8-aligned row blocks"
    nblk = B // TB

    # Rescaling the row-shifted exp keeps exp(|logits|) in f32 range only when
    # 1/temperature is moderate (normalized features => |logits| <= 1/temperature).
    col_exp_rescale = (1.0 / float(temperature)) <= 60.0

    kernel = functools.partial(
        _clip_kernel, temperature=float(temperature), gamma=float(gamma),
        use_hard_pairs=bool(use_hard_pairs), use_focal=bool(use_focal),
        col_exp_rescale=bool(col_exp_rescale))

    out_shapes = (jax.ShapeDtypeStruct((1, 1), f32),    # loss
                  jax.ShapeDtypeStruct((B, E), f32),    # image_features (normalized)
                  jax.ShapeDtypeStruct((B, E), f32))    # text_features (normalized)

    scratch_shapes = [
        pltpu.VMEM((E, B), mxu_dtype),   # pre-transposed normalized text (RHS)
        pltpu.VMEM((1, B), f32),         # diagonal logits (lane-dense)
        pltpu.VMEM((1, B), f32),         # online column max
        pltpu.VMEM((1, B), f32),         # online masked column sum of shifted exp
        pltpu.VMEM((1, B), f32),         # online masked column max (hard pairs)
        pltpu.VMEM((1, 1), f32),         # running max of masked row max (hard)
        pltpu.VMEM((1, 1), f32),         # running softmax-weight normalizer (hard)
        pltpu.VMEM((1, 1), f32),         # running weighted i2t numerator (hard)
        pltpu.VMEM((1, 1), f32),         # running cross-entropy row sum
        pltpu.VMEM((1, 1), f32),         # running focal row sum
    ]

    itemsize = jnp.dtype(mxu_dtype).itemsize
    flops = int(2 * B * D_img * E + 2 * B * D_txt * E + 2 * B * B * E + 16 * B * B)
    transcend = int(B * B + 8 * B)
    bytes_acc = int(itemsize * (B * D_img + B * D_txt + D_img * E + D_txt * E)
                    + 4 * (2 * E + 2 * B * E + 1))

    def build(single_buffer_consts):
        def const_spec(shape):
            idx = lambda i: (0,) * len(shape)
            if single_buffer_consts:
                # constant block index -> no point double-buffering; frees VMEM.
                return pl.BlockSpec(shape, idx, pipeline_mode=pl.Buffered(1))
            return pl.BlockSpec(shape, idx)

        grid_spec = pltpu.PrefetchScalarGridSpec(
            num_scalar_prefetch=0,
            grid=(nblk,),
            in_specs=[
                pl.BlockSpec((TB, D_img), lambda i: (i, 0)),   # image row block
                const_spec((B, D_txt)),                        # full text (resident)
                const_spec((D_img, E)),                        # w_img
                const_spec((1, E)),                            # b_img
                const_spec((D_txt, E)),                        # w_txt
                const_spec((1, E)),                            # b_txt
            ],
            out_specs=(
                pl.BlockSpec((1, 1), lambda i: (0, 0)),        # loss (resident)
                pl.BlockSpec((TB, E), lambda i: (i, 0)),       # image features per block
                pl.BlockSpec((B, E), lambda i: (0, 0)),        # text features (resident)
            ),
            scratch_shapes=scratch_shapes,
        )
        return pl.pallas_call(
            kernel,
            out_shape=out_shapes,
            grid_spec=grid_spec,
            compiler_params=pltpu.CompilerParams(
                dimension_semantics=("arbitrary",),   # online column stats -> sequential
                vmem_limit_bytes=vmem_limit),
            cost_estimate=pl.CostEstimate(flops=flops, transcendentals=transcend,
                                          bytes_accessed=bytes_acc),
        )

    args = (image_in, text_in, w_img, b_img, w_txt, b_txt)
    try:
        loss, img_f, txt_f = build(True)(*args)
    except Exception:
        # pipeline_mode=pl.Buffered(1) unsupported on this JAX build -> default buffering.
        loss, img_f, txt_f = build(False)(*args)
    return loss[0, 0], img_f, txt_f


def clip_reference(image, text, params, *, temperature=0.07, gamma=2.0,
                   use_hard_pairs=True, use_focal=True, match_bf16=False):
    """Pure-JAX reference mirroring the PyTorch forward.  match_bf16=True rounds
    inputs/weights and the normalized features to bf16 at the same points the
    bf16-MXU kernel does, so the comparison is apples-to-apples."""
    def q(x):
        return x.astype(jnp.bfloat16).astype(jnp.float32) if match_bf16 else x

    img_feat = q(image) @ q(params["w_img"]) + params["b_img"].reshape(1, -1)
    txt_feat = q(text) @ q(params["w_txt"]) + params["b_txt"].reshape(1, -1)
    img_n = img_feat / jnp.maximum(jnp.linalg.norm(img_feat, axis=1, keepdims=True), 1e-12)
    txt_n = txt_feat / jnp.maximum(jnp.linalg.norm(txt_feat, axis=1, keepdims=True), 1e-12)
    logits = q(img_n) @ q(txt_n).T / temperature
    B = logits.shape[0]
    eye = jnp.eye(B, dtype=jnp.float32)
    mask = 1.0 - eye
    pos = jnp.diag(logits)
    if use_hard_pairs:
        iw = jax.nn.softmax(jnp.max(logits * mask, axis=1))
        tw = jax.nn.softmax(jnp.max(logits.T * mask, axis=1))
        i2t = -jnp.sum(iw * jnp.log(jnp.exp(pos) / jnp.sum(jnp.exp(logits) * mask, axis=1)))
        t2i = -jnp.sum(tw * jnp.log(jnp.exp(pos) / jnp.sum(jnp.exp(logits.T) * mask, axis=1)))
        loss = (i2t + t2i) / 2.0
    else:
        lse1 = jax.nn.logsumexp(logits, axis=1)
        lse2 = jax.nn.logsumexp(logits.T, axis=1)
        loss = (jnp.mean(lse1 - pos) + jnp.mean(lse2 - pos)) / 2.0
    if use_focal:
        p1 = jnp.diag(jax.nn.softmax(logits, axis=1))
        p2 = jnp.diag(jax.nn.softmax(logits.T, axis=1))
        fl1 = -jnp.mean(((1.0 - p1) ** gamma) * jnp.log(p1 + 1e-08))
        fl2 = -jnp.mean(((1.0 - p2) ** gamma) * jnp.log(p2 + 1e-08))
        loss = 0.5 * loss + 0.5 * (fl1 + fl2) / 2.0
    return loss, img_n, txt_n


if __name__ == "__main__":
    # batch multiple of 8, embed dim lane-dense (multiple of 128).
    B, D_IMG, D_TXT, E = 16, 64, 48, 128
    key = jax.random.PRNGKey(0)
    k_img, k_txt, k_wi, k_bi, k_wt, k_bt = jax.random.split(key, 6)

    image = jax.random.normal(k_img, (B, D_IMG), jnp.float32)
    text = jax.random.normal(k_txt, (B, D_TXT), jnp.float32)
    params = {
        "w_img": jax.random.normal(k_wi, (D_IMG, E), jnp.float32) * 0.05,
        "b_img": jax.random.normal(k_bi, (1, E), jnp.float32) * 0.01,
        "w_txt": jax.random.normal(k_wt, (D_TXT, E), jnp.float32) * 0.05,
        "b_txt": jax.random.normal(k_bt, (1, E), jnp.float32) * 0.01,
    }

    # block_rows=8 -> 2 row blocks, exercising the online column statistics.

    # (1) f32 MXU path against the exact f32 reference (tight tolerance).
    for hard, focal in ((True, True), (False, False)):
        loss, img_f, txt_f = clip_forward(image, text, params,
                                          temperature=0.07, gamma=2.0,
                                          use_hard_pairs=hard, use_focal=focal,
                                          block_rows=8, use_bf16_mxu=False)
        jax.block_until_ready((loss, img_f, txt_f))
        ref_loss, ref_img_f, ref_txt_f = clip_reference(
            image, text, params, temperature=0.07, gamma=2.0,
            use_hard_pairs=hard, use_focal=focal)
        assert jnp.isfinite(loss), "loss is not finite"
        assert jnp.allclose(loss, ref_loss, rtol=2e-4, atol=2e-4), \
            (hard, focal, float(loss), float(ref_loss))
        assert jnp.allclose(img_f, ref_img_f, rtol=2e-4, atol=2e-4)
        assert jnp.allclose(txt_f, ref_txt_f, rtol=2e-4, atol=2e-4)

    # (2) default bf16-MXU path against a bf16-consistent reference.
    loss, img_f, txt_f = clip_forward(image, text, params,
                                      temperature=0.07, gamma=2.0,
                                      use_hard_pairs=True, use_focal=True,
                                      block_rows=8)          # use_bf16_mxu=True default
    jax.block_until_ready((loss, img_f, txt_f))
    ref_loss, ref_img_f, ref_txt_f = clip_reference(
        image, text, params, temperature=0.07, gamma=2.0,
        use_hard_pairs=True, use_focal=True, match_bf16=True)
    assert jnp.isfinite(loss), "bf16 loss is not finite"
    assert jnp.allclose(loss, ref_loss, rtol=2e-3, atol=2e-3), \
        (float(loss), float(ref_loss))
    assert jnp.allclose(img_f, ref_img_f, rtol=2e-3, atol=2e-3)
    assert jnp.allclose(txt_f, ref_txt_f, rtol=2e-3, atol=2e-3)

    print("KERNEL_OK")
</pallas_src>

<mosaic_0001>
module attributes {stable_mosaic.version = 11 : i64} {
  func.func @_clip_kernel(%arg0: i32, %arg1: memref<8x64xf32, #tpu.memory_space<vmem>>, %arg2: memref<16x48xf32, #tpu.memory_space<vmem>>, %arg3: memref<64x128xf32, #tpu.memory_space<vmem>>, %arg4: memref<1x128xf32, #tpu.memory_space<vmem>>, %arg5: memref<48x128xf32, #tpu.memory_space<vmem>>, %arg6: memref<1x128xf32, #tpu.memory_space<vmem>>, %arg7: memref<1x1xf32, #tpu.memory_space<vmem>>, %arg8: memref<8x128xf32, #tpu.memory_space<vmem>>, %arg9: memref<16x128xf32, #tpu.memory_space<vmem>>, %arg10: memref<128x16xf32, #tpu.memory_space<vmem>>, %arg11: memref<1x16xf32, #tpu.memory_space<vmem>>, %arg12: memref<1x16xf32, #tpu.memory_space<vmem>>, %arg13: memref<1x16xf32, #tpu.memory_space<vmem>>, %arg14: memref<1x16xf32, #tpu.memory_space<vmem>>, %arg15: memref<1x1xf32, #tpu.memory_space<vmem>>, %arg16: memref<1x1xf32, #tpu.memory_space<vmem>>, %arg17: memref<1x1xf32, #tpu.memory_space<vmem>>, %arg18: memref<1x1xf32, #tpu.memory_space<vmem>>, %arg19: memref<1x1xf32, #tpu.memory_space<vmem>>) attributes {dimension_semantics = [#tpu.dimension_semantics<arbitrary>], iteration_bounds = array<i64: 2>, scalar_prefetch = 0 : i64, scratch_operands = 10 : i64, tpu.core_type = #tpu.core_type<tc>, window_params = [{transform_indices = @transform_0, window_bounds = array<i64: 8, 64>}, {pipeline_mode = #tpu.pipeline_mode<synchronous>, transform_indices = @transform_1, window_bounds = array<i64: 16, 48>}, {pipeline_mode = #tpu.pipeline_mode<synchronous>, transform_indices = @transform_2, window_bounds = array<i64: 64, 128>}, {pipeline_mode = #tpu.pipeline_mode<synchronous>, transform_indices = @transform_3, window_bounds = array<i64: 1, 128>}, {pipeline_mode = #tpu.pipeline_mode<synchronous>, transform_indices = @transform_4, window_bounds = array<i64: 48, 128>}, {pipeline_mode = #tpu.pipeline_mode<synchronous>, transform_indices = @transform_5, window_bounds = array<i64: 1, 128>}, {pipeline_mode = #tpu.pipeline_mode<synchronous>, transform_indices = @transform_6, window_bounds = array<i64: 1, 1>}, {transform_indices = @transform_7, window_bounds = array<i64: 8, 128>}, {pipeline_mode = #tpu.pipeline_mode<synchronous>, transform_indices = @transform_8, window_bounds = array<i64: 16, 128>}]} {
    %c0_i32 = arith.constant 0 : i32
    %0 = arith.cmpi eq, %arg0, %c0_i32 : i32
    %1 = arith.extui %0 : i1 to i32
    %c0_i32_0 = arith.constant 0 : i32
    %2 = arith.cmpi ne, %1, %c0_i32_0 : i32
    scf.if %2 {
      %c0_66 = arith.constant 0 : index
      %c0_67 = arith.constant 0 : index
      %122 = vector.load %arg2[%c0_66, %c0_67] : memref<16x48xf32, #tpu.memory_space<vmem>>, vector<16x48xf32>
      %c0_68 = arith.constant 0 : index
      %c0_69 = arith.constant 0 : index
      %123 = vector.load %arg5[%c0_68, %c0_69] : memref<48x128xf32, #tpu.memory_space<vmem>>, vector<48x128xf32>
      %cst_70 = arith.constant dense<0.000000e+00> : vector<16x128xf32>
      %124 = tpu.matmul %122, %123, %cst_70 {dimension_numbers = #tpu.dot_dimension_numbers<[1], [0], [0], [1], [0, 0, 1, 1], [], []>} : vector<16x48xf32>, vector<48x128xf32>, vector<16x128xf32> -> vector<16x128xf32>
      %c0_71 = arith.constant 0 : index
      %c0_72 = arith.constant 0 : index
      %125 = vector.load %arg6[%c0_71, %c0_72] : memref<1x128xf32, #tpu.memory_space<vmem>>, vector<1x128xf32>
      %126 = vector.broadcast %125 : vector<1x128xf32> to vector<16x128xf32>
      %127 = arith.addf %124, %126 : vector<16x128xf32>
      %128 = arith.mulf %127, %127 : vector<16x128xf32>
      %cst_73 = arith.constant dense<0.000000e+00> : vector<16xf32>
      %129 = vector.multi_reduction <add>, %128, %cst_73 [1] : vector<16x128xf32> to vector<16xf32>
      %130 = vector.shape_cast %129 : vector<16xf32> to vector<16x1xf32>
      %cst_74 = arith.constant 1.000000e-24 : f32
      %131 = vector.broadcast %cst_74 : f32 to vector<16x1xf32>
      %132 = arith.maximumf %130, %131 : vector<16x1xf32>
      %133 = math.rsqrt %132 : vector<16x1xf32>
      %134 = vector.broadcast %133 : vector<16x1xf32> to vector<16x128xf32>
      %135 = arith.mulf %127, %134 : vector<16x128xf32>
      %c0_75 = arith.constant 0 : index
      %c0_76 = arith.constant 0 : index
      %136 = vector.load %arg9[%c0_75, %c0_76] : memref<16x128xf32, #tpu.memory_space<vmem>>, vector<16x128xf32>
      tpu.vector_store %arg9[%c0_75, %c0_76], %135 {strides = array<i32>} : memref<16x128xf32, #tpu.memory_space<vmem>>, vector<16x128xf32>,
      %137 = tpu.transpose %135, [1, 0] : vector<16x128xf32> -> vector<128x16xf32>
      %c0_77 = arith.constant 0 : index
      %c0_78 = arith.constant 0 : index
      %138 = vector.load %arg10[%c0_77, %c0_78] : memref<128x16xf32, #tpu.memory_space<vmem>>, vector<128x16xf32>
      tpu.vector_store %arg10[%c0_77, %c0_78], %137 {strides = array<i32>} : memref<128x16xf32, #tpu.memory_space<vmem>>, vector<128x16xf32>,
      %cst_79 = arith.constant 0.000000e+00 : f32
      %139 = vector.broadcast %cst_79 : f32 to vector<1x16xf32>
      %c0_80 = arith.constant 0 : index
      %c0_81 = arith.constant 0 : index
      %140 = vector.load %arg11[%c0_80, %c0_81] : memref<1x16xf32, #tpu.memory_space<vmem>>, vector<1x16xf32>
      tpu.vector_store %arg11[%c0_80, %c0_81], %139 {strides = array<i32>} : memref<1x16xf32, #tpu.memory_space<vmem>>, vector<1x16xf32>,
      %cst_82 = arith.constant 0xFF800000 : f32
      %141 = vector.broadcast %cst_82 : f32 to vector<1x16xf32>
      %c0_83 = arith.constant 0 : index
      %c0_84 = arith.constant 0 : index
      %142 = vector.load %arg12[%c0_83, %c0_84] : memref<1x16xf32, #tpu.memory_space<vmem>>, vector<1x16xf32>
      tpu.vector_store %arg12[%c0_83, %c0_84], %141 {strides = array<i32>} : memref<1x16xf32, #tpu.memory_space<vmem>>, vector<1x16xf32>,
      %cst_85 = arith.constant 0.000000e+00 : f32
      %143 = vector.broadcast %cst_85 : f32 to vector<1x16xf32>
      %c0_86 = arith.constant 0 : index
      %c0_87 = arith.constant 0 : index
      %144 = vector.load %arg13[%c0_86, %c0_87] : memref<1x16xf32, #tpu.memory_space<vmem>>, vector<1x16xf32>
      tpu.vector_store %arg13[%c0_86, %c0_87], %143 {strides = array<i32>} : memref<1x16xf32, #tpu.memory_space<vmem>>, vector<1x16xf32>,
      %cst_88 = arith.constant 0.000000e+00 : f32
      %145 = vector.broadcast %cst_88 : f32 to vector<1x1xf32>
      %c0_89 = arith.constant 0 : index
      %c0_90 = arith.constant 0 : index
      %146 = vector.load %arg18[%c0_89, %c0_90] : memref<1x1xf32, #tpu.memory_space<vmem>>, vector<1x1xf32>
      tpu.vector_store %arg18[%c0_89, %c0_90], %145 {strides = array<i32>} : memref<1x1xf32, #tpu.memory_space<vmem>>, vector<1x1xf32>,
      %cst_91 = arith.constant 0.000000e+00 : f32
      %147 = vector.broadcast %cst_91 : f32 to vector<1x1xf32>
      %c0_92 = arith.constant 0 : index
      %c0_93 = arith.constant 0 : index
      %148 = vector.load %arg19[%c0_92, %c0_93] : memref<1x1xf32, #tpu.memory_space<vmem>>, vector<1x1xf32>
      tpu.vector_store %arg19[%c0_92, %c0_93], %147 {strides = array<i32>} : memref<1x1xf32, #tpu.memory_space<vmem>>, vector<1x1xf32>,
      %cst_94 = arith.constant 0xFF800000 : f32
      %149 = vector.broadcast %cst_94 : f32 to vector<1x16xf32>
      %c0_95 = arith.constant 0 : index
      %c0_96 = arith.constant 0 : index
      %150 = vector.load %arg14[%c0_95, %c0_96] : memref<1x16xf32, #tpu.memory_space<vmem>>, vector<1x16xf32>
      tpu.vector_store %arg14[%c0_95, %c0_96], %149 {strides = array<i32>} : memref<1x16xf32, #tpu.memory_space<vmem>>, vector<1x16xf32>,
      %cst_97 = arith.constant 0xFF800000 : f32
      %151 = vector.broadcast %cst_97 : f32 to vector<1x1xf32>
      %c0_98 = arith.constant 0 : index
      %c0_99 = arith.constant 0 : index
      %152 = vector.load %arg15[%c0_98, %c0_99] : memref<1x1xf32, #tpu.memory_space<vmem>>, vector<1x1xf32>
      tpu.vector_store %arg15[%c0_98, %c0_99], %151 {strides = array<i32>} : memref<1x1xf32, #tpu.memory_space<vmem>>, vector<1x1xf32>,
      %cst_100 = arith.constant 0.000000e+00 : f32
      %153 = vector.broadcast %cst_100 : f32 to vector<1x1xf32>
      %c0_101 = arith.constant 0 : index
      %c0_102 = arith.constant 0 : index
      %154 = vector.load %arg16[%c0_101, %c0_102] : memref<1x1xf32, #tpu.memory_space<vmem>>, vector<1x1xf32>
      tpu.vector_store %arg16[%c0_101, %c0_102], %153 {strides = array<i32>} : memref<1x1xf32, #tpu.memory_space<vmem>>, vector<1x1xf32>,
      %cst_103 = arith.constant 0.000000e+00 : f32
      %155 = vector.broadcast %cst_103 : f32 to vector<1x1xf32>
      %c0_104 = arith.constant 0 : index
      %c0_105 = arith.constant 0 : index
      %156 = vector.load %arg17[%c0_104, %c0_105] : memref<1x1xf32, #tpu.memory_space<vmem>>, vector<1x1xf32>
      tpu.vector_store %arg17[%c0_104, %c0_105], %155 {strides = array<i32>} : memref<1x1xf32, #tpu.memory_space<vmem>>, vector<1x1xf32>,
    } else {
    }
    %c0 = arith.constant 0 : index
    %c0_1 = arith.constant 0 : index
    %3 = vector.load %arg1[%c0, %c0_1] : memref<8x64xf32, #tpu.memory_space<vmem>>, vector<8x64xf32>
    %c0_2 = arith.constant 0 : index
    %c0_3 = arith.constant 0 : index
    %4 = vector.load %arg3[%c0_2, %c0_3] : memref<64x128xf32, #tpu.memory_space<vmem>>, vector<64x128xf32>
    %cst = arith.constant dense<0.000000e+00> : vector<8x128xf32>
    %5 = tpu.matmul %3, %4, %cst {dimension_numbers = #tpu.dot_dimension_numbers<[1], [0], [0], [1], [0, 0, 1, 1], [], []>} : vector<8x64xf32>, vector<64x128xf32>, vector<8x128xf32> -> vector<8x128xf32>
    %c0_4 = arith.constant 0 : index
    %c0_5 = arith.constant 0 : index
    %6 = vector.load %arg4[%c0_4, %c0_5] : memref<1x128xf32, #tpu.memory_space<vmem>>, vector<1x128xf32>
    %7 = vector.broadcast %6 : vector<1x128xf32> to vector<8x128xf32>
    %8 = arith.addf %5, %7 : vector<8x128xf32>
    %9 = arith.mulf %8, %8 : vector<8x128xf32>
    %cst_6 = arith.constant dense<0.000000e+00> : vector<8xf32>
    %10 = vector.multi_reduction <add>, %9, %cst_6 [1] : vector<8x128xf32> to vector<8xf32>
    %11 = vector.shape_cast %10 : vector<8xf32> to vector<8x1xf32>
    %cst_7 = arith.constant 1.000000e-24 : f32
    %12 = vector.broadcast %cst_7 : f32 to vector<8x1xf32>
    %13 = arith.maximumf %11, %12 : vector<8x1xf32>
    %14 = math.rsqrt %13 : vector<8x1xf32>
    %15 = vector.broadcast %14 : vector<8x1xf32> to vector<8x128xf32>
    %16 = arith.mulf %8, %15 : vector<8x128xf32>
    %c0_8 = arith.constant 0 : index
    %c0_9 = arith.constant 0 : index
    %17 = vector.load %arg8[%c0_8, %c0_9] : memref<8x128xf32, #tpu.memory_space<vmem>>, vector<8x128xf32>
    tpu.vector_store %arg8[%c0_8, %c0_9], %16 {strides = array<i32>} : memref<8x128xf32, #tpu.memory_space<vmem>>, vector<8x128xf32>,
    %c0_10 = arith.constant 0 : index
    %c0_11 = arith.constant 0 : index
    %18 = vector.load %arg10[%c0_10, %c0_11] : memref<128x16xf32, #tpu.memory_space<vmem>>, vector<128x16xf32>
    %cst_12 = arith.constant dense<0.000000e+00> : vector<8x16xf32>
    %19 = tpu.matmul %16, %18, %cst_12 {dimension_numbers = #tpu.dot_dimension_numbers<[1], [0], [0], [1], [0, 0, 1, 1], [], []>} : vector<8x128xf32>, vector<128x16xf32>, vector<8x16xf32> -> vector<8x16xf32>
    %cst_13 = arith.constant 14.2857141 : f32
    %20 = vector.broadcast %cst_13 : f32 to vector<8x16xf32>
    %21 = arith.mulf %19, %20 : vector<8x16xf32>
    %c8_i32 = arith.constant 8 : i32
    %22 = arith.muli %arg0, %c8_i32 : i32
    %23 = tpu.iota {dimensions = array<i32: 0>} : vector<8x16xi32>
    %24 = vector.broadcast %22 : i32 to vector<8x16xi32>
    %25 = arith.addi %24, %23 : vector<8x16xi32>
    %26 = tpu.iota {dimensions = array<i32: 1>} : vector<8x16xi32>
    %27 = arith.cmpi eq, %25, %26 : vector<8x16xi32>
    %cst_14 = arith.constant 0.000000e+00 : f32
    %28 = vector.broadcast %cst_14 : f32 to vector<8x16xf32>
    %29 = arith.select %27, %21, %28 : vector<8x16xi1>, vector<8x16xf32>
    %cst_15 = arith.constant dense<0.000000e+00> : vector<8xf32>
    %30 = vector.multi_reduction <add>, %29, %cst_15 [1] : vector<8x16xf32> to vector<8xf32>
    %31 = vector.shape_cast %30 : vector<8xf32> to vector<8x1xf32>
    %c0_16 = arith.constant 0 : index
    %c0_17 = arith.constant 0 : index
    %32 = vector.load %arg11[%c0_16, %c0_17] : memref<1x16xf32, #tpu.memory_space<vmem>>, vector<1x16xf32>
    %cst_18 = arith.constant dense<0.000000e+00> : vector<16xf32>
    %33 = vector.multi_reduction <add>, %29, %cst_18 [0] : vector<8x16xf32> to vector<16xf32>
    %34 = vector.shape_cast %33 : vector<16xf32> to vector<1x16xf32>
    %35 = arith.addf %32, %34 : vector<1x16xf32>
    %c0_19 = arith.constant 0 : index
    %c0_20 = arith.constant 0 : index
    %36 = vector.load %arg11[%c0_19, %c0_20] : memref<1x16xf32, #tpu.memory_space<vmem>>, vector<1x16xf32>
    tpu.vector_store %arg11[%c0_19, %c0_20], %35 {strides = array<i32>} : memref<1x16xf32, #tpu.memory_space<vmem>>, vector<1x16xf32>,
    %cst_21 = arith.constant dense<0xFF800000> : vector<8xf32>
    %37 = vector.multi_reduction <maximumf>, %21, %cst_21 [1] : vector<8x16xf32> to vector<8xf32>
    %38 = vector.shape_cast %37 : vector<8xf32> to vector<8x1xf32>
    %39 = vector.broadcast %38 : vector<8x1xf32> to vector<8x16xf32>
    %40 = arith.subf %21, %39 : vector<8x16xf32>
    %41 = math.exp %40 : vector<8x16xf32>
    %cst_22 = arith.constant 0.000000e+00 : f32
    %42 = vector.broadcast %cst_22 : f32 to vector<8x16xf32>
    %43 = arith.select %27, %42, %41 : vector<8x16xi1>, vector<8x16xf32>
    %cst_23 = arith.constant dense<0.000000e+00> : vector<8xf32>
    %44 = vector.multi_reduction <add>, %43, %cst_23 [1] : vector<8x16xf32> to vector<8xf32>
    %45 = vector.shape_cast %44 : vector<8xf32> to vector<8x1xf32>
    %c0_24 = arith.constant 0 : index
    %c0_25 = arith.constant 0 : index
    %46 = vector.load %arg12[%c0_24, %c0_25] : memref<1x16xf32, #tpu.memory_space<vmem>>, vector<1x16xf32>
    %cst_26 = arith.constant dense<0xFF800000> : vector<16xf32>
    %47 = vector.multi_reduction <maximumf>, %21, %cst_26 [0] : vector<8x16xf32> to vector<16xf32>
    %48 = vector.shape_cast %47 : vector<16xf32> to vector<1x16xf32>
    %49 = arith.maximumf %46, %48 : vector<1x16xf32>
    %50 = math.exp %38 : vector<8x1xf32>
    %51 = vector.broadcast %50 : vector<8x1xf32> to vector<8x16xf32>
    %52 = arith.mulf %43, %51 : vector<8x16xf32>
    %cst_27 = arith.constant dense<0.000000e+00> : vector<16xf32>
    %53 = vector.multi_reduction <add>, %52, %cst_27 [0] : vector<8x16xf32> to vector<16xf32>
    %54 = vector.shape_cast %53 : vector<16xf32> to vector<1x16xf32>
    %cst_28 = arith.constant 0.000000e+00 : f32
    %55 = vector.broadcast %cst_28 : f32 to vector<1x16xf32>
    %56 = arith.subf %55, %49 : vector<1x16xf32>
    %57 = math.exp %56 : vector<1x16xf32>
    %58 = arith.mulf %54, %57 : vector<1x16xf32>
    %c0_29 = arith.constant 0 : index
    %c0_30 = arith.constant 0 : index
    %59 = vector.load %arg13[%c0_29, %c0_30] : memref<1x16xf32, #tpu.memory_space<vmem>>, vector<1x16xf32>
    %60 = arith.subf %46, %49 : vector<1x16xf32>
    %61 = math.exp %60 : vector<1x16xf32>
    %62 = arith.mulf %59, %61 : vector<1x16xf32>
    %63 = arith.addf %62, %58 : vector<1x16xf32>
    %c0_31 = arith.constant 0 : index
    %c0_32 = arith.constant 0 : index
    %64 = vector.load %arg13[%c0_31, %c0_32] : memref<1x16xf32, #tpu.memory_space<vmem>>, vector<1x16xf32>
    tpu.vector_store %arg13[%c0_31, %c0_32], %63 {strides = array<i32>} : memref<1x16xf32, #tpu.memory_space<vmem>>, vector<1x16xf32>,
    %c0_33 = arith.constant 0 : index
    %c0_34 = arith.constant 0 : index
    %65 = vector.load %arg12[%c0_33, %c0_34] : memref<1x16xf32, #tpu.memory_space<vmem>>, vector<1x16xf32>
    tpu.vector_store %arg12[%c0_33, %c0_34], %49 {strides = array<i32>} : memref<1x16xf32, #tpu.memory_space<vmem>>, vector<1x16xf32>,
    %66 = arith.subf %31, %38 : vector<8x1xf32>
    %67 = math.exp %66 : vector<8x1xf32>
    %68 = arith.addf %45, %67 : vector<8x1xf32>
    %cst_35 = arith.constant 0.000000e+00 : f32
    %69 = vector.broadcast %cst_35 : f32 to vector<8x16xf32>
    %70 = arith.select %27, %69, %21 : vector<8x16xi1>, vector<8x16xf32>
    %cst_36 = arith.constant dense<0xFF800000> : vector<8xf32>
    %71 = vector.multi_reduction <maximumf>, %70, %cst_36 [1] : vector<8x16xf32> to vector<8xf32>
    %72 = vector.shape_cast %71 : vector<8xf32> to vector<8x1xf32>
    %c0_37 = arith.constant 0 : index
    %c0_38 = arith.constant 0 : index
    %73 = vector.load %arg14[%c0_37, %c0_38] : memref<1x16xf32, #tpu.memory_space<vmem>>, vector<1x16xf32>
    %cst_39 = arith.constant dense<0xFF800000> : vector<16xf32>
    %74 = vector.multi_reduction <maximumf>, %70, %cst_39 [0] : vector<8x16xf32> to vector<16xf32>
    %75 = vector.shape_cast %74 : vector<16xf32> to vector<1x16xf32>
    %76 = arith.maximumf %73, %75 : vector<1x16xf32>
    %c0_40 = arith.constant 0 : index
    %c0_41 = arith.constant 0 : index
    %77 = vector.load %arg14[%c0_40, %c0_41] : memref<1x16xf32, #tpu.memory_space<vmem>>, vector<1x16xf32>
    tpu.vector_store %arg14[%c0_40, %c0_41], %76 {strides = array<i32>} : memref<1x16xf32, #tpu.memory_space<vmem>>, vector<1x16xf32>,
    %78 = math.log %45 : vector<8x1xf32>
    %79 = arith.addf %78, %38 : vector<8x1xf32>
    %80 = arith.subf %31, %79 : vector<8x1xf32>
    %c0_42 = arith.constant 0 : index
    %c0_43 = arith.constant 0 : index
    %81 = vector.load %arg15[%c0_42, %c0_43] : memref<1x1xf32, #tpu.memory_space<vmem>>, vector<1x1xf32>
    %cst_44 = arith.constant dense<0xFF800000> : vector<1xf32>
    %82 = vector.multi_reduction <maximumf>, %72, %cst_44 [0] : vector<8x1xf32> to vector<1xf32>
    %83 = vector.shape_cast %82 : vector<1xf32> to vector<1x1xf32>
    %84 = arith.maximumf %81, %83 : vector<1x1xf32>
    %85 = vector.broadcast %84 : vector<1x1xf32> to vector<8x1xf32>
    %86 = arith.subf %72, %85 : vector<8x1xf32>
    %87 = math.exp %86 : vector<8x1xf32>
    %88 = arith.subf %81, %84 : vector<1x1xf32>
    %89 = math.exp %88 : vector<1x1xf32>
    %c0_45 = arith.constant 0 : index
    %c0_46 = arith.constant 0 : index
    %90 = vector.load %arg16[%c0_45, %c0_46] : memref<1x1xf32, #tpu.memory_space<vmem>>, vector<1x1xf32>
    %91 = arith.mulf %90, %89 : vector<1x1xf32>
    %cst_47 = arith.constant dense<0.000000e+00> : vector<1xf32>
    %92 = vector.multi_reduction <add>, %87, %cst_47 [0] : vector<8x1xf32> to vector<1xf32>
    %93 = vector.shape_cast %92 : vector<1xf32> to vector<1x1xf32>
    %94 = arith.addf %91, %93 : vector<1x1xf32>
    %c0_48 = arith.constant 0 : index
    %c0_49 = arith.constant 0 : index
    %95 = vector.load %arg16[%c0_48, %c0_49] : memref<1x1xf32, #tpu.memory_space<vmem>>, vector<1x1xf32>
    tpu.vector_store %arg16[%c0_48, %c0_49], %94 {strides = array<i32>} : memref<1x1xf32, #tpu.memory_space<vmem>>, vector<1x1xf32>,
    %c0_50 = arith.constant 0 : index
    %c0_51 = arith.constant 0 : index
    %96 = vector.load %arg17[%c0_50, %c0_51] : memref<1x1xf32, #tpu.memory_space<vmem>>, vector<1x1xf32>
    %97 = arith.mulf %96, %89 : vector<1x1xf32>
    %98 = arith.mulf %87, %80 : vector<8x1xf32>
    %cst_52 = arith.constant dense<0.000000e+00> : vector<1xf32>
    %99 = vector.multi_reduction <add>, %98, %cst_52 [0] : vector<8x1xf32> to vector<1xf32>
    %100 = vector.shape_cast %99 : vector<1xf32> to vector<1x1xf32>
    %101 = arith.addf %97, %100 : vector<1x1xf32>
    %c0_53 = arith.constant 0 : index
    %c0_54 = arith.constant 0 : index
    %102 = vector.load %arg17[%c0_53, %c0_54] : memref<1x1xf32, #tpu.memory_space<vmem>>, vector<1x1xf32>
    tpu.vector_store %arg17[%c0_53, %c0_54], %101 {strides = array<i32>} : memref<1x1xf32, #tpu.memory_space<vmem>>, vector<1x1xf32>,
    %c0_55 = arith.constant 0 : index
    %c0_56 = arith.constant 0 : index
    %103 = vector.load %arg15[%c0_55, %c0_56] : memref<1x1xf32, #tpu.memory_space<vmem>>, vector<1x1xf32>
    tpu.vector_store %arg15[%c0_55, %c0_56], %84 {strides = array<i32>} : memref<1x1xf32, #tpu.memory_space<vmem>>, vector<1x1xf32>,
    %104 = arith.divf %67, %68 : vector<8x1xf32>
    %cst_57 = arith.constant 1.000000e+00 : f32
    %105 = vector.broadcast %cst_57 : f32 to vector<8x1xf32>
    %106 = arith.subf %105, %104 : vector<8x1xf32>
    %cst_58 = arith.constant 1.000000e+00 : f32
    %107 = vector.broadcast %cst_58 : f32 to vector<8x1xf32>
    %108 = arith.subf %107, %104 : vector<8x1xf32>
    %109 = arith.mulf %106, %108 : vector<8x1xf32>
    %c0_59 = arith.constant 0 : index
    %c0_60 = arith.constant 0 : index
    %110 = vector.load %arg19[%c0_59, %c0_60] : memref<1x1xf32, #tpu.memory_space<vmem>>, vector<1x1xf32>
    %cst_61 = arith.constant 9.99999993E-9 : f32
    %111 = vector.broadcast %cst_61 : f32 to vector<8x1xf32>
    %112 = arith.addf %104, %111 : vector<8x1xf32>
    %113 = math.log %112 : vector<8x1xf32>
    %114 = arith.mulf %109, %113 : vector<8x1xf32>
    %cst_62 = arith.constant dense<0.000000e+00> : vector<1xf32>
    %115 = vector.multi_reduction <add>, %114, %cst_62 [0] : vector<8x1xf32> to vector<1xf32>
    %116 = vector.shape_cast %115 : vector<1xf32> to vector<1x1xf32>
    %117 = arith.addf %110, %116 : vector<1x1xf32>
    %c0_63 = arith.constant 0 : index
    %c0_64 = arith.constant 0 : index
    %118 = vector.load %arg19[%c0_63, %c0_64] : memref<1x1xf32, #tpu.memory_space<vmem>>, vector<1x1xf32>
    tpu.vector_store %arg19[%c0_63, %c0_64], %117 {strides = array<i32>} : memref<1x1xf32, #tpu.memory_space<vmem>>, vector<1x1xf32>,
    %c1_i32 = arith.constant 1 : i32
    %119 = arith.cmpi eq, %arg0, %c1_i32 : i32
    %120 = arith.extui %119 : i1 to i32
    %c0_i32_65 = arith.constant 0 : i32
    %121 = arith.cmpi ne, %120, %c0_i32_65 : i32
    scf.if %121 {
      %c0_66 = arith.constant 0 : index
      %c0_67 = arith.constant 0 : index
      %122 = vector.load %arg11[%c0_66, %c0_67] : memref<1x16xf32, #tpu.memory_space<vmem>>, vector<1x16xf32>
      %c0_68 = arith.constant 0 : index
      %c0_69 = arith.constant 0 : index
      %123 = vector.load %arg12[%c0_68, %c0_69] : memref<1x16xf32, #tpu.memory_space<vmem>>, vector<1x16xf32>
      %c0_70 = arith.constant 0 : index
      %c0_71 = arith.constant 0 : index
      %124 = vector.load %arg13[%c0_70, %c0_71] : memref<1x16xf32, #tpu.memory_space<vmem>>, vector<1x16xf32>
      %125 = arith.subf %122, %123 : vector<1x16xf32>
      %126 = math.exp %125 : vector<1x16xf32>
      %127 = arith.addf %124, %126 : vector<1x16xf32>
      %c0_72 = arith.constant 0 : index
      %c0_73 = arith.constant 0 : index
      %128 = vector.load %arg17[%c0_72, %c0_73] : memref<1x1xf32, #tpu.memory_space<vmem>>, vector<1x1xf32>
      %c0_74 = arith.constant 0 : index
      %c0_75 = arith.constant 0 : index
      %129 = vector.load %arg16[%c0_74, %c0_75] : memref<1x1xf32, #tpu.memory_space<vmem>>, vector<1x1xf32>
      %130 = arith.divf %128, %129 : vector<1x1xf32>
      %cst_76 = arith.constant 0.000000e+00 : f32
      %131 = vector.broadcast %cst_76 : f32 to vector<1x1xf32>
      %132 = arith.subf %131, %130 : vector<1x1xf32>
      %133 = math.log %124 : vector<1x16xf32>
      %134 = arith.addf %133, %123 : vector<1x16xf32>
      %c0_77 = arith.constant 0 : index
      %c0_78 = arith.constant 0 : index
      %135 = vector.load %arg14[%c0_77, %c0_78] : memref<1x16xf32, #tpu.memory_space<vmem>>, vector<1x16xf32>
      %cst_79 = arith.constant dense<0xFF800000> : vector<1xf32>
      %136 = vector.multi_reduction <maximumf>, %135, %cst_79 [1] : vector<1x16xf32> to vector<1xf32>
      %137 = vector.shape_cast %136 : vector<1xf32> to vector<1x1xf32>
      %138 = vector.broadcast %137 : vector<1x1xf32> to vector<1x16xf32>
      %139 = arith.subf %135, %138 : vector<1x16xf32>
      %140 = math.exp %139 : vector<1x16xf32>
      %141 = arith.subf %122, %134 : vector<1x16xf32>
      %142 = arith.mulf %140, %141 : vector<1x16xf32>
      %cst_80 = arith.constant dense<0.000000e+00> : vector<1xf32>
      %143 = vector.multi_reduction <add>, %142, %cst_80 [1] : vector<1x16xf32> to vector<1xf32>
      %144 = vector.shape_cast %143 : vector<1xf32> to vector<1x1xf32>
      %cst_81 = arith.constant dense<0.000000e+00> : vector<1xf32>
      %145 = vector.multi_reduction <add>, %140, %cst_81 [1] : vector<1x16xf32> to vector<1xf32>
      %146 = vector.shape_cast %145 : vector<1xf32> to vector<1x1xf32>
      %147 = arith.divf %144, %146 : vector<1x1xf32>
      %cst_82 = arith.constant 0.000000e+00 : f32
      %148 = vector.broadcast %cst_82 : f32 to vector<1x1xf32>
      %149 = arith.subf %148, %147 : vector<1x1xf32>
      %150 = arith.addf %132, %149 : vector<1x1xf32>
      %cst_83 = arith.constant 5.000000e-01 : f32
      %151 = vector.broadcast %cst_83 : f32 to vector<1x1xf32>
      %152 = arith.mulf %150, %151 : vector<1x1xf32>
      %153 = arith.divf %126, %127 : vector<1x16xf32>
      %cst_84 = arith.constant 1.000000e+00 : f32
      %154 = vector.broadcast %cst_84 : f32 to vector<1x16xf32>
      %155 = arith.subf %154, %153 : vector<1x16xf32>
      %cst_85 = arith.constant 1.000000e+00 : f32
      %156 = vector.broadcast %cst_85 : f32 to vector<1x16xf32>
      %157 = arith.subf %156, %153 : vector<1x16xf32>
      %158 = arith.mulf %155, %157 : vector<1x16xf32>
      %cst_86 = arith.constant 9.99999993E-9 : f32
      %159 = vector.broadcast %cst_86 : f32 to vector<1x16xf32>
      %160 = arith.addf %153, %159 : vector<1x16xf32>
      %161 = math.log %160 : vector<1x16xf32>
      %162 = arith.mulf %158, %161 : vector<1x16xf32>
      %cst_87 = arith.constant dense<0.000000e+00> : vector<1xf32>
      %163 = vector.multi_reduction <add>, %162, %cst_87 [1] : vector<1x16xf32> to vector<1xf32>
      %164 = vector.shape_cast %163 : vector<1xf32> to vector<1x1xf32>
      %cst_88 = arith.constant 0.000000e+00 : f32
      %165 = vector.broadcast %cst_88 : f32 to vector<1x1xf32>
      %166 = arith.subf %165, %164 : vector<1x1xf32>
      %cst_89 = arith.constant 6.250000e-02 : f32
      %167 = vector.broadcast %cst_89 : f32 to vector<1x1xf32>
      %168 = arith.mulf %166, %167 : vector<1x1xf32>
      %c0_90 = arith.constant 0 : index
      %c0_91 = arith.constant 0 : index
      %169 = vector.load %arg19[%c0_90, %c0_91] : memref<1x1xf32, #tpu.memory_space<vmem>>, vector<1x1xf32>
      %cst_92 = arith.constant 0.000000e+00 : f32
      %170 = vector.broadcast %cst_92 : f32 to vector<1x1xf32>
      %171 = arith.subf %170, %169 : vector<1x1xf32>
      %cst_93 = arith.constant 6.250000e-02 : f32
      %172 = vector.broadcast %cst_93 : f32 to vector<1x1xf32>
      %173 = arith.mulf %171, %172 : vector<1x1xf32>
      %cst_94 = arith.constant 5.000000e-01 : f32
      %174 = vector.broadcast %cst_94 : f32 to vector<1x1xf32>
      %175 = arith.mulf %174, %152 : vector<1x1xf32>
      %176 = arith.addf %173, %168 : vector<1x1xf32>
      %cst_95 = arith.constant 2.500000e-01 : f32
      %177 = vector.broadcast %cst_95 : f32 to vector<1x1xf32>
      %178 = arith.mulf %177, %176 : vector<1x1xf32>
      %179 = arith.addf %175, %178 : vector<1x1xf32>
      %c0_96 = arith.constant 0 : index
      %c0_97 = arith.constant 0 : index
      %180 = vector.load %arg7[%c0_96, %c0_97] : memref<1x1xf32, #tpu.memory_space<vmem>>, vector<1x1xf32>
      tpu.vector_store %arg7[%c0_96, %c0_97], %179 {strides = array<i32>} : memref<1x1xf32, #tpu.memory_space<vmem>>, vector<1x1xf32>,
    } else {
    }
    return
  }
  func.func @transform_0(%arg0: i32) -> (i32, i32) {
    %c0_i32 = arith.constant 0 : i32
    %c0_i32_0 = arith.constant 0 : i32
    return %arg0, %c0_i32 : i32, i32
  }
  func.func @transform_1(%arg0: i32) -> (i32, i32) {
    %c0_i32 = arith.constant 0 : i32
    %c0_i32_0 = arith.constant 0 : i32
    %c0_i32_1 = arith.constant 0 : i32
    return %c0_i32, %c0_i32_0 : i32, i32
  }
  func.func @transform_2(%arg0: i32) -> (i32, i32) {
    %c0_i32 = arith.constant 0 : i32
    %c0_i32_0 = arith.constant 0 : i32
    %c0_i32_1 = arith.constant 0 : i32
    return %c0_i32, %c0_i32_0 : i32, i32
  }
  func.func @transform_3(%arg0: i32) -> (i32, i32) {
    %c0_i32 = arith.constant 0 : i32
    %c0_i32_0 = arith.constant 0 : i32
    %c0_i32_1 = arith.constant 0 : i32
    return %c0_i32, %c0_i32_0 : i32, i32
  }
  func.func @transform_4(%arg0: i32) -> (i32, i32) {
    %c0_i32 = arith.constant 0 : i32
    %c0_i32_0 = arith.constant 0 : i32
    %c0_i32_1 = arith.constant 0 : i32
    return %c0_i32, %c0_i32_0 : i32, i32
  }
  func.func @transform_5(%arg0: i32) -> (i32, i32) {
    %c0_i32 = arith.constant 0 : i32
    %c0_i32_0 = arith.constant 0 : i32
    %c0_i32_1 = arith.constant 0 : i32
    return %c0_i32, %c0_i32_0 : i32, i32
  }
  func.func @transform_6(%arg0: i32) -> (i32, i32) {
    %c0_i32 = arith.constant 0 : i32
    %c0_i32_0 = arith.constant 0 : i32
    %c0_i32_1 = arith.constant 0 : i32
    return %c0_i32, %c0_i32_0 : i32, i32
  }
  func.func @transform_7(%arg0: i32) -> (i32, i32) {
    %c0_i32 = arith.constant 0 : i32
    %c0_i32_0 = arith.constant 0 : i32
    return %arg0, %c0_i32 : i32, i32
  }
  func.func @transform_8(%arg0: i32) -> (i32, i32) {
    %c0_i32 = arith.constant 0 : i32
    %c0_i32_0 = arith.constant 0 : i32
    %c0_i32_1 = arith.constant 0 : i32
    return %c0_i32, %c0_i32_0 : i32, i32
  }
}

module attributes {stable_mosaic.version = 11 : i64} {
  func.func @_clip_kernel(%arg0: i32, %arg1: memref<8x64xf32, #tpu.memory_space<vmem>>, %arg2: memref<16x48xf32, #tpu.memory_space<vmem>>, %arg3: memref<64x128xf32, #tpu.memory_space<vmem>>, %arg4: memref<1x128xf32, #tpu.memory_space<vmem>>, %arg5: memref<48x128xf32, #tpu.memory_space<vmem>>, %arg6: memref<1x128xf32, #tpu.memory_space<vmem>>, %arg7: memref<1x1xf32, #tpu.memory_space<vmem>>, %arg8: memref<8x128xf32, #tpu.memory_space<vmem>>, %arg9: memref<16x128xf32, #tpu.memory_space<vmem>>, %arg10: memref<128x16xf32, #tpu.memory_space<vmem>>, %arg11: memref<1x16xf32, #tpu.memory_space<vmem>>, %arg12: memref<1x16xf32, #tpu.memory_space<vmem>>, %arg13: memref<1x16xf32, #tpu.memory_space<vmem>>, %arg14: memref<1x16xf32, #tpu.memory_space<vmem>>, %arg15: memref<1x1xf32, #tpu.memory_space<vmem>>, %arg16: memref<1x1xf32, #tpu.memory_space<vmem>>, %arg17: memref<1x1xf32, #tpu.memory_space<vmem>>, %arg18: memref<1x1xf32, #tpu.memory_space<vmem>>, %arg19: memref<1x1xf32, #tpu.memory_space<vmem>>) attributes {dimension_semantics = [#tpu.dimension_semantics<arbitrary>], iteration_bounds = array<i64: 2>, scalar_prefetch = 0 : i64, scratch_operands = 10 : i64, tpu.core_type = #tpu.core_type<tc>, window_params = [{transform_indices = @transform_0, window_bounds = array<i64: 8, 64>}, {pipeline_mode = #tpu.pipeline_mode<synchronous>, transform_indices = @transform_1, window_bounds = array<i64: 16, 48>}, {pipeline_mode = #tpu.pipeline_mode<synchronous>, transform_indices = @transform_2, window_bounds = array<i64: 64, 128>}, {pipeline_mode = #tpu.pipeline_mode<synchronous>, transform_indices = @transform_3, window_bounds = array<i64: 1, 128>}, {pipeline_mode = #tpu.pipeline_mode<synchronous>, transform_indices = @transform_4, window_bounds = array<i64: 48, 128>}, {pipeline_mode = #tpu.pipeline_mode<synchronous>, transform_indices = @transform_5, window_bounds = array<i64: 1, 128>}, {pipeline_mode = #tpu.pipeline_mode<synchronous>, transform_indices = @transform_6, window_bounds = array<i64: 1, 1>}, {transform_indices = @transform_7, window_bounds = array<i64: 8, 128>}, {pipeline_mode = #tpu.pipeline_mode<synchronous>, transform_indices = @transform_8, window_bounds = array<i64: 16, 128>}]} {
    %c0_i32 = arith.constant 0 : i32
    %0 = arith.cmpi eq, %arg0, %c0_i32 : i32
    %1 = arith.extui %0 : i1 to i32
    %c0_i32_0 = arith.constant 0 : i32
    %2 = arith.cmpi ne, %1, %c0_i32_0 : i32
    scf.if %2 {
      %c0_66 = arith.constant 0 : index
      %c0_67 = arith.constant 0 : index
      %122 = vector.load %arg2[%c0_66, %c0_67] : memref<16x48xf32, #tpu.memory_space<vmem>>, vector<16x48xf32>
      %c0_68 = arith.constant 0 : index
      %c0_69 = arith.constant 0 : index
      %123 = vector.load %arg5[%c0_68, %c0_69] : memref<48x128xf32, #tpu.memory_space<vmem>>, vector<48x128xf32>
      %cst_70 = arith.constant dense<0.000000e+00> : vector<16x128xf32>
      %124 = tpu.matmul %122, %123, %cst_70 {dimension_numbers = #tpu.dot_dimension_numbers<[1], [0], [0], [1], [0, 0, 1, 1], [], []>} : vector<16x48xf32>, vector<48x128xf32>, vector<16x128xf32> -> vector<16x128xf32>
      %c0_71 = arith.constant 0 : index
      %c0_72 = arith.constant 0 : index
      %125 = vector.load %arg6[%c0_71, %c0_72] : memref<1x128xf32, #tpu.memory_space<vmem>>, vector<1x128xf32>
      %126 = vector.broadcast %125 : vector<1x128xf32> to vector<16x128xf32>
      %127 = arith.addf %124, %126 : vector<16x128xf32>
      %128 = arith.mulf %127, %127 : vector<16x128xf32>
      %cst_73 = arith.constant dense<0.000000e+00> : vector<16xf32>
      %129 = vector.multi_reduction <add>, %128, %cst_73 [1] : vector<16x128xf32> to vector<16xf32>
      %130 = vector.shape_cast %129 : vector<16xf32> to vector<16x1xf32>
      %cst_74 = arith.constant 1.000000e-24 : f32
      %131 = vector.broadcast %cst_74 : f32 to vector<16x1xf32>
      %132 = arith.maximumf %130, %131 : vector<16x1xf32>
      %133 = math.rsqrt %132 : vector<16x1xf32>
      %134 = vector.broadcast %133 : vector<16x1xf32> to vector<16x128xf32>
      %135 = arith.mulf %127, %134 : vector<16x128xf32>
      %c0_75 = arith.constant 0 : index
      %c0_76 = arith.constant 0 : index
      %136 = vector.load %arg9[%c0_75, %c0_76] : memref<16x128xf32, #tpu.memory_space<vmem>>, vector<16x128xf32>
      tpu.vector_store %arg9[%c0_75, %c0_76], %135 {strides = array<i32>} : memref<16x128xf32, #tpu.memory_space<vmem>>, vector<16x128xf32>,
      %137 = tpu.transpose %135, [1, 0] : vector<16x128xf32> -> vector<128x16xf32>
      %c0_77 = arith.constant 0 : index
      %c0_78 = arith.constant 0 : index
      %138 = vector.load %arg10[%c0_77, %c0_78] : memref<128x16xf32, #tpu.memory_space<vmem>>, vector<128x16xf32>
      tpu.vector_store %arg10[%c0_77, %c0_78], %137 {strides = array<i32>} : memref<128x16xf32, #tpu.memory_space<vmem>>, vector<128x16xf32>,
      %cst_79 = arith.constant 0.000000e+00 : f32
      %139 = vector.broadcast %cst_79 : f32 to vector<1x16xf32>
      %c0_80 = arith.constant 0 : index
      %c0_81 = arith.constant 0 : index
      %140 = vector.load %arg11[%c0_80, %c0_81] : memref<1x16xf32, #tpu.memory_space<vmem>>, vector<1x16xf32>
      tpu.vector_store %arg11[%c0_80, %c0_81], %139 {strides = array<i32>} : memref<1x16xf32, #tpu.memory_space<vmem>>, vector<1x16xf32>,
      %cst_82 = arith.constant 0xFF800000 : f32
      %141 = vector.broadcast %cst_82 : f32 to vector<1x16xf32>
      %c0_83 = arith.constant 0 : index
      %c0_84 = arith.constant 0 : index
      %142 = vector.load %arg12[%c0_83, %c0_84] : memref<1x16xf32, #tpu.memory_space<vmem>>, vector<1x16xf32>
      tpu.vector_store %arg12[%c0_83, %c0_84], %141 {strides = array<i32>} : memref<1x16xf32, #tpu.memory_space<vmem>>, vector<1x16xf32>,
      %cst_85 = arith.constant 0.000000e+00 : f32
      %143 = vector.broadcast %cst_85 : f32 to vector<1x16xf32>
      %c0_86 = arith.constant 0 : index
      %c0_87 = arith.constant 0 : index
      %144 = vector.load %arg13[%c0_86, %c0_87] : memref<1x16xf32, #tpu.memory_space<vmem>>, vector<1x16xf32>
      tpu.vector_store %arg13[%c0_86, %c0_87], %143 {strides = array<i32>} : memref<1x16xf32, #tpu.memory_space<vmem>>, vector<1x16xf32>,
      %cst_88 = arith.constant 0.000000e+00 : f32
      %145 = vector.broadcast %cst_88 : f32 to vector<1x1xf32>
      %c0_89 = arith.constant 0 : index
      %c0_90 = arith.constant 0 : index
      %146 = vector.load %arg18[%c0_89, %c0_90] : memref<1x1xf32, #tpu.memory_space<vmem>>, vector<1x1xf32>
      tpu.vector_store %arg18[%c0_89, %c0_90], %145 {strides = array<i32>} : memref<1x1xf32, #tpu.memory_space<vmem>>, vector<1x1xf32>,
      %cst_91 = arith.constant 0.000000e+00 : f32
      %147 = vector.broadcast %cst_91 : f32 to vector<1x1xf32>
      %c0_92 = arith.constant 0 : index
      %c0_93 = arith.constant 0 : index
      %148 = vector.load %arg19[%c0_92, %c0_93] : memref<1x1xf32, #tpu.memory_space<vmem>>, vector<1x1xf32>
      tpu.vector_store %arg19[%c0_92, %c0_93], %147 {strides = array<i32>} : memref<1x1xf32, #tpu.memory_space<vmem>>, vector<1x1xf32>,
      %cst_94 = arith.constant 0xFF800000 : f32
      %149 = vector.broadcast %cst_94 : f32 to vector<1x16xf32>
      %c0_95 = arith.constant 0 : index
      %c0_96 = arith.constant 0 : index
      %150 = vector.load %arg14[%c0_95, %c0_96] : memref<1x16xf32, #tpu.memory_space<vmem>>, vector<1x16xf32>
      tpu.vector_store %arg14[%c0_95, %c0_96], %149 {strides = array<i32>} : memref<1x16xf32, #tpu.memory_space<vmem>>, vector<1x16xf32>,
      %cst_97 = arith.constant 0xFF800000 : f32
      %151 = vector.broadcast %cst_97 : f32 to vector<1x1xf32>
      %c0_98 = arith.constant 0 : index
      %c0_99 = arith.constant 0 : index
      %152 = vector.load %arg15[%c0_98, %c0_99] : memref<1x1xf32, #tpu.memory_space<vmem>>, vector<1x1xf32>
      tpu.vector_store %arg15[%c0_98, %c0_99], %151 {strides = array<i32>} : memref<1x1xf32, #tpu.memory_space<vmem>>, vector<1x1xf32>,
      %cst_100 = arith.constant 0.000000e+00 : f32
      %153 = vector.broadcast %cst_100 : f32 to vector<1x1xf32>
      %c0_101 = arith.constant 0 : index
      %c0_102 = arith.constant 0 : index
      %154 = vector.load %arg16[%c0_101, %c0_102] : memref<1x1xf32, #tpu.memory_space<vmem>>, vector<1x1xf32>
      tpu.vector_store %arg16[%c0_101, %c0_102], %153 {strides = array<i32>} : memref<1x1xf32, #tpu.memory_space<vmem>>, vector<1x1xf32>,
      %cst_103 = arith.constant 0.000000e+00 : f32
      %155 = vector.broadcast %cst_103 : f32 to vector<1x1xf32>
      %c0_104 = arith.constant 0 : index
      %c0_105 = arith.constant 0 : index
      %156 = vector.load %arg17[%c0_104, %c0_105] : memref<1x1xf32, #tpu.memory_space<vmem>>, vector<1x1xf32>
      tpu.vector_store %arg17[%c0_104, %c0_105], %155 {strides = array<i32>} : memref<1x1xf32, #tpu.memory_space<vmem>>, vector<1x1xf32>,
    } else {
    }
    %c0 = arith.constant 0 : index
    %c0_1 = arith.constant 0 : index
    %3 = vector.load %arg1[%c0, %c0_1] : memref<8x64xf32, #tpu.memory_space<vmem>>, vector<8x64xf32>
    %c0_2 = arith.constant 0 : index
    %c0_3 = arith.constant 0 : index
    %4 = vector.load %arg3[%c0_2, %c0_3] : memref<64x128xf32, #tpu.memory_space<vmem>>, vector<64x128xf32>
    %cst = arith.constant dense<0.000000e+00> : vector<8x128xf32>
    %5 = tpu.matmul %3, %4, %cst {dimension_numbers = #tpu.dot_dimension_numbers<[1], [0], [0], [1], [0, 0, 1, 1], [], []>} : vector<8x64xf32>, vector<64x128xf32>, vector<8x128xf32> -> vector<8x128xf32>
    %c0_4 = arith.constant 0 : index
    %c0_5 = arith.constant 0 : index
    %6 = vector.load %arg4[%c0_4, %c0_5] : memref<1x128xf32, #tpu.memory_space<vmem>>, vector<1x128xf32>
    %7 = vector.broadcast %6 : vector<1x128xf32> to vector<8x128xf32>
    %8 = arith.addf %5, %7 : vector<8x128xf32>
    %9 = arith.mulf %8, %8 : vector<8x128xf32>
    %cst_6 = arith.constant dense<0.000000e+00> : vector<8xf32>
    %10 = vector.multi_reduction <add>, %9, %cst_6 [1] : vector<8x128xf32> to vector<8xf32>
    %11 = vector.shape_cast %10 : vector<8xf32> to vector<8x1xf32>
    %cst_7 = arith.constant 1.000000e-24 : f32
    %12 = vector.broadcast %cst_7 : f32 to vector<8x1xf32>
    %13 = arith.maximumf %11, %12 : vector<8x1xf32>
    %14 = math.rsqrt %13 : vector<8x1xf32>
    %15 = vector.broadcast %14 : vector<8x1xf32> to vector<8x128xf32>
    %16 = arith.mulf %8, %15 : vector<8x128xf32>
    %c0_8 = arith.constant 0 : index
    %c0_9 = arith.constant 0 : index
    %17 = vector.load %arg8[%c0_8, %c0_9] : memref<8x128xf32, #tpu.memory_space<vmem>>, vector<8x128xf32>
    tpu.vector_store %arg8[%c0_8, %c0_9], %16 {strides = array<i32>} : memref<8x128xf32, #tpu.memory_space<vmem>>, vector<8x128xf32>,
    %c0_10 = arith.constant 0 : index
    %c0_11 = arith.constant 0 : index
    %18 = vector.load %arg10[%c0_10, %c0_11] : memref<128x16xf32, #tpu.memory_space<vmem>>, vector<128x16xf32>
    %cst_12 = arith.constant dense<0.000000e+00> : vector<8x16xf32>
    %19 = tpu.matmul %16, %18, %cst_12 {dimension_numbers = #tpu.dot_dimension_numbers<[1], [0], [0], [1], [0, 0, 1, 1], [], []>} : vector<8x128xf32>, vector<128x16xf32>, vector<8x16xf32> -> vector<8x16xf32>
    %cst_13 = arith.constant 14.2857141 : f32
    %20 = vector.broadcast %cst_13 : f32 to vector<8x16xf32>
    %21 = arith.mulf %19, %20 : vector<8x16xf32>
    %c8_i32 = arith.constant 8 : i32
    %22 = arith.muli %arg0, %c8_i32 : i32
    %23 = tpu.iota {dimensions = array<i32: 0>} : vector<8x16xi32>
    %24 = vector.broadcast %22 : i32 to vector<8x16xi32>
    %25 = arith.addi %24, %23 : vector<8x16xi32>
    %26 = tpu.iota {dimensions = array<i32: 1>} : vector<8x16xi32>
    %27 = arith.cmpi eq, %25, %26 : vector<8x16xi32>
    %cst_14 = arith.constant 0.000000e+00 : f32
    %28 = vector.broadcast %cst_14 : f32 to vector<8x16xf32>
    %29 = arith.select %27, %21, %28 : vector<8x16xi1>, vector<8x16xf32>
    %cst_15 = arith.constant dense<0.000000e+00> : vector<8xf32>
    %30 = vector.multi_reduction <add>, %29, %cst_15 [1] : vector<8x16xf32> to vector<8xf32>
    %31 = vector.shape_cast %30 : vector<8xf32> to vector<8x1xf32>
    %c0_16 = arith.constant 0 : index
    %c0_17 = arith.constant 0 : index
    %32 = vector.load %arg11[%c0_16, %c0_17] : memref<1x16xf32, #tpu.memory_space<vmem>>, vector<1x16xf32>
    %cst_18 = arith.constant dense<0.000000e+00> : vector<16xf32>
    %33 = vector.multi_reduction <add>, %29, %cst_18 [0] : vector<8x16xf32> to vector<16xf32>
    %34 = vector.shape_cast %33 : vector<16xf32> to vector<1x16xf32>
    %35 = arith.addf %32, %34 : vector<1x16xf32>
    %c0_19 = arith.constant 0 : index
    %c0_20 = arith.constant 0 : index
    %36 = vector.load %arg11[%c0_19, %c0_20] : memref<1x16xf32, #tpu.memory_space<vmem>>, vector<1x16xf32>
    tpu.vector_store %arg11[%c0_19, %c0_20], %35 {strides = array<i32>} : memref<1x16xf32, #tpu.memory_space<vmem>>, vector<1x16xf32>,
    %cst_21 = arith.constant dense<0xFF800000> : vector<8xf32>
    %37 = vector.multi_reduction <maximumf>, %21, %cst_21 [1] : vector<8x16xf32> to vector<8xf32>
    %38 = vector.shape_cast %37 : vector<8xf32> to vector<8x1xf32>
    %39 = vector.broadcast %38 : vector<8x1xf32> to vector<8x16xf32>
    %40 = arith.subf %21, %39 : vector<8x16xf32>
    %41 = math.exp %40 : vector<8x16xf32>
    %cst_22 = arith.constant 0.000000e+00 : f32
    %42 = vector.broadcast %cst_22 : f32 to vector<8x16xf32>
    %43 = arith.select %27, %42, %41 : vector<8x16xi1>, vector<8x16xf32>
    %cst_23 = arith.constant dense<0.000000e+00> : vector<8xf32>
    %44 = vector.multi_reduction <add>, %43, %cst_23 [1] : vector<8x16xf32> to vector<8xf32>
    %45 = vector.shape_cast %44 : vector<8xf32> to vector<8x1xf32>
    %c0_24 = arith.constant 0 : index
    %c0_25 = arith.constant 0 : index
    %46 = vector.load %arg12[%c0_24, %c0_25] : memref<1x16xf32, #tpu.memory_space<vmem>>, vector<1x16xf32>
    %cst_26 = arith.constant dense<0xFF800000> : vector<16xf32>
    %47 = vector.multi_reduction <maximumf>, %21, %cst_26 [0] : vector<8x16xf32> to vector<16xf32>
    %48 = vector.shape_cast %47 : vector<16xf32> to vector<1x16xf32>
    %49 = arith.maximumf %46, %48 : vector<1x16xf32>
    %50 = math.exp %38 : vector<8x1xf32>
    %51 = vector.broadcast %50 : vector<8x1xf32> to vector<8x16xf32>
    %52 = arith.mulf %43, %51 : vector<8x16xf32>
    %cst_27 = arith.constant dense<0.000000e+00> : vector<16xf32>
    %53 = vector.multi_reduction <add>, %52, %cst_27 [0] : vector<8x16xf32> to vector<16xf32>
    %54 = vector.shape_cast %53 : vector<16xf32> to vector<1x16xf32>
    %cst_28 = arith.constant 0.000000e+00 : f32
    %55 = vector.broadcast %cst_28 : f32 to vector<1x16xf32>
    %56 = arith.subf %55, %49 : vector<1x16xf32>
    %57 = math.exp %56 : vector<1x16xf32>
    %58 = arith.mulf %54, %57 : vector<1x16xf32>
    %c0_29 = arith.constant 0 : index
    %c0_30 = arith.constant 0 : index
    %59 = vector.load %arg13[%c0_29, %c0_30] : memref<1x16xf32, #tpu.memory_space<vmem>>, vector<1x16xf32>
    %60 = arith.subf %46, %49 : vector<1x16xf32>
    %61 = math.exp %60 : vector<1x16xf32>
    %62 = arith.mulf %59, %61 : vector<1x16xf32>
    %63 = arith.addf %62, %58 : vector<1x16xf32>
    %c0_31 = arith.constant 0 : index
    %c0_32 = arith.constant 0 : index
    %64 = vector.load %arg13[%c0_31, %c0_32] : memref<1x16xf32, #tpu.memory_space<vmem>>, vector<1x16xf32>
    tpu.vector_store %arg13[%c0_31, %c0_32], %63 {strides = array<i32>} : memref<1x16xf32, #tpu.memory_space<vmem>>, vector<1x16xf32>,
    %c0_33 = arith.constant 0 : index
    %c0_34 = arith.constant 0 : index
    %65 = vector.load %arg12[%c0_33, %c0_34] : memref<1x16xf32, #tpu.memory_space<vmem>>, vector<1x16xf32>
    tpu.vector_store %arg12[%c0_33, %c0_34], %49 {strides = array<i32>} : memref<1x16xf32, #tpu.memory_space<vmem>>, vector<1x16xf32>,
    %66 = arith.subf %31, %38 : vector<8x1xf32>
    %67 = math.exp %66 : vector<8x1xf32>
    %68 = arith.addf %45, %67 : vector<8x1xf32>
    %cst_35 = arith.constant 0.000000e+00 : f32
    %69 = vector.broadcast %cst_35 : f32 to vector<8x16xf32>
    %70 = arith.select %27, %69, %21 : vector<8x16xi1>, vector<8x16xf32>
    %cst_36 = arith.constant dense<0xFF800000> : vector<8xf32>
    %71 = vector.multi_reduction <maximumf>, %70, %cst_36 [1] : vector<8x16xf32> to vector<8xf32>
    %72 = vector.shape_cast %71 : vector<8xf32> to vector<8x1xf32>
    %c0_37 = arith.constant 0 : index
    %c0_38 = arith.constant 0 : index
    %73 = vector.load %arg14[%c0_37, %c0_38] : memref<1x16xf32, #tpu.memory_space<vmem>>, vector<1x16xf32>
    %cst_39 = arith.constant dense<0xFF800000> : vector<16xf32>
    %74 = vector.multi_reduction <maximumf>, %70, %cst_39 [0] : vector<8x16xf32> to vector<16xf32>
    %75 = vector.shape_cast %74 : vector<16xf32> to vector<1x16xf32>
    %76 = arith.maximumf %73, %75 : vector<1x16xf32>
    %c0_40 = arith.constant 0 : index
    %c0_41 = arith.constant 0 : index
    %77 = vector.load %arg14[%c0_40, %c0_41] : memref<1x16xf32, #tpu.memory_space<vmem>>, vector<1x16xf32>
    tpu.vector_store %arg14[%c0_40, %c0_41], %76 {strides = array<i32>} : memref<1x16xf32, #tpu.memory_space<vmem>>, vector<1x16xf32>,
    %78 = math.log %45 : vector<8x1xf32>
    %79 = arith.addf %78, %38 : vector<8x1xf32>
    %80 = arith.subf %31, %79 : vector<8x1xf32>
    %c0_42 = arith.constant 0 : index
    %c0_43 = arith.constant 0 : index
    %81 = vector.load %arg15[%c0_42, %c0_43] : memref<1x1xf32, #tpu.memory_space<vmem>>, vector<1x1xf32>
    %cst_44 = arith.constant dense<0xFF800000> : vector<1xf32>
    %82 = vector.multi_reduction <maximumf>, %72, %cst_44 [0] : vector<8x1xf32> to vector<1xf32>
    %83 = vector.shape_cast %82 : vector<1xf32> to vector<1x1xf32>
    %84 = arith.maximumf %81, %83 : vector<1x1xf32>
    %85 = vector.broadcast %84 : vector<1x1xf32> to vector<8x1xf32>
    %86 = arith.subf %72, %85 : vector<8x1xf32>
    %87 = math.exp %86 : vector<8x1xf32>
    %88 = arith.subf %81, %84 : vector<1x1xf32>
    %89 = math.exp %88 : vector<1x1xf32>
    %c0_45 = arith.constant 0 : index
    %c0_46 = arith.constant 0 : index
    %90 = vector.load %arg16[%c0_45, %c0_46] : memref<1x1xf32, #tpu.memory_space<vmem>>, vector<1x1xf32>
    %91 = arith.mulf %90, %89 : vector<1x1xf32>
    %cst_47 = arith.constant dense<0.000000e+00> : vector<1xf32>
    %92 = vector.multi_reduction <add>, %87, %cst_47 [0] : vector<8x1xf32> to vector<1xf32>
    %93 = vector.shape_cast %92 : vector<1xf32> to vector<1x1xf32>
    %94 = arith.addf %91, %93 : vector<1x1xf32>
    %c0_48 = arith.constant 0 : index
    %c0_49 = arith.constant 0 : index
    %95 = vector.load %arg16[%c0_48, %c0_49] : memref<1x1xf32, #tpu.memory_space<vmem>>, vector<1x1xf32>
    tpu.vector_store %arg16[%c0_48, %c0_49], %94 {strides = array<i32>} : memref<1x1xf32, #tpu.memory_space<vmem>>, vector<1x1xf32>,
    %c0_50 = arith.constant 0 : index
    %c0_51 = arith.constant 0 : index
    %96 = vector.load %arg17[%c0_50, %c0_51] : memref<1x1xf32, #tpu.memory_space<vmem>>, vector<1x1xf32>
    %97 = arith.mulf %96, %89 : vector<1x1xf32>
    %98 = arith.mulf %87, %80 : vector<8x1xf32>
    %cst_52 = arith.constant dense<0.000000e+00> : vector<1xf32>
    %99 = vector.multi_reduction <add>, %98, %cst_52 [0] : vector<8x1xf32> to vector<1xf32>
    %100 = vector.shape_cast %99 : vector<1xf32> to vector<1x1xf32>
    %101 = arith.addf %97, %100 : vector<1x1xf32>
    %c0_53 = arith.constant 0 : index
    %c0_54 = arith.constant 0 : index
    %102 = vector.load %arg17[%c0_53, %c0_54] : memref<1x1xf32, #tpu.memory_space<vmem>>, vector<1x1xf32>
    tpu.vector_store %arg17[%c0_53, %c0_54], %101 {strides = array<i32>} : memref<1x1xf32, #tpu.memory_space<vmem>>, vector<1x1xf32>,
    %c0_55 = arith.constant 0 : index
    %c0_56 = arith.constant 0 : index
    %103 = vector.load %arg15[%c0_55, %c0_56] : memref<1x1xf32, #tpu.memory_space<vmem>>, vector<1x1xf32>
    tpu.vector_store %arg15[%c0_55, %c0_56], %84 {strides = array<i32>} : memref<1x1xf32, #tpu.memory_space<vmem>>, vector<1x1xf32>,
    %104 = arith.divf %67, %68 : vector<8x1xf32>
    %cst_57 = arith.constant 1.000000e+00 : f32
    %105 = vector.broadcast %cst_57 : f32 to vector<8x1xf32>
    %106 = arith.subf %105, %104 : vector<8x1xf32>
    %cst_58 = arith.constant 1.000000e+00 : f32
    %107 = vector.broadcast %cst_58 : f32 to vector<8x1xf32>
    %108 = arith.subf %107, %104 : vector<8x1xf32>
    %109 = arith.mulf %106, %108 : vector<8x1xf32>
    %c0_59 = arith.constant 0 : index
    %c0_60 = arith.constant 0 : index
    %110 = vector.load %arg19[%c0_59, %c0_60] : memref<1x1xf32, #tpu.memory_space<vmem>>, vector<1x1xf32>
    %cst_61 = arith.constant 9.99999993E-9 : f32
    %111 = vector.broadcast %cst_61 : f32 to vector<8x1xf32>
    %112 = arith.addf %104, %111 : vector<8x1xf32>
    %113 = math.log %112 : vector<8x1xf32>
    %114 = arith.mulf %109, %113 : vector<8x1xf32>
    %cst_62 = arith.constant dense<0.000000e+00> : vector<1xf32>
    %115 = vector.multi_reduction <add>, %114, %cst_62 [0] : vector<8x1xf32> to vector<1xf32>
    %116 = vector.shape_cast %115 : vector<1xf32> to vector<1x1xf32>
    %117 = arith.addf %110, %116 : vector<1x1xf32>
    %c0_63 = arith.constant 0 : index
    %c0_64 = arith.constant 0 : index
    %118 = vector.load %arg19[%c0_63, %c0_64] : memref<1x1xf32, #tpu.memory_space<vmem>>, vector<1x1xf32>
    tpu.vector_store %arg19[%c0_63, %c0_64], %117 {strides = array<i32>} : memref<1x1xf32, #tpu.memory_space<vmem>>, vector<1x1xf32>,
    %c1_i32 = arith.constant 1 : i32
    %119 = arith.cmpi eq, %arg0, %c1_i32 : i32
    %120 = arith.extui %119 : i1 to i32
    %c0_i32_65 = arith.constant 0 : i32
    %121 = arith.cmpi ne, %120, %c0_i32_65 : i32
    scf.if %121 {
      %c0_66 = arith.constant 0 : index
      %c0_67 = arith.constant 0 : index
      %122 = vector.load %arg11[%c0_66, %c0_67] : memref<1x16xf32, #tpu.memory_space<vmem>>, vector<1x16xf32>
      %c0_68 = arith.constant 0 : index
      %c0_69 = arith.constant 0 : index
      %123 = vector.load %arg12[%c0_68, %c0_69] : memref<1x16xf32, #tpu.memory_space<vmem>>, vector<1x16xf32>
      %c0_70 = arith.constant 0 : index
      %c0_71 = arith.constant 0 : index
      %124 = vector.load %arg13[%c0_70, %c0_71] : memref<1x16xf32, #tpu.memory_space<vmem>>, vector<1x16xf32>
      %125 = arith.subf %122, %123 : vector<1x16xf32>
      %126 = math.exp %125 : vector<1x16xf32>
      %127 = arith.addf %124, %126 : vector<1x16xf32>
      %c0_72 = arith.constant 0 : index
      %c0_73 = arith.constant 0 : index
      %128 = vector.load %arg17[%c0_72, %c0_73] : memref<1x1xf32, #tpu.memory_space<vmem>>, vector<1x1xf32>
      %c0_74 = arith.constant 0 : index
      %c0_75 = arith.constant 0 : index
      %129 = vector.load %arg16[%c0_74, %c0_75] : memref<1x1xf32, #tpu.memory_space<vmem>>, vector<1x1xf32>
      %130 = arith.divf %128, %129 : vector<1x1xf32>
      %cst_76 = arith.constant 0.000000e+00 : f32
      %131 = vector.broadcast %cst_76 : f32 to vector<1x1xf32>
      %132 = arith.subf %131, %130 : vector<1x1xf32>
      %133 = math.log %124 : vector<1x16xf32>
      %134 = arith.addf %133, %123 : vector<1x16xf32>
      %c0_77 = arith.constant 0 : index
      %c0_78 = arith.constant 0 : index
      %135 = vector.load %arg14[%c0_77, %c0_78] : memref<1x16xf32, #tpu.memory_space<vmem>>, vector<1x16xf32>
      %cst_79 = arith.constant dense<0xFF800000> : vector<1xf32>
      %136 = vector.multi_reduction <maximumf>, %135, %cst_79 [1] : vector<1x16xf32> to vector<1xf32>
      %137 = vector.shape_cast %136 : vector<1xf32> to vector<1x1xf32>
      %138 = vector.broadcast %137 : vector<1x1xf32> to vector<1x16xf32>
      %139 = arith.subf %135, %138 : vector<1x16xf32>
      %140 = math.exp %139 : vector<1x16xf32>
      %141 = arith.subf %122, %134 : vector<1x16xf32>
      %142 = arith.mulf %140, %141 : vector<1x16xf32>
      %cst_80 = arith.constant dense<0.000000e+00> : vector<1xf32>
      %143 = vector.multi_reduction <add>, %142, %cst_80 [1] : vector<1x16xf32> to vector<1xf32>
      %144 = vector.shape_cast %143 : vector<1xf32> to vector<1x1xf32>
      %cst_81 = arith.constant dense<0.000000e+00> : vector<1xf32>
      %145 = vector.multi_reduction <add>, %140, %cst_81 [1] : vector<1x16xf32> to vector<1xf32>
      %146 = vector.shape_cast %145 : vector<1xf32> to vector<1x1xf32>
      %147 = arith.divf %144, %146 : vector<1x1xf32>
      %cst_82 = arith.constant 0.000000e+00 : f32
      %148 = vector.broadcast %cst_82 : f32 to vector<1x1xf32>
      %149 = arith.subf %148, %147 : vector<1x1xf32>
      %150 = arith.addf %132, %149 : vector<1x1xf32>
      %cst_83 = arith.constant 5.000000e-01 : f32
      %151 = vector.broadcast %cst_83 : f32 to vector<1x1xf32>
      %152 = arith.mulf %150, %151 : vector<1x1xf32>
      %153 = arith.divf %126, %127 : vector<1x16xf32>
      %cst_84 = arith.constant 1.000000e+00 : f32
      %154 = vector.broadcast %cst_84 : f32 to vector<1x16xf32>
      %155 = arith.subf %154, %153 : vector<1x16xf32>
      %cst_85 = arith.constant 1.000000e+00 : f32
      %156 = vector.broadcast %cst_85 : f32 to vector<1x16xf32>
      %157 = arith.subf %156, %153 : vector<1x16xf32>
      %158 = arith.mulf %155, %157 : vector<1x16xf32>
      %cst_86 = arith.constant 9.99999993E-9 : f32
      %159 = vector.broadcast %cst_86 : f32 to vector<1x16xf32>
      %160 = arith.addf %153, %159 : vector<1x16xf32>
      %161 = math.log %160 : vector<1x16xf32>
      %162 = arith.mulf %158, %161 : vector<1x16xf32>
      %cst_87 = arith.constant dense<0.000000e+00> : vector<1xf32>
      %163 = vector.multi_reduction <add>, %162, %cst_87 [1] : vector<1x16xf32> to vector<1xf32>
      %164 = vector.shape_cast %163 : vector<1xf32> to vector<1x1xf32>
      %cst_88 = arith.constant 0.000000e+00 : f32
      %165 = vector.broadcast %cst_88 : f32 to vector<1x1xf32>
      %166 = arith.subf %165, %164 : vector<1x1xf32>
      %cst_89 = arith.constant 6.250000e-02 : f32
      %167 = vector.broadcast %cst_89 : f32 to vector<1x1xf32>
      %168 = arith.mulf %166, %167 : vector<1x1xf32>
      %c0_90 = arith.constant 0 : index
      %c0_91 = arith.constant 0 : index
      %169 = vector.load %arg19[%c0_90, %c0_91] : memref<1x1xf32, #tpu.memory_space<vmem>>, vector<1x1xf32>
      %cst_92 = arith.constant 0.000000e+00 : f32
      %170 = vector.broadcast %cst_92 : f32 to vector<1x1xf32>
      %171 = arith.subf %170, %169 : vector<1x1xf32>
      %cst_93 = arith.constant 6.250000e-02 : f32
      %172 = vector.broadcast %cst_93 : f32 to vector<1x1xf32>
      %173 = arith.mulf %171, %172 : vector<1x1xf32>
      %cst_94 = arith.constant 5.000000e-01 : f32
      %174 = vector.broadcast %cst_94 : f32 to vector<1x1xf32>
      %175 = arith.mulf %174, %152 : vector<1x1xf32>
      %176 = arith.addf %173, %168 : vector<1x1xf32>
      %cst_95 = arith.constant 2.500000e-01 : f32
      %177 = vector.broadcast %cst_95 : f32 to vector<1x1xf32>
      %178 = arith.mulf %177, %176 : vector<1x1xf32>
      %179 = arith.addf %175, %178 : vector<1x1xf32>
      %c0_96 = arith.constant 0 : index
      %c0_97 = arith.constant 0 : index
      %180 = vector.load %arg7[%c0_96, %c0_97] : memref<1x1xf32, #tpu.memory_space<vmem>>, vector<1x1xf32>
      tpu.vector_store %arg7[%c0_96, %c0_97], %179 {strides = array<i32>} : memref<1x1xf32, #tpu.memory_space<vmem>>, vector<1x1xf32>,
    } else {
    }
    return
  }
  func.func @transform_0(%arg0: i32) -> (i32, i32) {
    %c0_i32 = arith.constant 0 : i32
    %c0_i32_0 = arith.constant 0 : i32
    return %arg0, %c0_i32 : i32, i32
  }
  func.func @transform_1(%arg0: i32) -> (i32, i32) {
    %c0_i32 = arith.constant 0 : i32
    %c0_i32_0 = arith.constant 0 : i32
    %c0_i32_1 = arith.constant 0 : i32
    return %c0_i32, %c0_i32_0 : i32, i32
  }
  func.func @transform_2(%arg0: i32) -> (i32, i32) {
    %c0_i32 = arith.constant 0 : i32
    %c0_i32_0 = arith.constant 0 : i32
    %c0_i32_1 = arith.constant 0 : i32
    return %c0_i32, %c0_i32_0 : i32, i32
  }
  func.func @transform_3(%arg0: i32) -> (i32, i32) {
    %c0_i32 = arith.constant 0 : i32
    %c0_i32_0 = arith.constant 0 : i32
    %c0_i32_1 = arith.constant 0 : i32
    return %c0_i32, %c0_i32_0 : i32, i32
  }
  func.func @transform_4(%arg0: i32) -> (i32, i32) {
    %c0_i32 = arith.constant 0 : i32
    %c0_i32_0 = arith.constant 0 : i32
    %c0_i32_1 = arith.constant 0 : i32
    return %c0_i32, %c0_i32_0 : i32, i32
  }
  func.func @transform_5(%arg0: i32) -> (i32, i32) {
    %c0_i32 = arith.constant 0 : i32
    %c0_i32_0 = arith.constant 0 : i32
    %c0_i32_1 = arith.constant 0 : i32
    return %c0_i32, %c0_i32_0 : i32, i32
  }
  func.func @transform_6(%arg0: i32) -> (i32, i32) {
    %c0_i32 = arith.constant 0 : i32
    %c0_i32_0 = arith.constant 0 : i32
    %c0_i32_1 = arith.constant 0 : i32
    return %c0_i32, %c0_i32_0 : i32, i32
  }
  func.func @transform_7(%arg0: i32) -> (i32, i32) {
    %c0_i32 = arith.constant 0 : i32
    %c0_i32_0 = arith.constant 0 : i32
    return %arg0, %c0_i32 : i32, i32
  }
  func.func @transform_8(%arg0: i32) -> (i32, i32) {
    %c0_i32 = arith.constant 0 : i32
    %c0_i32_0 = arith.constant 0 : i32
    %c0_i32_1 = arith.constant 0 : i32
    return %c0_i32, %c0_i32_0 : i32, i32
  }
}

</mosaic_0001>

<llo_original>
// kernel: tpu_custom_call.1
$region0: #{tpu_custom_call.1}
  #allocation0 [shape = 'u32[]', space=smem, size = 0x4, offset = 0x4, fixed_abs, tag = 'smem constant byte address 0x4 - core index']
  #allocation1 [shape = 'u32[144,128]{1,0:T(1,128)}', space=vmem, size = 0x12000, scoped, tag = 'internal scratch']
  #allocation2 [shape = 'f32[128,16]{1,0:T(8,128)}', space=vmem, size = 0x10000, scoped, tag = 'scratch operand']
  #allocation3 [shape = 'f32[1,16]{1,0:T(1,128)}', space=vmem, size = 0x200, scoped, tag = 'scratch operand']
  #allocation4 [shape = 'f32[1,16]{1,0:T(1,128)}', space=vmem, size = 0x200, scoped, tag = 'scratch operand']
  #allocation5 [shape = 'f32[1,16]{1,0:T(1,128)}', space=vmem, size = 0x200, scoped, tag = 'scratch operand']
  #allocation6 [shape = 'f32[1,16]{1,0:T(1,128)}', space=vmem, size = 0x200, scoped, tag = 'scratch operand']
  #allocation7 [shape = 'f32[1,1]{1,0:T(1,128)}', space=vmem, size = 0x200, scoped, tag = 'scratch operand']
  #allocation8 [shape = 'f32[1,1]{1,0:T(1,128)}', space=vmem, size = 0x200, scoped, tag = 'scratch operand']
  #allocation9 [shape = 'f32[1,1]{1,0:T(1,128)}', space=vmem, size = 0x200, scoped, tag = 'scratch operand']
  #allocation10 [shape = 'f32[1,1]{1,0:T(1,128)}', space=vmem, size = 0x200, scoped, tag = 'scratch operand']
  #allocation11 [shape = 'f32[1,1]{1,0:T(1,128)}', space=vmem, size = 0x200, scoped, tag = 'scratch operand']
  %s0 = inlined_call_operand.hbm [shape: f32[16,64], index: 0, kind: input, shape index: {}]
  %s1 = inlined_call_operand.hbm [shape: f32[16,48], index: 1, kind: input, shape index: {}]
  %s2 = inlined_call_operand.hbm [shape: f32[64,128], index: 2, kind: input, shape index: {}]
  %s3 = inlined_call_operand.vmem [shape: f32[1,128], index: 3, kind: input, shape index: {}]
  %s4 = inlined_call_operand.hbm [shape: f32[48,128], index: 4, kind: input, shape index: {}]
  %s5 = inlined_call_operand.vmem [shape: f32[1,128], index: 5, kind: input, shape index: {}]
  %s6 = inlined_call_operand.hbm [shape: f32[1,1], index: 6, kind: output, shape index: {0}]
  %s7 = inlined_call_operand.hbm [shape: f32[16,128], index: 7, kind: output, shape index: {1}]
  %s8 = inlined_call_operand.hbm [shape: f32[16,128], index: 8, kind: output, shape index: {2}]
  %9 = xla_tuple %s6, %s7, %s8
  %s10 = sld [smem:[#allocation0]]
  $region97: #{tpu_custom_call.1} parent=0
    _
  %s12 = ssub.s32 1, %s10
  %s13 = scalar_select 0, %s12, %s10
  $region1: #{tpu_custom_call.1} parent=0
    #allocation12 [shape = 'u8[8192]{0}', space=vmem, size = 0x2000, scoped, tag = 'input window, operand 0']
    #allocation13 [shape = 's32[2]{0}', space=sflag, size = 0x8, scoped, tag = 'scoped memory for tpu_custom_call.1']
    #allocation14 [shape = 's32[2]{0}', space=sflag, size = 0x8, scoped, tag = 'scoped memory for tpu_custom_call.1']
    #allocation15 [shape = 'u8[8192]{0}', space=vmem, size = 0x2000, scoped, tag = 'input window, operand 1, single buffered']
    #allocation16 [shape = 's32[1]{0}', space=sflag, size = 0x4, scoped, tag = 'scoped memory for tpu_custom_call.1']
    #allocation17 [shape = 'u8[32768]{0}', space=vmem, size = 0x8000, scoped, tag = 'input window, operand 2, single buffered']
    #allocation18 [shape = 'u8[24576]{0}', space=vmem, size = 0x6000, scoped, tag = 'input window, operand 4, single buffered']
    #allocation19 [shape = 's32[1]{0}', space=sflag, size = 0x4, scoped, tag = 'scoped memory for tpu_custom_call.1']
    #allocation20 [shape = 'u8[512]{0}', space=vmem, size = 0x400, scoped, tag = 'output window, operand 0, single buffered']
    #allocation21 [shape = 'u8[8192]{0}', space=vmem, size = 0x2000, scoped, tag = 'output window, operand 1']
    #allocation22 [shape = 's32[2]{0}', space=sflag, size = 0x8, scoped, tag = 'scoped memory for tpu_custom_call.1']
    #allocation23 [shape = 'u8[8192]{0}', space=vmem, size = 0x2000, scoped, tag = 'output window, operand 2, single buffered']
    %14 = vsyncpa [#allocation13], 0
    %s15 = scalar_lea.sflag [#allocation13], 1
    %16 = vsyncpa %s15, 0
    %17 = vsyncpa [#allocation16], 0
    %18 = vsyncpa [#allocation19], 0
    %19 = vsyncpa [#allocation14], 0
    %20 = vsyncpa [#allocation22], 0
    %s21 = scalar_lea.sflag [#allocation22], 1
    %22 = vsyncpa %s21, 0
    loop: start=0, step=1, limit=4
    $region2: #{tpu_custom_call.1} parent=1 // loop_pre_header
      _
    $region3: #{tpu_custom_call.1} parent=1 // loop_header
      %s24 = sphi 0, %s28
      %p25 = scmp.ge.s32.totalorder %s24, 4
      %s34 = sphi 0, %s36
      %s37 = sphi 0, %s34
      %s38 = sphi 0, %s37
      %s54 = sphi 0, %s38
      %s58 = sphi 0, %s58
      %s60 = sphi 0, %s58
      %s61 = sphi 0, %s60
      %s75 = sphi 0, %s61
      %s79 = sphi 0, %s79
      %s81 = sphi 0, %s79
      %s82 = sphi 0, %s81
      %s96 = sphi 0, %s82
      %s100 = sphi 0, %s100
      %s102 = sphi 0, %s100
      %s103 = sphi 0, %s102
      %s117 = sphi 0, %s103
      %s121 = sphi 0, %s121
      %s123 = sphi 0, %s121
      %s124 = sphi 0, %s123
      %s138 = sphi 0, %s124
      %s142 = sphi 0, %s142
      %s144 = sphi 0, %s142
      %s145 = sphi 0, %s144
      %s159 = sphi 0, %s145
      %s163 = sphi 0, %s163
      %s165 = sphi 0, %s163
      %s166 = sphi 0, %s165
      %s180 = sphi 0, %s166
      %s186 = sphi 0, %s188
      %s189 = sphi 0, %s186
      %s190 = sphi 0, %s189
      %s206 = sphi 0, %s190
      %s210 = sphi 0, %s210
      %s212 = sphi 0, %s210
      %s213 = sphi 0, %s212
      %s227 = sphi 0, %s213
    $region4: #{tpu_custom_call.1} parent=1 // loop_header_branch
      %27 = sbr.rel (%p25) target = $region8
    $region5: #{tpu_custom_call.1} parent=1 // loop_body
      %s29 = ssub.s32 %s24, 1
      %s30 = ssub.s32 %s24, 2
      %s31 = sadd.s32 %s24, 1
      %s32 = ssub.s32 %s24, %s31
      %p33 = scmp.eq.s32.totalorder %s32, 0
      %s35 = sadd.s32 %s34, 1
      %s36 = scalar_select %p33, %s34, %s35
      %p39 = pneg %p33
      %p40 = scmp.eq.s32.totalorder %s24, 1
      %p41 = por %p39, %p40
      %p42 = scmp.ne.s32.totalorder %s34, %s37
      %p43 = scmp.eq.s32.totalorder %s24, 0
      %p44 = por %p42, %p43
      %p45 = scmp.ne.s32.totalorder %s34, %s37
      %p46 = scmp.eq.s32.totalorder %s29, 1
      %p47 = por %p45, %p46
      %p48 = scmp.ne.s32.totalorder %s37, %s38
      %p49 = scmp.eq.s32.totalorder %s29, 0
      %p50 = por %p48, %p49
      %p51 = scmp.ne.s32.totalorder %s37, %s38
      %p52 = scmp.eq.s32.totalorder %s30, 1
      %p53 = por %p51, %p52
      %p55 = scmp.ne.s32.totalorder %s38, %s54
      %p56 = scmp.eq.s32.totalorder %s30, 0
      %p57 = por %p55, %p56
      %s59 = sadd.s32 %s58, 1
      %p62 = scmp.eq.s32.totalorder %s24, 1
      %p63 = scmp.ne.s32.totalorder %s58, %s60
      %p64 = scmp.eq.s32.totalorder %s24, 0
      %p65 = por %p63, %p64
      %p66 = scmp.ne.s32.totalorder %s58, %s60
      %p67 = scmp.eq.s32.totalorder %s29, 1
      %p68 = por %p66, %p67
      %p69 = scmp.ne.s32.totalorder %s60, %s61
      %p70 = scmp.eq.s32.totalorder %s29, 0
      %p71 = por %p69, %p70
      %p72 = scmp.ne.s32.totalorder %s60, %s61
      %p73 = scmp.eq.s32.totalorder %s30, 1
      %p74 = por %p72, %p73
      %p76 = scmp.ne.s32.totalorder %s61, %s75
      %p77 = scmp.eq.s32.totalorder %s30, 0
      %p78 = por %p76, %p77
      %s80 = sadd.s32 %s79, 1
      %p83 = scmp.eq.s32.totalorder %s24, 1
      %p84 = scmp.ne.s32.totalorder %s79, %s81
      %p85 = scmp.eq.s32.totalorder %s24, 0
      %p86 = por %p84, %p85
      %p87 = scmp.ne.s32.totalorder %s79, %s81
      %p88 = scmp.eq.s32.totalorder %s29, 1
      %p89 = por %p87, %p88
      %p90 = scmp.ne.s32.totalorder %s81, %s82
      %p91 = scmp.eq.s32.totalorder %s29, 0
      %p92 = por %p90, %p91
      %p93 = scmp.ne.s32.totalorder %s81, %s82
      %p94 = scmp.eq.s32.totalorder %s30, 1
      %p95 = por %p93, %p94
      %p97 = scmp.ne.s32.totalorder %s82, %s96
      %p98 = scmp.eq.s32.totalorder %s30, 0
      %p99 = por %p97, %p98
      %s101 = sadd.s32 %s100, 1
      %p104 = scmp.eq.s32.totalorder %s24, 1
      %p105 = scmp.ne.s32.totalorder %s100, %s102
      %p106 = scmp.eq.s32.totalorder %s24, 0
      %p107 = por %p105, %p106
      %p108 = scmp.ne.s32.totalorder %s100, %s102
      %p109 = scmp.eq.s32.totalorder %s29, 1
      %p110 = por %p108, %p109
      %p111 = scmp.ne.s32.totalorder %s102, %s103
      %p112 = scmp.eq.s32.totalorder %s29, 0
      %p113 = por %p111, %p112
      %p114 = scmp.ne.s32.totalorder %s102, %s103
      %p115 = scmp.eq.s32.totalorder %s30, 1
      %p116 = por %p114, %p115
      %p118 = scmp.ne.s32.totalorder %s103, %s117
      %p119 = scmp.eq.s32.totalorder %s30, 0
      %p120 = por %p118, %p119
      %s122 = sadd.s32 %s121, 1
      %p125 = scmp.eq.s32.totalorder %s24, 1
      %p126 = scmp.ne.s32.totalorder %s121, %s123
      %p127 = scmp.eq.s32.totalorder %s24, 0
      %p128 = por %p126, %p127
      %p129 = scmp.ne.s32.totalorder %s121, %s123
      %p130 = scmp.eq.s32.totalorder %s29, 1
      %p131 = por %p129, %p130
      %p132 = scmp.ne.s32.totalorder %s123, %s124
      %p133 = scmp.eq.s32.totalorder %s29, 0
      %p134 = por %p132, %p133
      %p135 = scmp.ne.s32.totalorder %s123, %s124
      %p136 = scmp.eq.s32.totalorder %s30, 1
      %p137 = por %p135, %p136
      %p139 = scmp.ne.s32.totalorder %s124, %s138
      %p140 = scmp.eq.s32.totalorder %s30, 0
      %p141 = por %p139, %p140
      %s143 = sadd.s32 %s142, 1
      %p146 = scmp.eq.s32.totalorder %s24, 1
      %p147 = scmp.ne.s32.totalorder %s142, %s144
      %p148 = scmp.eq.s32.totalorder %s24, 0
      %p149 = por %p147, %p148
      %p150 = scmp.ne.s32.totalorder %s142, %s144
      %p151 = scmp.eq.s32.totalorder %s29, 1
      %p152 = por %p150, %p151
      %p153 = scmp.ne.s32.totalorder %s144, %s145
      %p154 = scmp.eq.s32.totalorder %s29, 0
      %p155 = por %p153, %p154
      %p156 = scmp.ne.s32.totalorder %s144, %s145
      %p157 = scmp.eq.s32.totalorder %s30, 1
      %p158 = por %p156, %p157
      %p160 = scmp.ne.s32.totalorder %s145, %s159
      %p161 = scmp.eq.s32.totalorder %s30, 0
      %p162 = por %p160, %p161
      %s164 = sadd.s32 %s163, 1
      %p167 = scmp.eq.s32.totalorder %s24, 1
      %p168 = scmp.ne.s32.totalorder %s163, %s165
      %p169 = scmp.eq.s32.totalorder %s24, 0
      %p170 = por %p168, %p169
      %p171 = scmp.ne.s32.totalorder %s163, %s165
      %p172 = scmp.eq.s32.totalorder %s29, 1
      %p173 = por %p171, %p172
      %p174 = scmp.ne.s32.totalorder %s165, %s166
      %p175 = scmp.eq.s32.totalorder %s29, 0
      %p176 = por %p174, %p175
      %p177 = scmp.ne.s32.totalorder %s165, %s166
      %p178 = scmp.eq.s32.totalorder %s30, 1
      %p179 = por %p177, %p178
      %p181 = scmp.ne.s32.totalorder %s166, %s180
      %p182 = scmp.eq.s32.totalorder %s30, 0
      %p183 = por %p181, %p182
      %s184 = ssub.s32 %s24, %s31
      %p185 = scmp.eq.s32.totalorder %s184, 0
      %s187 = sadd.s32 %s186, 1
      %s188 = scalar_select %p185, %s186, %s187
      %p191 = pneg %p185
      %p192 = scmp.eq.s32.totalorder %s24, 1
      %p193 = por %p191, %p192
      %p194 = scmp.ne.s32.totalorder %s186, %s189
      %p195 = scmp.eq.s32.totalorder %s24, 0
      %p196 = por %p194, %p195
      %p197 = scmp.ne.s32.totalorder %s186, %s189
      %p198 = scmp.eq.s32.totalorder %s29, 1
      %p199 = por %p197, %p198
      %p200 = scmp.ne.s32.totalorder %s189, %s190
      %p201 = scmp.eq.s32.totalorder %s29, 0
      %p202 = por %p200, %p201
      %p203 = scmp.ne.s32.totalorder %s189, %s190
      %p204 = scmp.eq.s32.totalorder %s30, 1
      %p205 = por %p203, %p204
      %p207 = scmp.ne.s32.totalorder %s190, %s206
      %p208 = scmp.eq.s32.totalorder %s30, 0
      %p209 = por %p207, %p208
      %s211 = sadd.s32 %s210, 1
      %p214 = scmp.eq.s32.totalorder %s24, 1
      %p215 = scmp.ne.s32.totalorder %s210, %s212
      %p216 = scmp.eq.s32.totalorder %s24, 0
      %p217 = por %p215, %p216
      %p218 = scmp.ne.s32.totalorder %s210, %s212
      %p219 = scmp.eq.s32.totalorder %s29, 1
      %p220 = por %p218, %p219
      %p221 = scmp.ne.s32.totalorder %s212, %s213
      %p222 = scmp.eq.s32.totalorder %s29, 0
      %p223 = por %p221, %p222
      %p224 = scmp.ne.s32.totalorder %s212, %s213
      %p225 = scmp.eq.s32.totalorder %s30, 1
      %p226 = por %p224, %p225
      %p228 = scmp.ne.s32.totalorder %s213, %s227
      %p229 = scmp.eq.s32.totalorder %s30, 0
      %p230 = por %p228, %p229
      %p231 = scmp.le.s32.totalorder 1, %s24
      %p232 = scmp.lt.s32.totalorder %s24, 3
      %p233 = pnand %p231, %p232
      %p234 = pneg %p233
      // Predicated region
      $region9: #{tpu_custom_call.1} parent=5 // pred_check
        _
      $region10: #{tpu_custom_call.1} parent=5 // pred_check_branch
        %236 = sbr.rel (%p233) target = $region12
      $region11: #{tpu_custom_call.1} parent=5 // pred_region
        %s237 = ssub.s32 %s24, 1
        // Predicated region
        $region13: #{tpu_custom_call.1} parent=11 // pred_check
          %p238 = pneg %p71
        $region14: #{tpu_custom_call.1} parent=11 // pred_check_branch
          %240 = sbr.rel (%p238) target = $region16
        $region15: #{tpu_custom_call.1} parent=11 // pred_region
          %s242 = ssub.s32 256, 256
          %243 = vsyncadd [#allocation16], %s242
          %s244 = sshll.u32 [#allocation15], 4
          %s245 = int_to_ptr.vmem [resolvable:$true] %s244
          %250 = dma.hbm_to_vmem [thread:$0]  %s1, 256, %s245, [#allocation16], 128, 128, 8
        $region16: #{tpu_custom_call.1} parent=11 // pred_fallthru
          _
        // Predicated region
        $region17: #{tpu_custom_call.1} parent=11 // pred_check
          %p251 = pneg %p92
        $region18: #{tpu_custom_call.1} parent=11 // pred_check_branch
          %253 = sbr.rel (%p251) target = $region20
        $region19: #{tpu_custom_call.1} parent=11 // pred_region
          %s255 = ssub.s32 1024, 1024
          %256 = vsyncadd [#allocation16], %s255
          %s257 = sshll.u32 [#allocation17], 4
          %s258 = int_to_ptr.vmem [resolvable:$true] %s257
          %263 = dma.hbm_to_vmem [thread:$0]  %s2, 1024, %s258, [#allocation16], 128, 128, 8
        $region20: #{tpu_custom_call.1} parent=11 // pred_fallthru
          _
        // Predicated region
        $region21: #{tpu_custom_call.1} parent=11 // pred_check
          %p264 = pneg %p113
        $region22: #{tpu_custom_call.1} parent=11 // pred_check_branch
          %266 = sbr.rel (%p264) target = $region24
        $region23: #{tpu_custom_call.1} parent=11 // pred_region
          _
        $region24: #{tpu_custom_call.1} parent=11 // pred_fallthru
          _
        // Predicated region
        $region25: #{tpu_custom_call.1} parent=11 // pred_check
          %p267 = pneg %p134
        $region26: #{tpu_custom_call.1} parent=11 // pred_check_branch
          %269 = sbr.rel (%p267) target = $region28
        $region27: #{tpu_custom_call.1} parent=11 // pred_region
          %s271 = ssub.s32 768, 768
          %272 = vsyncadd [#allocation19], %s271
          %s273 = sshll.u32 [#allocation18], 4
          %s274 = int_to_ptr.vmem [resolvable:$true] %s273
          %279 = dma.hbm_to_vmem [thread:$0]  %s4, 768, %s274, [#allocation19], 128, 128, 8
        $region28: #{tpu_custom_call.1} parent=11 // pred_fallthru
          _
        // Predicated region
        $region29: #{tpu_custom_call.1} parent=11 // pred_check
          %p280 = pneg %p155
        $region30: #{tpu_custom_call.1} parent=11 // pred_check_branch
          %282 = sbr.rel (%p280) target = $region32
        $region31: #{tpu_custom_call.1} parent=11 // pred_region
          _
        $region32: #{tpu_custom_call.1} parent=11 // pred_fallthru
          _
      $region12: #{tpu_custom_call.1} parent=5 // pred_fallthru
        _
      %p283 = scmp.lt.s32.totalorder %s24, 2
      // Predicated region
      $region33: #{tpu_custom_call.1} parent=5 // pred_check
        %p284 = pneg %p283
      $region34: #{tpu_custom_call.1} parent=5 // pred_check_branch
        %286 = sbr.rel (%p284) target = $region36
      $region35: #{tpu_custom_call.1} parent=5 // pred_region
        // Predicated region
        $region37: #{tpu_custom_call.1} parent=35 // pred_check
          %p287 = pneg %p44
        $region38: #{tpu_custom_call.1} parent=35 // pred_check_branch
          %289 = sbr.rel (%p287) target = $region40
        $region39: #{tpu_custom_call.1} parent=35 // pred_region
          %s290 = sand.u32 %s34, 1
          %s291 = scalar_lea.sflag [#allocation13], %s290
          %s292 = sand.u32 %s34, 1
          %s293 = smul.addr %s292, 8
          %s294 = scalar_lea.vmem [#allocation12], %s293
          %s296 = ssub.s32 128, 128
          %297 = vsyncadd %s291, %s296
          %s298 = smul.addr %s24, 128
          %s299 = scalar_lea.hbm %s0, %s298
          %s301 = sshll.u32 %s294, 4
          %s302 = int_to_ptr.vmem [resolvable:$true] %s301
          %304 = dma.hbm_to_vmem [thread:$0]  %s299, 128, %s302, %s291
        $region40: #{tpu_custom_call.1} parent=35 // pred_fallthru
          _
      $region36: #{tpu_custom_call.1} parent=5 // pred_fallthru
        _
      %p305 = scmp.le.s32.totalorder 1, %s24
      %p306 = scmp.lt.s32.totalorder %s24, 3
      %p307 = pnand %p305, %p306
      %p308 = pneg %p307
      // Predicated region
      $region41: #{tpu_custom_call.1} parent=5 // pred_check
        _
      $region42: #{tpu_custom_call.1} parent=5 // pred_check_branch
        %310 = sbr.rel (%p307) target = $region44
      $region43: #{tpu_custom_call.1} parent=5 // pred_region
        %s311 = ssub.s32 %s24, 1
        %s312 = sand.u32 %s37, 1
        %s313 = scalar_lea.sflag [#allocation13], %s312
        %s314 = sand.u32 %s37, 1
        %s315 = smul.addr %s314, 8
        %s316 = scalar_lea.vmem [#allocation12], %s315
        // Predicated region
        $region45: #{tpu_custom_call.1} parent=43 // pred_check
          %p317 = pneg %p50
        $region46: #{tpu_custom_call.1} parent=43 // pred_check_branch
          %319 = sbr.rel (%p317) target = $region48
        $region47: #{tpu_custom_call.1} parent=43 // pred_region
          %320 = dma.done %s313, 128
        $region48: #{tpu_custom_call.1} parent=43 // pred_fallthru
          _
        // Predicated region
        $region49: #{tpu_custom_call.1} parent=43 // pred_check
          %p321 = pneg %p71
        $region50: #{tpu_custom_call.1} parent=43 // pred_check_branch
          %323 = sbr.rel (%p321) target = $region52
        $region51: #{tpu_custom_call.1} parent=43 // pred_region
          %324 = dma.done [#allocation16], 256
        $region52: #{tpu_custom_call.1} parent=43 // pred_fallthru
          _
        // Predicated region
        $region53: #{tpu_custom_call.1} parent=43 // pred_check
          %p325 = pneg %p92
        $region54: #{tpu_custom_call.1} parent=43 // pred_check_branch
          %327 = sbr.rel (%p325) target = $region56
        $region55: #{tpu_custom_call.1} parent=43 // pred_region
          %328 = dma.done [#allocation16], 1024
        $region56: #{tpu_custom_call.1} parent=43 // pred_fallthru
          _
        // Predicated region
        $region57: #{tpu_custom_call.1} parent=43 // pred_check
          %p329 = pneg %p134
        $region58: #{tpu_custom_call.1} parent=43 // pred_check_branch
          %331 = sbr.rel (%p329) target = $region60
        $region59: #{tpu_custom_call.1} parent=43 // pred_region
          %332 = dma.done [#allocation19], 768
        $region60: #{tpu_custom_call.1} parent=43 // pred_fallthru
          _
        %s333 = sand.u32 %s37, 1
        %s334 = scalar_lea.sflag [#allocation13], %s333
        %s335 = sand.u32 %s37, 1
        %s336 = smul.addr %s335, 8
        %s337 = scalar_lea.vmem [#allocation12], %s336
        %p338 = pneg %p50
        %p339 = pneg %p47
        %p340 = pneg %p71
        %p341 = pneg %p68
        %p342 = pneg %p92
        %p343 = pneg %p89
        %p344 = pneg %p113
        %p345 = pneg %p110
        %p346 = pneg %p134
        %p347 = pneg %p131
        %p348 = pneg %p155
        %p349 = pneg %p152
        %p350 = pneg %p176
        %p351 = pneg %p173
        %p352 = pneg %p202
        %p353 = pneg %p199
        %s354 = sand.u32 %s29, 1
        %s355 = scalar_lea.sflag [#allocation22], %s354
        %s356 = sand.u32 %s189, 1
        %s357 = smul.addr %s356, 8
        %s358 = scalar_lea.vmem [#allocation21], %s357
        %p359 = pneg %p223
        %p360 = pneg %p220
        %p361 = scmp.eq.s32.totalorder %s29, 0
        // Predicated region
        $region61: #{tpu_custom_call.1} parent=43 // pred_check
          %p362 = pneg %p361
        $region62: #{tpu_custom_call.1} parent=43 // pred_check_branch
          %364 = sbr.rel (%p362) target = $region64
        $region63: #{tpu_custom_call.1} parent=43 // pred_region
          %v365 = vld [vmem:[#allocation15] sm:$0xff]
          %v366 = vld [vmem:[#allocation15 + $0x8] sm:$0xff]
          %v367 = vld [vmem:[#allocation18] sm:$0xff]
          %v368 = vld [vmem:[#allocation18 + $0x8] sm:$0xff]
          %v369 = vld [vmem:[#allocation18 + $0x10] sm:$0xff]
          %v370 = vld [vmem:[#allocation18 + $0x18] sm:$0xff]
          %v371 = vld [vmem:[#allocation18 + $0x20] sm:$0xff]
          %v372 = vld [vmem:[#allocation18 + $0x28] sm:$0xff]
          %v373 = vld [vmem:[%s5] sm:$0x1]
          %v375 = vlaneseq
          %v376 = vshrl.u32 %v375, 7
          %v377 = vsub.s32 0, %v376
          %v378 = vrot.slane %v373, %v377
          %vm380 = vcmask 392192
          %v382 = vsel %vm380, %v365, 0
          %v385 = vsel %vm380, %v366, 0
          %387 = vmatprep.subr.mxu0 0.0
          %388 = vmatpush1.msra.mxu0 0.0
          %389 = vmatprep.subr.mxu0 0.0
          %390 = vmatpush1.msra.mxu0 0.0
          %391 = vmatprep.subr.mxu0 0.0
          %392 = vmatpush1.msra.mxu0 0.0
          %393 = vmatprep.subr.mxu0 0.0
          %394 = vmatpush1.msra.mxu0 0.0
          %395 = vmatprep.subr.mxu0 0.0
          %396 = vmatpush1.msra.mxu0 0.0
          %397 = vmatprep.subr.mxu0 0.0
          %398 = vmatpush1.msra.mxu0 0.0
          %399 = vmatprep.subr.mxu0 0.0
          %400 = vmatpush1.msra.mxu0 0.0
          %401 = vmatprep.subr.mxu0 0.0
          %402 = vmatpush1.msra.mxu0 0.0
          %403 = vmatprep.subr.mxu0 0.0
          %404 = vmatpush1.msra.mxu0 0.0
          %405 = vmatprep.subr.mxu0 0.0
          %406 = vmatpush1.msra.mxu0 0.0
          %407 = vmatprep.subr.mxu0 0.0
          %408 = vmatpush1.msra.mxu0 %v372
          %409 = vmatprep.subr.mxu0 0.0
          %410 = vmatpush1.msra.mxu0 %v371
          %411 = vmatprep.subr.mxu0 0.0
          %412 = vmatpush1.msra.mxu0 %v370
          %413 = vmatprep.subr.mxu0 0.0
          %414 = vmatpush1.msra.mxu0 %v369
          %415 = vmatprep.subr.mxu0 0.0
          %416 = vmatpush1.msra.mxu0 %v368
          %417 = vmatprep.subr.mxu0 0.0
          %418 = vmatpush1.msra.mxu0 %v367
          %419 = vmatprep.subr.mxu0 0.0
          %420 = vmatpush2.msra.mxu0 0.0
          %421 = vmatprep.subr.mxu0 0.0
          %422 = vmatpush2.msra.mxu0 0.0
          %423 = vmatprep.subr.mxu0 0.0
          %424 = vmatpush2.msra.mxu0 0.0
          %425 = vmatprep.subr.mxu0 0.0
          %426 = vmatpush2.msra.mxu0 0.0
          %427 = vmatprep.subr.mxu0 0.0
          %428 = vmatpush2.msra.mxu0 0.0
          %429 = vmatprep.subr.mxu0 0.0
          %430 = vmatpush2.msra.mxu0 0.0
          %431 = vmatprep.subr.mxu0 0.0
          %432 = vmatpush2.msra.mxu0 0.0
          %433 = vmatprep.subr.mxu0 0.0
          %434 = vmatpush2.msra.mxu0 0.0
          %435 = vmatprep.subr.mxu0 0.0
          %436 = vmatpush2.msra.mxu0 0.0
          %437 = vmatprep.subr.mxu0 0.0
          %438 = vmatpush2.msra.mxu0 0.0
          %439 = vmatprep.subr.mxu0 0.0
          %440 = vmatpush2.msra.mxu0 0.0
          %441 = vmatprep.subr.mxu0 0.0
          %442 = vmatpush2.msra.mxu0 0.0
          %443 = vmatprep.subr.mxu0 0.0
          %444 = vmatpush2.msra.mxu0 0.0
          %445 = vmatprep.subr.mxu0 0.0
          %446 = vmatpush2.msra.mxu0 0.0
          %447 = vmatprep.subr.mxu0 0.0
          %448 = vmatpush2.msra.mxu0 0.0
          %449 = vmatprep.subr.mxu0 0.0
          %450 = vmatpush2.msra.mxu0 0.0
          %451 = vmatprep.mubr.f32.mxu0 0.0
          %452 = vmatmul.mubr.f32.gmra.mxu0 %v382
          %v453 = vpop.f32.mrf.mxu0
          %v454 = vadd.f32 %v378, %v453
          %v455 = vpop.f32.mrf.mxu0
          %456 = vmatprep.mubr.f32.mxu0 0.0
          %457 = vmatmul.mubr.f32.gmra.mxu0 %v385
          %v458 = vpop.f32.mrf.mxu0
          %v459 = vadd.f32 %v378, %v458
          %v460 = vpop.f32.mrf.mxu0
          %461 = vdwg.mxu0
          %v462 = vmul.f32 %v454, %v454
          %v463 = vmul.f32 %v459, %v459
          %464 = vadd.xlane.f32.xlu0 %v462
          %v465 = vpop.xlane.xlu0 %464
          %466 = vadd.xlane.f32.xlu0 %v463
          %v467 = vpop.xlane.xlu0 %466
          %v468 = vmax.f32 %v465, 1e-24
          %v469 = vmax.f32 %v467, 1e-24
          %v470 = vrsqrt.pop %v468
          %v471 = vrsqrt.pop %v469
          %v472 = vmul.f32 %v454, %v470
          %v473 = vmul.f32 %v459, %v471
          %474 = vst [vmem:[#allocation23] sm:$0xff] %v472
          %475 = vst [vmem:[#allocation23 + $0x8] sm:$0xff] %v473
          %476 = vxpose.xlu0.b32.start [1/16] %v472, 128
          %477 = vxpose.xlu0.b32.cont [2/16] %v473, 128
          %478 = vxpose.xlu0.b32.cont [3/16] 0.0, 128
          %479 = vxpose.xlu0.b32.cont [4/16] 0.0, 128
          %480 = vxpose.xlu0.b32.cont [5/16] 0.0, 128
          %481 = vxpose.xlu0.b32.cont [6/16] 0.0, 128
          %482 = vxpose.xlu0.b32.cont [7/16] 0.0, 128
          %483 = vxpose.xlu0.b32.cont [8/16] 0.0, 128
          %484 = vxpose.xlu0.b32.cont [9/16] 0.0, 128
          %485 = vxpose.xlu0.b32.cont [10/16] 0.0, 128
          %486 = vxpose.xlu0.b32.cont [11/16] 0.0, 128
          %487 = vxpose.xlu0.b32.cont [12/16] 0.0, 128
          %488 = vxpose.xlu0.b32.cont [13/16] 0.0, 128
          %489 = vxpose.xlu0.b32.cont [14/16] 0.0, 128
          %490 = vxpose.xlu0.b32.cont [15/16] 0.0, 128
          %491 = vxpose.xlu0.b32.end [16/16] 0.0, 128
          %v492 = vpop.trf.xlu0
          %v493 = vpop.trf.xlu0
          %v494 = vpop.trf.xlu0
          %v495 = vpop.trf.xlu0
          %v496 = vpop.trf.xlu0
          %v497 = vpop.trf.xlu0
          %v498 = vpop.trf.xlu0
          %v499 = vpop.trf.xlu0
          %v500 = vpop.trf.xlu0
          %v501 = vpop.trf.xlu0
          %v502 = vpop.trf.xlu0
          %v503 = vpop.trf.xlu0
          %v504 = vpop.trf.xlu0
          %v505 = vpop.trf.xlu0
          %v506 = vpop.trf.xlu0
          %v507 = vpop.trf.xlu0
          %vm508 = vcmask 130048
          %509 = vst.msk [vmem:[#allocation2] sm:$0xff] %vm508, %v492
          %510 = vst.msk [vmem:[#allocation2 + $0x8] sm:$0xff] %vm508, %v493
          %511 = vst.msk [vmem:[#allocation2 + $0x10] sm:$0xff] %vm508, %v494
          %512 = vst.msk [vmem:[#allocation2 + $0x18] sm:$0xff] %vm508, %v495
          %513 = vst.msk [vmem:[#allocation2 + $0x20] sm:$0xff] %vm508, %v496
          %514 = vst.msk [vmem:[#allocation2 + $0x28] sm:$0xff] %vm508, %v497
          %515 = vst.msk [vmem:[#allocation2 + $0x30] sm:$0xff] %vm508, %v498
          %516 = vst.msk [vmem:[#allocation2 + $0x38] sm:$0xff] %vm508, %v499
          %517 = vst.msk [vmem:[#allocation2 + $0x40] sm:$0xff] %vm508, %v500
          %518 = vst.msk [vmem:[#allocation2 + $0x48] sm:$0xff] %vm508, %v501
          %519 = vst.msk [vmem:[#allocation2 + $0x50] sm:$0xff] %vm508, %v502
          %520 = vst.msk [vmem:[#allocation2 + $0x58] sm:$0xff] %vm508, %v503
          %521 = vst.msk [vmem:[#allocation2 + $0x60] sm:$0xff] %vm508, %v504
          %522 = vst.msk [vmem:[#allocation2 + $0x68] sm:$0xff] %vm508, %v505
          %523 = vst.msk [vmem:[#allocation2 + $0x70] sm:$0xff] %vm508, %v506
          %524 = vst.msk [vmem:[#allocation2 + $0x78] sm:$0xff] %vm508, %v507
          %vm525 = vcmask 122880
          %526 = vst.msk [vmem:[#allocation3] sm:$0x1] %vm525, 0.0
          %527 = vst.msk [vmem:[#allocation4] sm:$0x1] %vm525, -inf
          %528 = vst.msk [vmem:[#allocation5] sm:$0x1] %vm525, 0.0
          %vm529 = vcmask 0
          %530 = vst.msk [vmem:[#allocation10] sm:$0x1] %vm529, 0.0
          %531 = vst.msk [vmem:[#allocation11] sm:$0x1] %vm529, 0.0
          %532 = vst.msk [vmem:[#allocation6] sm:$0x1] %vm525, -inf
          %533 = vst.msk [vmem:[#allocation7] sm:$0x1] %vm529, -inf
          %534 = vst.msk [vmem:[#allocation8] sm:$0x1] %vm529, 0.0
          %535 = vst.msk [vmem:[#allocation9] sm:$0x1] %vm529, 0.0
        $region64: #{tpu_custom_call.1} parent=43 // pred_fallthru
          _
        %v536 = vld [vmem:[%s316] sm:$0xff]
        %v537 = vld [vmem:[#allocation17] sm:$0xff]
        %v538 = vld [vmem:[#allocation17 + $0x8] sm:$0xff]
        %v539 = vld [vmem:[#allocation17 + $0x10] sm:$0xff]
        %v540 = vld [vmem:[#allocation17 + $0x18] sm:$0xff]
        %v541 = vld [vmem:[#allocation17 + $0x20] sm:$0xff]
        %v542 = vld [vmem:[#allocation17 + $0x28] sm:$0xff]
        %v543 = vld [vmem:[#allocation17 + $0x30] sm:$0xff]
        %v544 = vld [vmem:[#allocation17 + $0x38] sm:$0xff]
        %v545 = vld [vmem:[%s3] sm:$0x1]
        %v547 = vlaneseq
        %v548 = vshrl.u32 %v547, 7
        %v549 = vsub.s32 0, %v548
        %v550 = vrot.slane %v545, %v549
        %vm552 = vcmask 523264
        %v554 = vsel %vm552, %v536, 0
        %556 = vmatprep.subr.mxu0 0.0
        %557 = vmatpush1.msra.mxu0 0.0
        %558 = vmatprep.subr.mxu0 0.0
        %559 = vmatpush1.msra.mxu0 0.0
        %560 = vmatprep.subr.mxu0 0.0
        %561 = vmatpush1.msra.mxu0 0.0
        %562 = vmatprep.subr.mxu0 0.0
        %563 = vmatpush1.msra.mxu0 0.0
        %564 = vmatprep.subr.mxu0 0.0
        %565 = vmatpush1.msra.mxu0 0.0
        %566 = vmatprep.subr.mxu0 0.0
        %567 = vmatpush1.msra.mxu0 0.0
        %568 = vmatprep.subr.mxu0 0.0
        %569 = vmatpush1.msra.mxu0 0.0
        %570 = vmatprep.subr.mxu0 0.0
        %571 = vmatpush1.msra.mxu0 0.0
        %572 = vmatprep.subr.mxu0 0.0
        %573 = vmatpush1.msra.mxu0 %v544
        %574 = vmatprep.subr.mxu0 0.0
        %575 = vmatpush1.msra.mxu0 %v543
        %576 = vmatprep.subr.mxu0 0.0
        %577 = vmatpush1.msra.mxu0 %v542
        %578 = vmatprep.subr.mxu0 0.0
        %579 = vmatpush1.msra.mxu0 %v541
        %580 = vmatprep.subr.mxu0 0.0
        %581 = vmatpush1.msra.mxu0 %v540
        %582 = vmatprep.subr.mxu0 0.0
        %583 = vmatpush1.msra.mxu0 %v539
        %584 = vmatprep.subr.mxu0 0.0
        %585 = vmatpush1.msra.mxu0 %v538
        %586 = vmatprep.subr.mxu0 0.0
        %587 = vmatpush1.msra.mxu0 %v537
        %588 = vmatprep.subr.mxu0 0.0
        %589 = vmatpush2.msra.mxu0 0.0
        %590 = vmatprep.subr.mxu0 0.0
        %591 = vmatpush2.msra.mxu0 0.0
        %592 = vmatprep.subr.mxu0 0.0
        %593 = vmatpush2.msra.mxu0 0.0
        %594 = vmatprep.subr.mxu0 0.0
        %595 = vmatpush2.msra.mxu0 0.0
        %596 = vmatprep.subr.mxu0 0.0
        %597 = vmatpush2.msra.mxu0 0.0
        %598 = vmatprep.subr.mxu0 0.0
        %599 = vmatpush2.msra.mxu0 0.0
        %600 = vmatprep.subr.mxu0 0.0
        %601 = vmatpush2.msra.mxu0 0.0
        %602 = vmatprep.subr.mxu0 0.0
        %603 = vmatpush2.msra.mxu0 0.0
        %604 = vmatprep.subr.mxu0 0.0
        %605 = vmatpush2.msra.mxu0 0.0
        %606 = vmatprep.subr.mxu0 0.0
        %607 = vmatpush2.msra.mxu0 0.0
        %608 = vmatprep.subr.mxu0 0.0
        %609 = vmatpush2.msra.mxu0 0.0
        %610 = vmatprep.subr.mxu0 0.0
        %611 = vmatpush2.msra.mxu0 0.0
        %612 = vmatprep.subr.mxu0 0.0
        %613 = vmatpush2.msra.mxu0 0.0
        %614 = vmatprep.subr.mxu0 0.0
        %615 = vmatpush2.msra.mxu0 0.0
        %616 = vmatprep.subr.mxu0 0.0
        %617 = vmatpush2.msra.mxu0 0.0
        %618 = vmatprep.subr.mxu0 0.0
        %619 = vmatpush2.msra.mxu0 0.0
        %620 = vmatprep.mubr.f32.mxu0 0.0
        %621 = vmatmul.mubr.f32.gmra.mxu0 %v554
        %v622 = vpop.f32.mrf.mxu0
        %v623 = vadd.f32 %v550, %v622
        %v624 = vpop.f32.mrf.mxu0
        %625 = vdwg.mxu0
        %v626 = vmul.f32 %v623, %v623
        %627 = vadd.xlane.f32.xlu0 %v626
        %v628 = vpop.xlane.xlu0 %627
        %v629 = vmax.f32 %v628, 1e-24
        %v630 = vrsqrt.pop %v629
        %v631 = vmul.f32 %v623, %v630
        %632 = vst [vmem:[%s358] sm:$0xff] %v631
        %v633 = vld [vmem:[#allocation2] sm:$0xff]
        %v634 = vld [vmem:[#allocation2 + $0x8] sm:$0xff]
        %v635 = vld [vmem:[#allocation2 + $0x10] sm:$0xff]
        %v636 = vld [vmem:[#allocation2 + $0x18] sm:$0xff]
        %v637 = vld [vmem:[#allocation2 + $0x20] sm:$0xff]
        %v638 = vld [vmem:[#allocation2 + $0x28] sm:$0xff]
        %v639 = vld [vmem:[#allocation2 + $0x30] sm:$0xff]
        %v640 = vld [vmem:[#allocation2 + $0x38] sm:$0xff]
        %v641 = vld [vmem:[#allocation2 + $0x40] sm:$0xff]
        %v642 = vld [vmem:[#allocation2 + $0x48] sm:$0xff]
        %v643 = vld [vmem:[#allocation2 + $0x50] sm:$0xff]
        %v644 = vld [vmem:[#allocation2 + $0x58] sm:$0xff]
        %v645 = vld [vmem:[#allocation2 + $0x60] sm:$0xff]
        %v646 = vld [vmem:[#allocation2 + $0x68] sm:$0xff]
        %v647 = vld [vmem:[#allocation2 + $0x70] sm:$0xff]
        %v648 = vld [vmem:[#allocation2 + $0x78] sm:$0xff]
        %649 = vmatprep.subr.mxu0 0.0
        %650 = vmatpush1.msra.mxu0 %v648
        %651 = vmatprep.subr.mxu0 0.0
        %652 = vmatpush1.msra.mxu0 %v647
        %653 = vmatprep.subr.mxu0 0.0
        %654 = vmatpush1.msra.mxu0 %v646
        %655 = vmatprep.subr.mxu0 0.0
        %656 = vmatpush1.msra.mxu0 %v645
        %657 = vmatprep.subr.mxu0 0.0
        %658 = vmatpush1.msra.mxu0 %v644
        %659 = vmatprep.subr.mxu0 0.0
        %660 = vmatpush1.msra.mxu0 %v643
        %661 = vmatprep.subr.mxu0 0.0
        %662 = vmatpush1.msra.mxu0 %v642
        %663 = vmatprep.subr.mxu0 0.0
        %664 = vmatpush1.msra.mxu0 %v641
        %665 = vmatprep.subr.mxu0 0.0
        %666 = vmatpush1.msra.mxu0 %v640
        %667 = vmatprep.subr.mxu0 0.0
        %668 = vmatpush1.msra.mxu0 %v639
        %669 = vmatprep.subr.mxu0 0.0
        %670 = vmatpush1.msra.mxu0 %v638
        %671 = vmatprep.subr.mxu0 0.0
        %672 = vmatpush1.msra.mxu0 %v637
        %673 = vmatprep.subr.mxu0 0.0
        %674 = vmatpush1.msra.mxu0 %v636
        %675 = vmatprep.subr.mxu0 0.0
        %676 = vmatpush1.msra.mxu0 %v635
        %677 = vmatprep.subr.mxu0 0.0
        %678 = vmatpush1.msra.mxu0 %v634
        %679 = vmatprep.subr.mxu0 0.0
        %680 = vmatpush1.msra.mxu0 %v633
        %681 = vmatprep.subr.mxu0 0.0
        %682 = vmatpush2.msra.mxu0 0.0
        %683 = vmatprep.subr.mxu0 0.0
        %684 = vmatpush2.msra.mxu0 0.0
        %685 = vmatprep.subr.mxu0 0.0
        %686 = vmatpush2.msra.mxu0 0.0
        %687 = vmatprep.subr.mxu0 0.0
        %688 = vmatpush2.msra.mxu0 0.0
        %689 = vmatprep.subr.mxu0 0.0
        %690 = vmatpush2.msra.mxu0 0.0
        %691 = vmatprep.subr.mxu0 0.0
        %692 = vmatpush2.msra.mxu0 0.0
        %693 = vmatprep.subr.mxu0 0.0
        %694 = vmatpush2.msra.mxu0 0.0
        %695 = vmatprep.subr.mxu0 0.0
        %696 = vmatpush2.msra.mxu0 0.0
        %697 = vmatprep.subr.mxu0 0.0
        %698 = vmatpush2.msra.mxu0 0.0
        %699 = vmatprep.subr.mxu0 0.0
        %700 = vmatpush2.msra.mxu0 0.0
        %701 = vmatprep.subr.mxu0 0.0
        %702 = vmatpush2.msra.mxu0 0.0
        %703 = vmatprep.subr.mxu0 0.0
        %704 = vmatpush2.msra.mxu0 0.0
        %705 = vmatprep.subr.mxu0 0.0
        %706 = vmatpush2.msra.mxu0 0.0
        %707 = vmatprep.subr.mxu0 0.0
        %708 = vmatpush2.msra.mxu0 0.0
        %709 = vmatprep.subr.mxu0 0.0
        %710 = vmatpush2.msra.mxu0 0.0
        %711 = vmatprep.subr.mxu0 0.0
        %712 = vmatpush2.msra.mxu0 0.0
        %713 = vmatprep.mubr.f32.mxu0 0.0
        %714 = vmatmul.mubr.f32.gmra.mxu0 %v631
        %v715 = vpop.f32.mrf.mxu0
        %v716 = vadd.f32 0.0, %v715
        %v717 = vpop.f32.mrf.mxu0
        %718 = vdwg.mxu0
        %v719 = vmul.f32 %v716, 14.285714
        %s720 = smul.u32 %s29, 8
        %v721 = vlaneseq
        %v722 = vshrl.u32 %v721, 7
        %v723 = vstv %s720
        %v724 = vadd.s32 %v723, %v722
        %v725 = vlaneseq
        %v726 = vand.u32 %v725, 127
        %vm727 = vcmp.eq.s32.totalorder %v724, %v726
        %v728 = vsel %vm727, %v719, 0.0
        %vm729 = vcmask 130048
        %v730 = vsel %vm729, %v728, 0.0
        %731 = vadd.xlane.f32.xlu0 %v730
        %v732 = vpop.xlane.xlu0 %731
        %v733 = vld [vmem:[#allocation3] sm:$0x1]
        %v734 = vrot.slane %v730, 4
        %v735 = vadd.f32 %v730, %v734
        %v736 = vrot.slane %v735, 2
        %v737 = vadd.f32 %v735, %v736
        %v738 = vrot.slane %v737, 1
        %v739 = vadd.f32 %v737, %v738
        %v740 = vadd.f32 %v733, %v739
        %vm741 = vcmask 122880
        %742 = vst.msk [vmem:[#allocation3] sm:$0x1] %vm741, %v740
        %v743 = vsel %vm729, %v719, -inf
        %744 = vmax.xlane.f32.xlu0 %v743
        %v745 = vpop.xlane.xlu0 %744
        %v746 = vsub.f32 %v719, %v745
        %v747 = vmul.f32 %v746, 1.442695
        %v748 = vpow.pop %v747
        %v749 = vsel %vm727, 0.0, %v748
        %v750 = vsel %vm729, %v749, 0.0
        %751 = vadd.xlane.f32.xlu0 %v750
        %v752 = vpop.xlane.xlu0 %751
        %v753 = vld [vmem:[#allocation4] sm:$0x1]
        %v754 = vrot.slane %v743, 4
        %v755 = vmax.f32 %v743, %v754
        %v756 = vrot.slane %v755, 2
        %v757 = vmax.f32 %v755, %v756
        %v758 = vrot.slane %v757, 1
        %v759 = vmax.f32 %v757, %v758
        %v760 = vmax.f32 %v753, %v759
        %v761 = vmul.f32 %v745, 1.442695
        %v762 = vpow.pop %v761
        %v763 = vmul.f32 %v749, %v762
        %v764 = vsel %vm729, %v763, 0.0
        %v765 = vrot.slane %v764, 4
        %v766 = vadd.f32 %v764, %v765
        %v767 = vrot.slane %v766, 2
        %v768 = vadd.f32 %v766, %v767
        %v769 = vrot.slane %v768, 1
        %v770 = vadd.f32 %v768, %v769
        %v771 = vsub.f32 0.0, %v760
        %v772 = vmul.f32 %v771, 1.442695
        %v773 = vpow.pop %v772
        %v774 = vmul.f32 %v770, %v773
        %v775 = vld [vmem:[#allocation5] sm:$0x1]
        %v776 = vsub.f32 %v753, %v760
        %v777 = vmul.f32 %v776, 1.442695
        %v778 = vpow.pop %v777
        %v779 = vmul.f32 %v775, %v778
        %v780 = vadd.f32 %v779, %v774
        %781 = vst.msk [vmem:[#allocation5] sm:$0x1] %vm741, %v780
        %782 = vst.msk [vmem:[#allocation4] sm:$0x1] %vm741, %v760
        %v783 = vsub.f32 %v732, %v745
        %v784 = vmul.f32 %v783, 1.442695
        %v785 = vpow.pop %v784
        %v786 = vadd.f32 %v752, %v785
        %v787 = vsel %vm727, 0.0, %v719
        %v788 = vsel %vm729, %v787, -inf
        %789 = vmax.xlane.f32.xlu0 %v788
        %v790 = vpop.xlane.xlu0 %789
        %v791 = vld [vmem:[#allocation6] sm:$0x1]
        %v792 = vrot.slane %v788, 4
        %v793 = vmax.f32 %v788, %v792
        %v794 = vrot.slane %v793, 2
        %v795 = vmax.f32 %v793, %v794
        %v796 = vrot.slane %v795, 1
        %v797 = vmax.f32 %v795, %v796
        %v798 = vmax.f32 %v791, %v797
        %799 = vst.msk [vmem:[#allocation6] sm:$0x1] %vm741, %v798
        %v800 = vlog2.pop %v752
        %v801 = vmul.f32 %v800, 0.6931472
        %v802 = vadd.f32 %v801, %v745
        %v803 = vsub.f32 %v732, %v802
        %v804 = vld [vmem:[#allocation7] sm:$0x1]
        %v805 = vrot.slane %v790, 4
        %v806 = vmax.f32 %v790, %v805
        %v807 = vrot.slane %v806, 2
        %v808 = vmax.f32 %v806, %v807
        %v809 = vrot.slane %v808, 1
        %v810 = vmax.f32 %v808, %v809
        %v811 = vmax.f32 %v804, %v810
        %v813 = vlaneseq
        %v814 = vshrl.u32 %v813, 7
        %v815 = vsub.s32 0, %v814
        %v816 = vrot.slane %v811, %v815
        %v818 = vsub.f32 %v790, %v816
        %v819 = vmul.f32 %v818, 1.442695
        %v820 = vpow.pop %v819
        %v821 = vsub.f32 %v804, %v811
        %v822 = vmul.f32 %v821, 1.442695
        %v823 = vpow.pop %v822
        %v824 = vld [vmem:[#allocation8] sm:$0x1]
        %v825 = vmul.f32 %v824, %v823
        %vm826 = vcmask 7168
        %v827 = vsel %vm826, %v820, 0.0
        %v828 = vrot.slane %v827, 4
        %v829 = vadd.f32 %v827, %v828
        %v830 = vrot.slane %v829, 2
        %v831 = vadd.f32 %v829, %v830
        %v832 = vrot.slane %v831, 1
        %v833 = vadd.f32 %v831, %v832
        %v834 = vadd.f32 %v825, %v833
        %vm835 = vcmask 0
        %836 = vst.msk [vmem:[#allocation8] sm:$0x1] %vm835, %v834
        %v837 = vld [vmem:[#allocation9] sm:$0x1]
        %v838 = vmul.f32 %v837, %v823
        %v839 = vmul.f32 %v820, %v803
        %v840 = vsel %vm826, %v839, 0.0
        %v841 = vrot.slane %v840, 4
        %v842 = vadd.f32 %v840, %v841
        %v843 = vrot.slane %v842, 2
        %v844 = vadd.f32 %v842, %v843
        %v845 = vrot.slane %v844, 1
        %v846 = vadd.f32 %v844, %v845
        %v847 = vadd.f32 %v838, %v846
        %848 = vst.msk [vmem:[#allocation9] sm:$0x1] %vm835, %v847
        %849 = vst.msk [vmem:[#allocation7] sm:$0x1] %vm835, %v811
        %v850 = vrcp.pop %v786
        %v851 = vmul.f32 %v785, %v850
        %v852 = vsub.f32 1.0, %v851
        %v853 = vmul.f32 %v852, %v852
        %v854 = vld [vmem:[#allocation11] sm:$0x1]
        %v855 = vadd.f32 %v851, 1e-08
        %v856 = vlog2.pop %v855
        %v857 = vmul.f32 %v856, 0.6931472
        %v858 = vmul.f32 %v853, %v857
        %v859 = vrot.slane %v858, 4
        %v860 = vadd.f32 %v858, %v859
        %v861 = vrot.slane %v860, 2
        %v862 = vadd.f32 %v860, %v861
        %v863 = vrot.slane %v862, 1
        %v864 = vadd.f32 %v862, %v863
        %v865 = vadd.f32 %v854, %v864
        %866 = vst.msk [vmem:[#allocation11] sm:$0x1] %vm835, %v865
        %p867 = scmp.eq.s32.totalorder %s29, 1
        // Predicated region
        $region65: #{tpu_custom_call.1} parent=43 // pred_check
          %p868 = pneg %p867
        $region66: #{tpu_custom_call.1} parent=43 // pred_check_branch
          %870 = sbr.rel (%p868) target = $region68
        $region67: #{tpu_custom_call.1} parent=43 // pred_region
          %v871 = vld [vmem:[#allocation3] sm:$0x1]
          %v872 = vld [vmem:[#allocation4] sm:$0x1]
          %v873 = vld [vmem:[#allocation5] sm:$0x1]
          %v874 = vsub.f32 %v871, %v872
          %v875 = vmul.f32 %v874, 1.442695
          %v876 = vpow.pop %v875
          %v877 = vadd.f32 %v873, %v876
          %v878 = vld [vmem:[#allocation9] sm:$0x1]
          %v879 = vld [vmem:[#allocation8] sm:$0x1]
          %v880 = vrcp.pop %v879
          %v881 = vmul.f32 %v878, %v880
          %v882 = vsub.f32 0.0, %v881
          %v883 = vlog2.pop %v873
          %v884 = vmul.f32 %v883, 0.6931472
          %v885 = vadd.f32 %v884, %v872
          %v886 = vld [vmem:[#allocation6] sm:$0x1]
          %v887 = vsel %vm741, %v886, -inf
          %888 = vmax.xlane.f32.xlu0 %v887
          %v889 = vpop.xlane.xlu0 %888
          %v890 = vsub.f32 %v886, %v889
          %v891 = vmul.f32 %v890, 1.442695
          %v892 = vpow.pop %v891
          %v893 = vsub.f32 %v871, %v885
          %v894 = vmul.f32 %v892, %v893
          %v895 = vsel %vm741, %v894, 0.0
          %896 = vadd.xlane.f32.xlu0 %v895
          %v897 = vpop.xlane.xlu0 %896
          %v898 = vsel %vm741, %v892, 0.0
          %899 = vadd.xlane.f32.xlu0 %v898
          %v900 = vpop.xlane.xlu0 %899
          %v901 = vrcp.pop %v900
          %v902 = vmul.f32 %v897, %v901
          %v903 = vsub.f32 0.0, %v902
          %v904 = vadd.f32 %v882, %v903
          %v905 = vmul.f32 %v904, 0.5
          %v906 = vrcp.pop %v877
          %v907 = vmul.f32 %v876, %v906
          %v908 = vsub.f32 1.0, %v907
          %v909 = vmul.f32 %v908, %v908
          %v910 = vadd.f32 %v907, 1e-08
          %v911 = vlog2.pop %v910
          %v912 = vmul.f32 %v911, 0.6931472
          %v913 = vmul.f32 %v909, %v912
          %v914 = vsel %vm741, %v913, 0.0
          %915 = vadd.xlane.f32.xlu0 %v914
          %v916 = vpop.xlane.xlu0 %915
          %v917 = vsub.f32 0.0, %v916
          %v918 = vmul.f32 %v917, 0.0625
          %v919 = vld [vmem:[#allocation11] sm:$0x1]
          %v920 = vsub.f32 0.0, %v919
          %v921 = vmul.f32 %v920, 0.0625
          %v922 = vmul.f32 %v905, 0.5
          %v923 = vadd.f32 %v921, %v918
          %v924 = vmul.f32 %v923, 0.25
          %v925 = vadd.f32 %v922, %v924
          %926 = vst.msk [vmem:[#allocation20] sm:$0x1] %vm835, %v925
        $region68: #{tpu_custom_call.1} parent=43 // pred_fallthru
          _
        %s927 = sand.u32 %s29, 1
        %s928 = scalar_lea.sflag [#allocation22], %s927
        %s929 = sand.u32 %s189, 1
        %s930 = smul.addr %s929, 8
        %s931 = scalar_lea.vmem [#allocation21], %s930
        // Predicated region
        $region69: #{tpu_custom_call.1} parent=43 // pred_check
          %p932 = pneg %p173
        $region70: #{tpu_custom_call.1} parent=43 // pred_check_branch
          %934 = sbr.rel (%p932) target = $region72
        $region71: #{tpu_custom_call.1} parent=43 // pred_region
          %s936 = ssub.s32 16, 16
          %937 = vsyncadd [#allocation14], %s936
          %s939 = sshll.u32 [#allocation20], 4
          %s940 = int_to_ptr.vmem [resolvable:$true] %s939
          %942 = dma.vmem_to_hbm [thread:$0]  %s940, 16, %s6, [#allocation14]
        $region72: #{tpu_custom_call.1} parent=43 // pred_fallthru
          _
        // Predicated region
        $region73: #{tpu_custom_call.1} parent=43 // pred_check
          %p943 = pneg %p199
        $region74: #{tpu_custom_call.1} parent=43 // pred_check_branch
          %945 = sbr.rel (%p943) target = $region76
        $region75: #{tpu_custom_call.1} parent=43 // pred_region
          %s947 = ssub.s32 128, 128
          %948 = vsyncadd %s928, %s947
          %s949 = smul.addr %s29, 128
          %s950 = scalar_lea.hbm %s7, %s949
          %s952 = sshll.u32 %s931, 4
          %s953 = int_to_ptr.vmem [resolvable:$true] %s952
          %955 = dma.vmem_to_hbm [thread:$0]  %s953, 128, %s950, %s928
        $region76: #{tpu_custom_call.1} parent=43 // pred_fallthru
          _
        // Predicated region
        $region77: #{tpu_custom_call.1} parent=43 // pred_check
          %p956 = pneg %p220
        $region78: #{tpu_custom_call.1} parent=43 // pred_check_branch
          %958 = sbr.rel (%p956) target = $region80
        $region79: #{tpu_custom_call.1} parent=43 // pred_region
          %s960 = ssub.s32 256, 256
          %961 = vsyncadd [#allocation22], %s960
          %s962 = sshll.u32 [#allocation23], 4
          %s963 = int_to_ptr.vmem [resolvable:$true] %s962
          %968 = dma.vmem_to_hbm [thread:$0]  %s963, 256, %s8, [#allocation22], 128, 128, 8
        $region80: #{tpu_custom_call.1} parent=43 // pred_fallthru
          _
        // Predicated region
        $region81: #{tpu_custom_call.1} parent=43 // pred_check
          %p969 = pneg %p173
        $region82: #{tpu_custom_call.1} parent=43 // pred_check_branch
          %971 = sbr.rel (%p969) target = $region84
        $region83: #{tpu_custom_call.1} parent=43 // pred_region
          %972 = dma.done [#allocation14], 16
        $region84: #{tpu_custom_call.1} parent=43 // pred_fallthru
          _
        // Predicated region
        $region85: #{tpu_custom_call.1} parent=43 // pred_check
          %p973 = pneg %p220
        $region86: #{tpu_custom_call.1} parent=43 // pred_check_branch
          %975 = sbr.rel (%p973) target = $region88
        $region87: #{tpu_custom_call.1} parent=43 // pred_region
          %976 = dma.done [#allocation22], 256
        $region88: #{tpu_custom_call.1} parent=43 // pred_fallthru
          _
      $region44: #{tpu_custom_call.1} parent=5 // pred_fallthru
        _
      %p977 = scmp.le.s32.totalorder 2, %s24
      // Predicated region
      $region89: #{tpu_custom_call.1} parent=5 // pred_check
        %p978 = pneg %p977
      $region90: #{tpu_custom_call.1} parent=5 // pred_check_branch
        %980 = sbr.rel (%p978) target = $region92
      $region91: #{tpu_custom_call.1} parent=5 // pred_region
        %s981 = ssub.s32 %s24, 2
        // Predicated region
        $region93: #{tpu_custom_call.1} parent=91 // pred_check
          %p982 = pneg %p205
        $region94: #{tpu_custom_call.1} parent=91 // pred_check_branch
          %984 = sbr.rel (%p982) target = $region96
        $region95: #{tpu_custom_call.1} parent=91 // pred_region
          %s985 = sand.u32 %s30, 1
          %s986 = scalar_lea.sflag [#allocation22], %s985
          %s987 = sand.u32 %s190, 1
          %s988 = smul.addr %s987, 8
          %s989 = scalar_lea.vmem [#allocation21], %s988
          %990 = dma.done %s986, 128
        $region96: #{tpu_custom_call.1} parent=91 // pred_fallthru
          _
      $region92: #{tpu_custom_call.1} parent=5 // pred_fallthru
        _
    $region6: #{tpu_custom_call.1} parent=1 // loop_footer
      %s28 = sadd.s32 1, %s24
    $region7: #{tpu_custom_call.1} parent=1 // loop_footer_branch
      %23 = sbr.rel target = $region3
    $region8: #{tpu_custom_call.1} parent=1 // loop_exit
      _
    %991 = vsyncpa [#allocation13], 1
    %s992 = scalar_lea.sflag [#allocation13], 1
    %993 = vsyncpa %s992, 1
    %994 = vsyncpa [#allocation16], 1
    %995 = vsyncpa [#allocation19], 1
    %996 = vsyncpa [#allocation14], 1
    %s997 = scalar_lea.sflag [#allocation14], 1
    %998 = vsyncpa %s997, 1
    %999 = vsyncpa [#allocation22], 1
    %s1000 = scalar_lea.sflag [#allocation22], 1
    %1001 = vsyncpa %s1000, 1

// kernel: tpu_custom_call.1
$region0: #{tpu_custom_call.1}
  #allocation0 [shape = 'u32[]', space=smem, size = 0x4, offset = 0x4, fixed_abs, tag = 'smem constant byte address 0x4 - core index']
  #allocation1 [shape = 'u32[144,128]{1,0:T(1,128)}', space=vmem, size = 0x12000, scoped, tag = 'internal scratch']
  #allocation2 [shape = 'f32[128,16]{1,0:T(8,128)}', space=vmem, size = 0x10000, scoped, tag = 'scratch operand']
  #allocation3 [shape = 'f32[1,16]{1,0:T(1,128)}', space=vmem, size = 0x200, scoped, tag = 'scratch operand']
  #allocation4 [shape = 'f32[1,16]{1,0:T(1,128)}', space=vmem, size = 0x200, scoped, tag = 'scratch operand']
  #allocation5 [shape = 'f32[1,16]{1,0:T(1,128)}', space=vmem, size = 0x200, scoped, tag = 'scratch operand']
  #allocation6 [shape = 'f32[1,16]{1,0:T(1,128)}', space=vmem, size = 0x200, scoped, tag = 'scratch operand']
  #allocation7 [shape = 'f32[1,1]{1,0:T(1,128)}', space=vmem, size = 0x200, scoped, tag = 'scratch operand']
  #allocation8 [shape = 'f32[1,1]{1,0:T(1,128)}', space=vmem, size = 0x200, scoped, tag = 'scratch operand']
  #allocation9 [shape = 'f32[1,1]{1,0:T(1,128)}', space=vmem, size = 0x200, scoped, tag = 'scratch operand']
  #allocation10 [shape = 'f32[1,1]{1,0:T(1,128)}', space=vmem, size = 0x200, scoped, tag = 'scratch operand']
  #allocation11 [shape = 'f32[1,1]{1,0:T(1,128)}', space=vmem, size = 0x200, scoped, tag = 'scratch operand']
  %s0 = inlined_call_operand.hbm [shape: f32[16,64], index: 0, kind: input, shape index: {}]
  %s1 = inlined_call_operand.hbm [shape: f32[16,48], index: 1, kind: input, shape index: {}]
  %s2 = inlined_call_operand.hbm [shape: f32[64,128], index: 2, kind: input, shape index: {}]
  %s3 = inlined_call_operand.vmem [shape: f32[1,128], index: 3, kind: input, shape index: {}]
  %s4 = inlined_call_operand.hbm [shape: f32[48,128], index: 4, kind: input, shape index: {}]
  %s5 = inlined_call_operand.vmem [shape: f32[1,128], index: 5, kind: input, shape index: {}]
  %s6 = inlined_call_operand.hbm [shape: f32[1,1], index: 6, kind: output, shape index: {0}]
  %s7 = inlined_call_operand.hbm [shape: f32[16,128], index: 7, kind: output, shape index: {1}]
  %s8 = inlined_call_operand.hbm [shape: f32[16,128], index: 8, kind: output, shape index: {2}]
  %9 = xla_tuple %s6, %s7, %s8
  %s10 = sld [smem:[#allocation0]]
  $region97: #{tpu_custom_call.1} parent=0
    _
  %s12 = ssub.s32 1, %s10
  %s13 = scalar_select 0, %s12, %s10
  $region1: #{tpu_custom_call.1} parent=0
    #allocation12 [shape = 'u8[8192]{0}', space=vmem, size = 0x2000, scoped, tag = 'input window, operand 0']
    #allocation13 [shape = 's32[2]{0}', space=sflag, size = 0x8, scoped, tag = 'scoped memory for tpu_custom_call.1']
    #allocation14 [shape = 's32[2]{0}', space=sflag, size = 0x8, scoped, tag = 'scoped memory for tpu_custom_call.1']
    #allocation15 [shape = 'u8[8192]{0}', space=vmem, size = 0x2000, scoped, tag = 'input window, operand 1, single buffered']
    #allocation16 [shape = 's32[1]{0}', space=sflag, size = 0x4, scoped, tag = 'scoped memory for tpu_custom_call.1']
    #allocation17 [shape = 'u8[32768]{0}', space=vmem, size = 0x8000, scoped, tag = 'input window, operand 2, single buffered']
    #allocation18 [shape = 'u8[24576]{0}', space=vmem, size = 0x6000, scoped, tag = 'input window, operand 4, single buffered']
    #allocation19 [shape = 's32[1]{0}', space=sflag, size = 0x4, scoped, tag = 'scoped memory for tpu_custom_call.1']
    #allocation20 [shape = 'u8[512]{0}', space=vmem, size = 0x400, scoped, tag = 'output window, operand 0, single buffered']
    #allocation21 [shape = 'u8[8192]{0}', space=vmem, size = 0x2000, scoped, tag = 'output window, operand 1']
    #allocation22 [shape = 's32[2]{0}', space=sflag, size = 0x8, scoped, tag = 'scoped memory for tpu_custom_call.1']
    #allocation23 [shape = 'u8[8192]{0}', space=vmem, size = 0x2000, scoped, tag = 'output window, operand 2, single buffered']
    %14 = vsyncpa [#allocation13], 0
    %s15 = scalar_lea.sflag [#allocation13], 1
    %16 = vsyncpa %s15, 0
    %17 = vsyncpa [#allocation16], 0
    %18 = vsyncpa [#allocation19], 0
    %19 = vsyncpa [#allocation14], 0
    %20 = vsyncpa [#allocation22], 0
    %s21 = scalar_lea.sflag [#allocation22], 1
    %22 = vsyncpa %s21, 0
    loop: start=0, step=1, limit=4
    $region2: #{tpu_custom_call.1} parent=1 // loop_pre_header
      _
    $region3: #{tpu_custom_call.1} parent=1 // loop_header
      %s24 = sphi 0, %s28
      %p25 = scmp.ge.s32.totalorder %s24, 4
      %s34 = sphi 0, %s36
      %s37 = sphi 0, %s34
      %s38 = sphi 0, %s37
      %s54 = sphi 0, %s38
      %s58 = sphi 0, %s58
      %s60 = sphi 0, %s58
      %s61 = sphi 0, %s60
      %s75 = sphi 0, %s61
      %s79 = sphi 0, %s79
      %s81 = sphi 0, %s79
      %s82 = sphi 0, %s81
      %s96 = sphi 0, %s82
      %s100 = sphi 0, %s100
      %s102 = sphi 0, %s100
      %s103 = sphi 0, %s102
      %s117 = sphi 0, %s103
      %s121 = sphi 0, %s121
      %s123 = sphi 0, %s121
      %s124 = sphi 0, %s123
      %s138 = sphi 0, %s124
      %s142 = sphi 0, %s142
      %s144 = sphi 0, %s142
      %s145 = sphi 0, %s144
      %s159 = sphi 0, %s145
      %s163 = sphi 0, %s163
      %s165 = sphi 0, %s163
      %s166 = sphi 0, %s165
      %s180 = sphi 0, %s166
      %s186 = sphi 0, %s188
      %s189 = sphi 0, %s186
      %s190 = sphi 0, %s189
      %s206 = sphi 0, %s190
      %s210 = sphi 0, %s210
      %s212 = sphi 0, %s210
      %s213 = sphi 0, %s212
      %s227 = sphi 0, %s213
    $region4: #{tpu_custom_call.1} parent=1 // loop_header_branch
      %27 = sbr.rel (%p25) target = $region8
    $region5: #{tpu_custom_call.1} parent=1 // loop_body
      %s29 = ssub.s32 %s24, 1
      %s30 = ssub.s32 %s24, 2
      %s31 = sadd.s32 %s24, 1
      %s32 = ssub.s32 %s24, %s31
      %p33 = scmp.eq.s32.totalorder %s32, 0
      %s35 = sadd.s32 %s34, 1
      %s36 = scalar_select %p33, %s34, %s35
      %p39 = pneg %p33
      %p40 = scmp.eq.s32.totalorder %s24, 1
      %p41 = por %p39, %p40
      %p42 = scmp.ne.s32.totalorder %s34, %s37
      %p43 = scmp.eq.s32.totalorder %s24, 0
      %p44 = por %p42, %p43
      %p45 = scmp.ne.s32.totalorder %s34, %s37
      %p46 = scmp.eq.s32.totalorder %s29, 1
      %p47 = por %p45, %p46
      %p48 = scmp.ne.s32.totalorder %s37, %s38
      %p49 = scmp.eq.s32.totalorder %s29, 0
      %p50 = por %p48, %p49
      %p51 = scmp.ne.s32.totalorder %s37, %s38
      %p52 = scmp.eq.s32.totalorder %s30, 1
      %p53 = por %p51, %p52
      %p55 = scmp.ne.s32.totalorder %s38, %s54
      %p56 = scmp.eq.s32.totalorder %s30, 0
      %p57 = por %p55, %p56
      %s59 = sadd.s32 %s58, 1
      %p62 = scmp.eq.s32.totalorder %s24, 1
      %p63 = scmp.ne.s32.totalorder %s58, %s60
      %p64 = scmp.eq.s32.totalorder %s24, 0
      %p65 = por %p63, %p64
      %p66 = scmp.ne.s32.totalorder %s58, %s60
      %p67 = scmp.eq.s32.totalorder %s29, 1
      %p68 = por %p66, %p67
      %p69 = scmp.ne.s32.totalorder %s60, %s61
      %p70 = scmp.eq.s32.totalorder %s29, 0
      %p71 = por %p69, %p70
      %p72 = scmp.ne.s32.totalorder %s60, %s61
      %p73 = scmp.eq.s32.totalorder %s30, 1
      %p74 = por %p72, %p73
      %p76 = scmp.ne.s32.totalorder %s61, %s75
      %p77 = scmp.eq.s32.totalorder %s30, 0
      %p78 = por %p76, %p77
      %s80 = sadd.s32 %s79, 1
      %p83 = scmp.eq.s32.totalorder %s24, 1
      %p84 = scmp.ne.s32.totalorder %s79, %s81
      %p85 = scmp.eq.s32.totalorder %s24, 0
      %p86 = por %p84, %p85
      %p87 = scmp.ne.s32.totalorder %s79, %s81
      %p88 = scmp.eq.s32.totalorder %s29, 1
      %p89 = por %p87, %p88
      %p90 = scmp.ne.s32.totalorder %s81, %s82
      %p91 = scmp.eq.s32.totalorder %s29, 0
      %p92 = por %p90, %p91
      %p93 = scmp.ne.s32.totalorder %s81, %s82
      %p94 = scmp.eq.s32.totalorder %s30, 1
      %p95 = por %p93, %p94
      %p97 = scmp.ne.s32.totalorder %s82, %s96
      %p98 = scmp.eq.s32.totalorder %s30, 0
      %p99 = por %p97, %p98
      %s101 = sadd.s32 %s100, 1
      %p104 = scmp.eq.s32.totalorder %s24, 1
      %p105 = scmp.ne.s32.totalorder %s100, %s102
      %p106 = scmp.eq.s32.totalorder %s24, 0
      %p107 = por %p105, %p106
      %p108 = scmp.ne.s32.totalorder %s100, %s102
      %p109 = scmp.eq.s32.totalorder %s29, 1
      %p110 = por %p108, %p109
      %p111 = scmp.ne.s32.totalorder %s102, %s103
      %p112 = scmp.eq.s32.totalorder %s29, 0
      %p113 = por %p111, %p112
      %p114 = scmp.ne.s32.totalorder %s102, %s103
      %p115 = scmp.eq.s32.totalorder %s30, 1
      %p116 = por %p114, %p115
      %p118 = scmp.ne.s32.totalorder %s103, %s117
      %p119 = scmp.eq.s32.totalorder %s30, 0
      %p120 = por %p118, %p119
      %s122 = sadd.s32 %s121, 1
      %p125 = scmp.eq.s32.totalorder %s24, 1
      %p126 = scmp.ne.s32.totalorder %s121, %s123
      %p127 = scmp.eq.s32.totalorder %s24, 0
      %p128 = por %p126, %p127
      %p129 = scmp.ne.s32.totalorder %s121, %s123
      %p130 = scmp.eq.s32.totalorder %s29, 1
      %p131 = por %p129, %p130
      %p132 = scmp.ne.s32.totalorder %s123, %s124
      %p133 = scmp.eq.s32.totalorder %s29, 0
      %p134 = por %p132, %p133
      %p135 = scmp.ne.s32.totalorder %s123, %s124
      %p136 = scmp.eq.s32.totalorder %s30, 1
      %p137 = por %p135, %p136
      %p139 = scmp.ne.s32.totalorder %s124, %s138
      %p140 = scmp.eq.s32.totalorder %s30, 0
      %p141 = por %p139, %p140
      %s143 = sadd.s32 %s142, 1
      %p146 = scmp.eq.s32.totalorder %s24, 1
      %p147 = scmp.ne.s32.totalorder %s142, %s144
      %p148 = scmp.eq.s32.totalorder %s24, 0
      %p149 = por %p147, %p148
      %p150 = scmp.ne.s32.totalorder %s142, %s144
      %p151 = scmp.eq.s32.totalorder %s29, 1
      %p152 = por %p150, %p151
      %p153 = scmp.ne.s32.totalorder %s144, %s145
      %p154 = scmp.eq.s32.totalorder %s29, 0
      %p155 = por %p153, %p154
      %p156 = scmp.ne.s32.totalorder %s144, %s145
      %p157 = scmp.eq.s32.totalorder %s30, 1
      %p158 = por %p156, %p157
      %p160 = scmp.ne.s32.totalorder %s145, %s159
      %p161 = scmp.eq.s32.totalorder %s30, 0
      %p162 = por %p160, %p161
      %s164 = sadd.s32 %s163, 1
      %p167 = scmp.eq.s32.totalorder %s24, 1
      %p168 = scmp.ne.s32.totalorder %s163, %s165
      %p169 = scmp.eq.s32.totalorder %s24, 0
      %p170 = por %p168, %p169
      %p171 = scmp.ne.s32.totalorder %s163, %s165
      %p172 = scmp.eq.s32.totalorder %s29, 1
      %p173 = por %p171, %p172
      %p174 = scmp.ne.s32.totalorder %s165, %s166
      %p175 = scmp.eq.s32.totalorder %s29, 0
      %p176 = por %p174, %p175
      %p177 = scmp.ne.s32.totalorder %s165, %s166
      %p178 = scmp.eq.s32.totalorder %s30, 1
      %p179 = por %p177, %p178
      %p181 = scmp.ne.s32.totalorder %s166, %s180
      %p182 = scmp.eq.s32.totalorder %s30, 0
      %p183 = por %p181, %p182
      %s184 = ssub.s32 %s24, %s31
      %p185 = scmp.eq.s32.totalorder %s184, 0
      %s187 = sadd.s32 %s186, 1
      %s188 = scalar_select %p185, %s186, %s187
      %p191 = pneg %p185
      %p192 = scmp.eq.s32.totalorder %s24, 1
      %p193 = por %p191, %p192
      %p194 = scmp.ne.s32.totalorder %s186, %s189
      %p195 = scmp.eq.s32.totalorder %s24, 0
      %p196 = por %p194, %p195
      %p197 = scmp.ne.s32.totalorder %s186, %s189
      %p198 = scmp.eq.s32.totalorder %s29, 1
      %p199 = por %p197, %p198
      %p200 = scmp.ne.s32.totalorder %s189, %s190
      %p201 = scmp.eq.s32.totalorder %s29, 0
      %p202 = por %p200, %p201
      %p203 = scmp.ne.s32.totalorder %s189, %s190
      %p204 = scmp.eq.s32.totalorder %s30, 1
      %p205 = por %p203, %p204
      %p207 = scmp.ne.s32.totalorder %s190, %s206
      %p208 = scmp.eq.s32.totalorder %s30, 0
      %p209 = por %p207, %p208
      %s211 = sadd.s32 %s210, 1
      %p214 = scmp.eq.s32.totalorder %s24, 1
      %p215 = scmp.ne.s32.totalorder %s210, %s212
      %p216 = scmp.eq.s32.totalorder %s24, 0
      %p217 = por %p215, %p216
      %p218 = scmp.ne.s32.totalorder %s210, %s212
      %p219 = scmp.eq.s32.totalorder %s29, 1
      %p220 = por %p218, %p219
      %p221 = scmp.ne.s32.totalorder %s212, %s213
      %p222 = scmp.eq.s32.totalorder %s29, 0
      %p223 = por %p221, %p222
      %p224 = scmp.ne.s32.totalorder %s212, %s213
      %p225 = scmp.eq.s32.totalorder %s30, 1
      %p226 = por %p224, %p225
      %p228 = scmp.ne.s32.totalorder %s213, %s227
      %p229 = scmp.eq.s32.totalorder %s30, 0
      %p230 = por %p228, %p229
      %p231 = scmp.le.s32.totalorder 1, %s24
      %p232 = scmp.lt.s32.totalorder %s24, 3
      %p233 = pnand %p231, %p232
      %p234 = pneg %p233
      // Predicated region
      $region9: #{tpu_custom_call.1} parent=5 // pred_check
        _
      $region10: #{tpu_custom_call.1} parent=5 // pred_check_branch
        %236 = sbr.rel (%p233) target = $region12
      $region11: #{tpu_custom_call.1} parent=5 // pred_region
        %s237 = ssub.s32 %s24, 1
        // Predicated region
        $region13: #{tpu_custom_call.1} parent=11 // pred_check
          %p238 = pneg %p71
        $region14: #{tpu_custom_call.1} parent=11 // pred_check_branch
          %240 = sbr.rel (%p238) target = $region16
        $region15: #{tpu_custom_call.1} parent=11 // pred_region
          %s242 = ssub.s32 256, 256
          %243 = vsyncadd [#allocation16], %s242
          %s244 = sshll.u32 [#allocation15], 4
          %s245 = int_to_ptr.vmem [resolvable:$true] %s244
          %250 = dma.hbm_to_vmem [thread:$0]  %s1, 256, %s245, [#allocation16], 128, 128, 8
        $region16: #{tpu_custom_call.1} parent=11 // pred_fallthru
          _
        // Predicated region
        $region17: #{tpu_custom_call.1} parent=11 // pred_check
          %p251 = pneg %p92
        $region18: #{tpu_custom_call.1} parent=11 // pred_check_branch
          %253 = sbr.rel (%p251) target = $region20
        $region19: #{tpu_custom_call.1} parent=11 // pred_region
          %s255 = ssub.s32 1024, 1024
          %256 = vsyncadd [#allocation16], %s255
          %s257 = sshll.u32 [#allocation17], 4
          %s258 = int_to_ptr.vmem [resolvable:$true] %s257
          %263 = dma.hbm_to_vmem [thread:$0]  %s2, 1024, %s258, [#allocation16], 128, 128, 8
        $region20: #{tpu_custom_call.1} parent=11 // pred_fallthru
          _
        // Predicated region
        $region21: #{tpu_custom_call.1} parent=11 // pred_check
          %p264 = pneg %p113
        $region22: #{tpu_custom_call.1} parent=11 // pred_check_branch
          %266 = sbr.rel (%p264) target = $region24
        $region23: #{tpu_custom_call.1} parent=11 // pred_region
          _
        $region24: #{tpu_custom_call.1} parent=11 // pred_fallthru
          _
        // Predicated region
        $region25: #{tpu_custom_call.1} parent=11 // pred_check
          %p267 = pneg %p134
        $region26: #{tpu_custom_call.1} parent=11 // pred_check_branch
          %269 = sbr.rel (%p267) target = $region28
        $region27: #{tpu_custom_call.1} parent=11 // pred_region
          %s271 = ssub.s32 768, 768
          %272 = vsyncadd [#allocation19], %s271
          %s273 = sshll.u32 [#allocation18], 4
          %s274 = int_to_ptr.vmem [resolvable:$true] %s273
          %279 = dma.hbm_to_vmem [thread:$0]  %s4, 768, %s274, [#allocation19], 128, 128, 8
        $region28: #{tpu_custom_call.1} parent=11 // pred_fallthru
          _
        // Predicated region
        $region29: #{tpu_custom_call.1} parent=11 // pred_check
          %p280 = pneg %p155
        $region30: #{tpu_custom_call.1} parent=11 // pred_check_branch
          %282 = sbr.rel (%p280) target = $region32
        $region31: #{tpu_custom_call.1} parent=11 // pred_region
          _
        $region32: #{tpu_custom_call.1} parent=11 // pred_fallthru
          _
      $region12: #{tpu_custom_call.1} parent=5 // pred_fallthru
        _
      %p283 = scmp.lt.s32.totalorder %s24, 2
      // Predicated region
      $region33: #{tpu_custom_call.1} parent=5 // pred_check
        %p284 = pneg %p283
      $region34: #{tpu_custom_call.1} parent=5 // pred_check_branch
        %286 = sbr.rel (%p284) target = $region36
      $region35: #{tpu_custom_call.1} parent=5 // pred_region
        // Predicated region
        $region37: #{tpu_custom_call.1} parent=35 // pred_check
          %p287 = pneg %p44
        $region38: #{tpu_custom_call.1} parent=35 // pred_check_branch
          %289 = sbr.rel (%p287) target = $region40
        $region39: #{tpu_custom_call.1} parent=35 // pred_region
          %s290 = sand.u32 %s34, 1
          %s291 = scalar_lea.sflag [#allocation13], %s290
          %s292 = sand.u32 %s34, 1
          %s293 = smul.addr %s292, 8
          %s294 = scalar_lea.vmem [#allocation12], %s293
          %s296 = ssub.s32 128, 128
          %297 = vsyncadd %s291, %s296
          %s298 = smul.addr %s24, 128
          %s299 = scalar_lea.hbm %s0, %s298
          %s301 = sshll.u32 %s294, 4
          %s302 = int_to_ptr.vmem [resolvable:$true] %s301
          %304 = dma.hbm_to_vmem [thread:$0]  %s299, 128, %s302, %s291
        $region40: #{tpu_custom_call.1} parent=35 // pred_fallthru
          _
      $region36: #{tpu_custom_call.1} parent=5 // pred_fallthru
        _
      %p305 = scmp.le.s32.totalorder 1, %s24
      %p306 = scmp.lt.s32.totalorder %s24, 3
      %p307 = pnand %p305, %p306
      %p308 = pneg %p307
      // Predicated region
      $region41: #{tpu_custom_call.1} parent=5 // pred_check
        _
      $region42: #{tpu_custom_call.1} parent=5 // pred_check_branch
        %310 = sbr.rel (%p307) target = $region44
      $region43: #{tpu_custom_call.1} parent=5 // pred_region
        %s311 = ssub.s32 %s24, 1
        %s312 = sand.u32 %s37, 1
        %s313 = scalar_lea.sflag [#allocation13], %s312
        %s314 = sand.u32 %s37, 1
        %s315 = smul.addr %s314, 8
        %s316 = scalar_lea.vmem [#allocation12], %s315
        // Predicated region
        $region45: #{tpu_custom_call.1} parent=43 // pred_check
          %p317 = pneg %p50
        $region46: #{tpu_custom_call.1} parent=43 // pred_check_branch
          %319 = sbr.rel (%p317) target = $region48
        $region47: #{tpu_custom_call.1} parent=43 // pred_region
          %320 = dma.done %s313, 128
        $region48: #{tpu_custom_call.1} parent=43 // pred_fallthru
          _
        // Predicated region
        $region49: #{tpu_custom_call.1} parent=43 // pred_check
          %p321 = pneg %p71
        $region50: #{tpu_custom_call.1} parent=43 // pred_check_branch
          %323 = sbr.rel (%p321) target = $region52
        $region51: #{tpu_custom_call.1} parent=43 // pred_region
          %324 = dma.done [#allocation16], 256
        $region52: #{tpu_custom_call.1} parent=43 // pred_fallthru
          _
        // Predicated region
        $region53: #{tpu_custom_call.1} parent=43 // pred_check
          %p325 = pneg %p92
        $region54: #{tpu_custom_call.1} parent=43 // pred_check_branch
          %327 = sbr.rel (%p325) target = $region56
        $region55: #{tpu_custom_call.1} parent=43 // pred_region
          %328 = dma.done [#allocation16], 1024
        $region56: #{tpu_custom_call.1} parent=43 // pred_fallthru
          _
        // Predicated region
        $region57: #{tpu_custom_call.1} parent=43 // pred_check
          %p329 = pneg %p134
        $region58: #{tpu_custom_call.1} parent=43 // pred_check_branch
          %331 = sbr.rel (%p329) target = $region60
        $region59: #{tpu_custom_call.1} parent=43 // pred_region
          %332 = dma.done [#allocation19], 768
        $region60: #{tpu_custom_call.1} parent=43 // pred_fallthru
          _
        %s333 = sand.u32 %s37, 1
        %s334 = scalar_lea.sflag [#allocation13], %s333
        %s335 = sand.u32 %s37, 1
        %s336 = smul.addr %s335, 8
        %s337 = scalar_lea.vmem [#allocation12], %s336
        %p338 = pneg %p50
        %p339 = pneg %p47
        %p340 = pneg %p71
        %p341 = pneg %p68
        %p342 = pneg %p92
        %p343 = pneg %p89
        %p344 = pneg %p113
        %p345 = pneg %p110
        %p346 = pneg %p134
        %p347 = pneg %p131
        %p348 = pneg %p155
        %p349 = pneg %p152
        %p350 = pneg %p176
        %p351 = pneg %p173
        %p352 = pneg %p202
        %p353 = pneg %p199
        %s354 = sand.u32 %s29, 1
        %s355 = scalar_lea.sflag [#allocation22], %s354
        %s356 = sand.u32 %s189, 1
        %s357 = smul.addr %s356, 8
        %s358 = scalar_lea.vmem [#allocation21], %s357
        %p359 = pneg %p223
        %p360 = pneg %p220
        %p361 = scmp.eq.s32.totalorder %s29, 0
        // Predicated region
        $region61: #{tpu_custom_call.1} parent=43 // pred_check
          %p362 = pneg %p361
        $region62: #{tpu_custom_call.1} parent=43 // pred_check_branch
          %364 = sbr.rel (%p362) target = $region64
        $region63: #{tpu_custom_call.1} parent=43 // pred_region
          %v365 = vld [vmem:[#allocation15] sm:$0xff]
          %v366 = vld [vmem:[#allocation15 + $0x8] sm:$0xff]
          %v367 = vld [vmem:[#allocation18] sm:$0xff]
          %v368 = vld [vmem:[#allocation18 + $0x8] sm:$0xff]
          %v369 = vld [vmem:[#allocation18 + $0x10] sm:$0xff]
          %v370 = vld [vmem:[#allocation18 + $0x18] sm:$0xff]
          %v371 = vld [vmem:[#allocation18 + $0x20] sm:$0xff]
          %v372 = vld [vmem:[#allocation18 + $0x28] sm:$0xff]
          %v373 = vld [vmem:[%s5] sm:$0x1]
          %v375 = vlaneseq
          %v376 = vshrl.u32 %v375, 7
          %v377 = vsub.s32 0, %v376
          %v378 = vrot.slane %v373, %v377
          %vm380 = vcmask 392192
          %v382 = vsel %vm380, %v365, 0
          %v385 = vsel %vm380, %v366, 0
          %387 = vmatprep.subr.mxu0 0.0
          %388 = vmatpush1.msra.mxu0 0.0
          %389 = vmatprep.subr.mxu0 0.0
          %390 = vmatpush1.msra.mxu0 0.0
          %391 = vmatprep.subr.mxu0 0.0
          %392 = vmatpush1.msra.mxu0 0.0
          %393 = vmatprep.subr.mxu0 0.0
          %394 = vmatpush1.msra.mxu0 0.0
          %395 = vmatprep.subr.mxu0 0.0
          %396 = vmatpush1.msra.mxu0 0.0
          %397 = vmatprep.subr.mxu0 0.0
          %398 = vmatpush1.msra.mxu0 0.0
          %399 = vmatprep.subr.mxu0 0.0
          %400 = vmatpush1.msra.mxu0 0.0
          %401 = vmatprep.subr.mxu0 0.0
          %402 = vmatpush1.msra.mxu0 0.0
          %403 = vmatprep.subr.mxu0 0.0
          %404 = vmatpush1.msra.mxu0 0.0
          %405 = vmatprep.subr.mxu0 0.0
          %406 = vmatpush1.msra.mxu0 0.0
          %407 = vmatprep.subr.mxu0 0.0
          %408 = vmatpush1.msra.mxu0 %v372
          %409 = vmatprep.subr.mxu0 0.0
          %410 = vmatpush1.msra.mxu0 %v371
          %411 = vmatprep.subr.mxu0 0.0
          %412 = vmatpush1.msra.mxu0 %v370
          %413 = vmatprep.subr.mxu0 0.0
          %414 = vmatpush1.msra.mxu0 %v369
          %415 = vmatprep.subr.mxu0 0.0
          %416 = vmatpush1.msra.mxu0 %v368
          %417 = vmatprep.subr.mxu0 0.0
          %418 = vmatpush1.msra.mxu0 %v367
          %419 = vmatprep.subr.mxu0 0.0
          %420 = vmatpush2.msra.mxu0 0.0
          %421 = vmatprep.subr.mxu0 0.0
          %422 = vmatpush2.msra.mxu0 0.0
          %423 = vmatprep.subr.mxu0 0.0
          %424 = vmatpush2.msra.mxu0 0.0
          %425 = vmatprep.subr.mxu0 0.0
          %426 = vmatpush2.msra.mxu0 0.0
          %427 = vmatprep.subr.mxu0 0.0
          %428 = vmatpush2.msra.mxu0 0.0
          %429 = vmatprep.subr.mxu0 0.0
          %430 = vmatpush2.msra.mxu0 0.0
          %431 = vmatprep.subr.mxu0 0.0
          %432 = vmatpush2.msra.mxu0 0.0
          %433 = vmatprep.subr.mxu0 0.0
          %434 = vmatpush2.msra.mxu0 0.0
          %435 = vmatprep.subr.mxu0 0.0
          %436 = vmatpush2.msra.mxu0 0.0
          %437 = vmatprep.subr.mxu0 0.0
          %438 = vmatpush2.msra.mxu0 0.0
          %439 = vmatprep.subr.mxu0 0.0
          %440 = vmatpush2.msra.mxu0 0.0
          %441 = vmatprep.subr.mxu0 0.0
          %442 = vmatpush2.msra.mxu0 0.0
          %443 = vmatprep.subr.mxu0 0.0
          %444 = vmatpush2.msra.mxu0 0.0
          %445 = vmatprep.subr.mxu0 0.0
          %446 = vmatpush2.msra.mxu0 0.0
          %447 = vmatprep.subr.mxu0 0.0
          %448 = vmatpush2.msra.mxu0 0.0
          %449 = vmatprep.subr.mxu0 0.0
          %450 = vmatpush2.msra.mxu0 0.0
          %451 = vmatprep.mubr.f32.mxu0 0.0
          %452 = vmatmul.mubr.f32.gmra.mxu0 %v382
          %v453 = vpop.f32.mrf.mxu0
          %v454 = vadd.f32 %v378, %v453
          %v455 = vpop.f32.mrf.mxu0
          %456 = vmatprep.mubr.f32.mxu0 0.0
          %457 = vmatmul.mubr.f32.gmra.mxu0 %v385
          %v458 = vpop.f32.mrf.mxu0
          %v459 = vadd.f32 %v378, %v458
          %v460 = vpop.f32.mrf.mxu0
          %461 = vdwg.mxu0
          %v462 = vmul.f32 %v454, %v454
          %v463 = vmul.f32 %v459, %v459
          %464 = vadd.xlane.f32.xlu0 %v462
          %v465 = vpop.xlane.xlu0 %464
          %466 = vadd.xlane.f32.xlu0 %v463
          %v467 = vpop.xlane.xlu0 %466
          %v468 = vmax.f32 %v465, 1e-24
          %v469 = vmax.f32 %v467, 1e-24
          %v470 = vrsqrt.pop %v468
          %v471 = vrsqrt.pop %v469
          %v472 = vmul.f32 %v454, %v470
          %v473 = vmul.f32 %v459, %v471
          %474 = vst [vmem:[#allocation23] sm:$0xff] %v472
          %475 = vst [vmem:[#allocation23 + $0x8] sm:$0xff] %v473
          %476 = vxpose.xlu0.b32.start [1/16] %v472, 128
          %477 = vxpose.xlu0.b32.cont [2/16] %v473, 128
          %478 = vxpose.xlu0.b32.cont [3/16] 0.0, 128
          %479 = vxpose.xlu0.b32.cont [4/16] 0.0, 128
          %480 = vxpose.xlu0.b32.cont [5/16] 0.0, 128
          %481 = vxpose.xlu0.b32.cont [6/16] 0.0, 128
          %482 = vxpose.xlu0.b32.cont [7/16] 0.0, 128
          %483 = vxpose.xlu0.b32.cont [8/16] 0.0, 128
          %484 = vxpose.xlu0.b32.cont [9/16] 0.0, 128
          %485 = vxpose.xlu0.b32.cont [10/16] 0.0, 128
          %486 = vxpose.xlu0.b32.cont [11/16] 0.0, 128
          %487 = vxpose.xlu0.b32.cont [12/16] 0.0, 128
          %488 = vxpose.xlu0.b32.cont [13/16] 0.0, 128
          %489 = vxpose.xlu0.b32.cont [14/16] 0.0, 128
          %490 = vxpose.xlu0.b32.cont [15/16] 0.0, 128
          %491 = vxpose.xlu0.b32.end [16/16] 0.0, 128
          %v492 = vpop.trf.xlu0
          %v493 = vpop.trf.xlu0
          %v494 = vpop.trf.xlu0
          %v495 = vpop.trf.xlu0
          %v496 = vpop.trf.xlu0
          %v497 = vpop.trf.xlu0
          %v498 = vpop.trf.xlu0
          %v499 = vpop.trf.xlu0
          %v500 = vpop.trf.xlu0
          %v501 = vpop.trf.xlu0
          %v502 = vpop.trf.xlu0
          %v503 = vpop.trf.xlu0
          %v504 = vpop.trf.xlu0
          %v505 = vpop.trf.xlu0
          %v506 = vpop.trf.xlu0
          %v507 = vpop.trf.xlu0
          %vm508 = vcmask 130048
          %509 = vst.msk [vmem:[#allocation2] sm:$0xff] %vm508, %v492
          %510 = vst.msk [vmem:[#allocation2 + $0x8] sm:$0xff] %vm508, %v493
          %511 = vst.msk [vmem:[#allocation2 + $0x10] sm:$0xff] %vm508, %v494
          %512 = vst.msk [vmem:[#allocation2 + $0x18] sm:$0xff] %vm508, %v495
          %513 = vst.msk [vmem:[#allocation2 + $0x20] sm:$0xff] %vm508, %v496
          %514 = vst.msk [vmem:[#allocation2 + $0x28] sm:$0xff] %vm508, %v497
          %515 = vst.msk [vmem:[#allocation2 + $0x30] sm:$0xff] %vm508, %v498
          %516 = vst.msk [vmem:[#allocation2 + $0x38] sm:$0xff] %vm508, %v499
          %517 = vst.msk [vmem:[#allocation2 + $0x40] sm:$0xff] %vm508, %v500
          %518 = vst.msk [vmem:[#allocation2 + $0x48] sm:$0xff] %vm508, %v501
          %519 = vst.msk [vmem:[#allocation2 + $0x50] sm:$0xff] %vm508, %v502
          %520 = vst.msk [vmem:[#allocation2 + $0x58] sm:$0xff] %vm508, %v503
          %521 = vst.msk [vmem:[#allocation2 + $0x60] sm:$0xff] %vm508, %v504
          %522 = vst.msk [vmem:[#allocation2 + $0x68] sm:$0xff] %vm508, %v505
          %523 = vst.msk [vmem:[#allocation2 + $0x70] sm:$0xff] %vm508, %v506
          %524 = vst.msk [vmem:[#allocation2 + $0x78] sm:$0xff] %vm508, %v507
          %vm525 = vcmask 122880
          %526 = vst.msk [vmem:[#allocation3] sm:$0x1] %vm525, 0.0
          %527 = vst.msk [vmem:[#allocation4] sm:$0x1] %vm525, -inf
          %528 = vst.msk [vmem:[#allocation5] sm:$0x1] %vm525, 0.0
          %vm529 = vcmask 0
          %530 = vst.msk [vmem:[#allocation10] sm:$0x1] %vm529, 0.0
          %531 = vst.msk [vmem:[#allocation11] sm:$0x1] %vm529, 0.0
          %532 = vst.msk [vmem:[#allocation6] sm:$0x1] %vm525, -inf
          %533 = vst.msk [vmem:[#allocation7] sm:$0x1] %vm529, -inf
          %534 = vst.msk [vmem:[#allocation8] sm:$0x1] %vm529, 0.0
          %535 = vst.msk [vmem:[#allocation9] sm:$0x1] %vm529, 0.0
        $region64: #{tpu_custom_call.1} parent=43 // pred_fallthru
          _
        %v536 = vld [vmem:[%s316] sm:$0xff]
        %v537 = vld [vmem:[#allocation17] sm:$0xff]
        %v538 = vld [vmem:[#allocation17 + $0x8] sm:$0xff]
        %v539 = vld [vmem:[#allocation17 + $0x10] sm:$0xff]
        %v540 = vld [vmem:[#allocation17 + $0x18] sm:$0xff]
        %v541 = vld [vmem:[#allocation17 + $0x20] sm:$0xff]
        %v542 = vld [vmem:[#allocation17 + $0x28] sm:$0xff]
        %v543 = vld [vmem:[#allocation17 + $0x30] sm:$0xff]
        %v544 = vld [vmem:[#allocation17 + $0x38] sm:$0xff]
        %v545 = vld [vmem:[%s3] sm:$0x1]
        %v547 = vlaneseq
        %v548 = vshrl.u32 %v547, 7
        %v549 = vsub.s32 0, %v548
        %v550 = vrot.slane %v545, %v549
        %vm552 = vcmask 523264
        %v554 = vsel %vm552, %v536, 0
        %556 = vmatprep.subr.mxu0 0.0
        %557 = vmatpush1.msra.mxu0 0.0
        %558 = vmatprep.subr.mxu0 0.0
        %559 = vmatpush1.msra.mxu0 0.0
        %560 = vmatprep.subr.mxu0 0.0
        %561 = vmatpush1.msra.mxu0 0.0
        %562 = vmatprep.subr.mxu0 0.0
        %563 = vmatpush1.msra.mxu0 0.0
        %564 = vmatprep.subr.mxu0 0.0
        %565 = vmatpush1.msra.mxu0 0.0
        %566 = vmatprep.subr.mxu0 0.0
        %567 = vmatpush1.msra.mxu0 0.0
        %568 = vmatprep.subr.mxu0 0.0
        %569 = vmatpush1.msra.mxu0 0.0
        %570 = vmatprep.subr.mxu0 0.0
        %571 = vmatpush1.msra.mxu0 0.0
        %572 = vmatprep.subr.mxu0 0.0
        %573 = vmatpush1.msra.mxu0 %v544
        %574 = vmatprep.subr.mxu0 0.0
        %575 = vmatpush1.msra.mxu0 %v543
        %576 = vmatprep.subr.mxu0 0.0
        %577 = vmatpush1.msra.mxu0 %v542
        %578 = vmatprep.subr.mxu0 0.0
        %579 = vmatpush1.msra.mxu0 %v541
        %580 = vmatprep.subr.mxu0 0.0
        %581 = vmatpush1.msra.mxu0 %v540
        %582 = vmatprep.subr.mxu0 0.0
        %583 = vmatpush1.msra.mxu0 %v539
        %584 = vmatprep.subr.mxu0 0.0
        %585 = vmatpush1.msra.mxu0 %v538
        %586 = vmatprep.subr.mxu0 0.0
        %587 = vmatpush1.msra.mxu0 %v537
        %588 = vmatprep.subr.mxu0 0.0
        %589 = vmatpush2.msra.mxu0 0.0
        %590 = vmatprep.subr.mxu0 0.0
        %591 = vmatpush2.msra.mxu0 0.0
        %592 = vmatprep.subr.mxu0 0.0
        %593 = vmatpush2.msra.mxu0 0.0
        %594 = vmatprep.subr.mxu0 0.0
        %595 = vmatpush2.msra.mxu0 0.0
        %596 = vmatprep.subr.mxu0 0.0
        %597 = vmatpush2.msra.mxu0 0.0
        %598 = vmatprep.subr.mxu0 0.0
        %599 = vmatpush2.msra.mxu0 0.0
        %600 = vmatprep.subr.mxu0 0.0
        %601 = vmatpush2.msra.mxu0 0.0
        %602 = vmatprep.subr.mxu0 0.0
        %603 = vmatpush2.msra.mxu0 0.0
        %604 = vmatprep.subr.mxu0 0.0
        %605 = vmatpush2.msra.mxu0 0.0
        %606 = vmatprep.subr.mxu0 0.0
        %607 = vmatpush2.msra.mxu0 0.0
        %608 = vmatprep.subr.mxu0 0.0
        %609 = vmatpush2.msra.mxu0 0.0
        %610 = vmatprep.subr.mxu0 0.0
        %611 = vmatpush2.msra.mxu0 0.0
        %612 = vmatprep.subr.mxu0 0.0
        %613 = vmatpush2.msra.mxu0 0.0
        %614 = vmatprep.subr.mxu0 0.0
        %615 = vmatpush2.msra.mxu0 0.0
        %616 = vmatprep.subr.mxu0 0.0
        %617 = vmatpush2.msra.mxu0 0.0
        %618 = vmatprep.subr.mxu0 0.0
        %619 = vmatpush2.msra.mxu0 0.0
        %620 = vmatprep.mubr.f32.mxu0 0.0
        %621 = vmatmul.mubr.f32.gmra.mxu0 %v554
        %v622 = vpop.f32.mrf.mxu0
        %v623 = vadd.f32 %v550, %v622
        %v624 = vpop.f32.mrf.mxu0
        %625 = vdwg.mxu0
        %v626 = vmul.f32 %v623, %v623
        %627 = vadd.xlane.f32.xlu0 %v626
        %v628 = vpop.xlane.xlu0 %627
        %v629 = vmax.f32 %v628, 1e-24
        %v630 = vrsqrt.pop %v629
        %v631 = vmul.f32 %v623, %v630
        %632 = vst [vmem:[%s358] sm:$0xff] %v631
        %v633 = vld [vmem:[#allocation2] sm:$0xff]
        %v634 = vld [vmem:[#allocation2 + $0x8] sm:$0xff]
        %v635 = vld [vmem:[#allocation2 + $0x10] sm:$0xff]
        %v636 = vld [vmem:[#allocation2 + $0x18] sm:$0xff]
        %v637 = vld [vmem:[#allocation2 + $0x20] sm:$0xff]
        %v638 = vld [vmem:[#allocation2 + $0x28] sm:$0xff]
        %v639 = vld [vmem:[#allocation2 + $0x30] sm:$0xff]
        %v640 = vld [vmem:[#allocation2 + $0x38] sm:$0xff]
        %v641 = vld [vmem:[#allocation2 + $0x40] sm:$0xff]
        %v642 = vld [vmem:[#allocation2 + $0x48] sm:$0xff]
        %v643 = vld [vmem:[#allocation2 + $0x50] sm:$0xff]
        %v644 = vld [vmem:[#allocation2 + $0x58] sm:$0xff]
        %v645 = vld [vmem:[#allocation2 + $0x60] sm:$0xff]
        %v646 = vld [vmem:[#allocation2 + $0x68] sm:$0xff]
        %v647 = vld [vmem:[#allocation2 + $0x70] sm:$0xff]
        %v648 = vld [vmem:[#allocation2 + $0x78] sm:$0xff]
        %649 = vmatprep.subr.mxu0 0.0
        %650 = vmatpush1.msra.mxu0 %v648
        %651 = vmatprep.subr.mxu0 0.0
        %652 = vmatpush1.msra.mxu0 %v647
        %653 = vmatprep.subr.mxu0 0.0
        %654 = vmatpush1.msra.mxu0 %v646
        %655 = vmatprep.subr.mxu0 0.0
        %656 = vmatpush1.msra.mxu0 %v645
        %657 = vmatprep.subr.mxu0 0.0
        %658 = vmatpush1.msra.mxu0 %v644
        %659 = vmatprep.subr.mxu0 0.0
        %660 = vmatpush1.msra.mxu0 %v643
        %661 = vmatprep.subr.mxu0 0.0
        %662 = vmatpush1.msra.mxu0 %v642
        %663 = vmatprep.subr.mxu0 0.0
        %664 = vmatpush1.msra.mxu0 %v641
        %665 = vmatprep.subr.mxu0 0.0
        %666 = vmatpush1.msra.mxu0 %v640
        %667 = vmatprep.subr.mxu0 0.0
        %668 = vmatpush1.msra.mxu0 %v639
        %669 = vmatprep.subr.mxu0 0.0
        %670 = vmatpush1.msra.mxu0 %v638
        %671 = vmatprep.subr.mxu0 0.0
        %672 = vmatpush1.msra.mxu0 %v637
        %673 = vmatprep.subr.mxu0 0.0
        %674 = vmatpush1.msra.mxu0 %v636
        %675 = vmatprep.subr.mxu0 0.0
        %676 = vmatpush1.msra.mxu0 %v635
        %677 = vmatprep.subr.mxu0 0.0
        %678 = vmatpush1.msra.mxu0 %v634
        %679 = vmatprep.subr.mxu0 0.0
        %680 = vmatpush1.msra.mxu0 %v633
        %681 = vmatprep.subr.mxu0 0.0
        %682 = vmatpush2.msra.mxu0 0.0
        %683 = vmatprep.subr.mxu0 0.0
        %684 = vmatpush2.msra.mxu0 0.0
        %685 = vmatprep.subr.mxu0 0.0
        %686 = vmatpush2.msra.mxu0 0.0
        %687 = vmatprep.subr.mxu0 0.0
        %688 = vmatpush2.msra.mxu0 0.0
        %689 = vmatprep.subr.mxu0 0.0
        %690 = vmatpush2.msra.mxu0 0.0
        %691 = vmatprep.subr.mxu0 0.0
        %692 = vmatpush2.msra.mxu0 0.0
        %693 = vmatprep.subr.mxu0 0.0
        %694 = vmatpush2.msra.mxu0 0.0
        %695 = vmatprep.subr.mxu0 0.0
        %696 = vmatpush2.msra.mxu0 0.0
        %697 = vmatprep.subr.mxu0 0.0
        %698 = vmatpush2.msra.mxu0 0.0
        %699 = vmatprep.subr.mxu0 0.0
        %700 = vmatpush2.msra.mxu0 0.0
        %701 = vmatprep.subr.mxu0 0.0
        %702 = vmatpush2.msra.mxu0 0.0
        %703 = vmatprep.subr.mxu0 0.0
        %704 = vmatpush2.msra.mxu0 0.0
        %705 = vmatprep.subr.mxu0 0.0
        %706 = vmatpush2.msra.mxu0 0.0
        %707 = vmatprep.subr.mxu0 0.0
        %708 = vmatpush2.msra.mxu0 0.0
        %709 = vmatprep.subr.mxu0 0.0
        %710 = vmatpush2.msra.mxu0 0.0
        %711 = vmatprep.subr.mxu0 0.0
        %712 = vmatpush2.msra.mxu0 0.0
        %713 = vmatprep.mubr.f32.mxu0 0.0
        %714 = vmatmul.mubr.f32.gmra.mxu0 %v631
        %v715 = vpop.f32.mrf.mxu0
        %v716 = vadd.f32 0.0, %v715
        %v717 = vpop.f32.mrf.mxu0
        %718 = vdwg.mxu0
        %v719 = vmul.f32 %v716, 14.285714
        %s720 = smul.u32 %s29, 8
        %v721 = vlaneseq
        %v722 = vshrl.u32 %v721, 7
        %v723 = vstv %s720
        %v724 = vadd.s32 %v723, %v722
        %v725 = vlaneseq
        %v726 = vand.u32 %v725, 127
        %vm727 = vcmp.eq.s32.totalorder %v724, %v726
        %v728 = vsel %vm727, %v719, 0.0
        %vm729 = vcmask 130048
        %v730 = vsel %vm729, %v728, 0.0
        %731 = vadd.xlane.f32.xlu0 %v730
        %v732 = vpop.xlane.xlu0 %731
        %v733 = vld [vmem:[#allocation3] sm:$0x1]
        %v734 = vrot.slane %v730, 4
        %v735 = vadd.f32 %v730, %v734
        %v736 = vrot.slane %v735, 2
        %v737 = vadd.f32 %v735, %v736
        %v738 = vrot.slane %v737, 1
        %v739 = vadd.f32 %v737, %v738
        %v740 = vadd.f32 %v733, %v739
        %vm741 = vcmask 122880
        %742 = vst.msk [vmem:[#allocation3] sm:$0x1] %vm741, %v740
        %v743 = vsel %vm729, %v719, -inf
        %744 = vmax.xlane.f32.xlu0 %v743
        %v745 = vpop.xlane.xlu0 %744
        %v746 = vsub.f32 %v719, %v745
        %v747 = vmul.f32 %v746, 1.442695
        %v748 = vpow.pop %v747
        %v749 = vsel %vm727, 0.0, %v748
        %v750 = vsel %vm729, %v749, 0.0
        %751 = vadd.xlane.f32.xlu0 %v750
        %v752 = vpop.xlane.xlu0 %751
        %v753 = vld [vmem:[#allocation4] sm:$0x1]
        %v754 = vrot.slane %v743, 4
        %v755 = vmax.f32 %v743, %v754
        %v756 = vrot.slane %v755, 2
        %v757 = vmax.f32 %v755, %v756
        %v758 = vrot.slane %v757, 1
        %v759 = vmax.f32 %v757, %v758
        %v760 = vmax.f32 %v753, %v759
        %v761 = vmul.f32 %v745, 1.442695
        %v762 = vpow.pop %v761
        %v763 = vmul.f32 %v749, %v762
        %v764 = vsel %vm729, %v763, 0.0
        %v765 = vrot.slane %v764, 4
        %v766 = vadd.f32 %v764, %v765
        %v767 = vrot.slane %v766, 2
        %v768 = vadd.f32 %v766, %v767
        %v769 = vrot.slane %v768, 1
        %v770 = vadd.f32 %v768, %v769
        %v771 = vsub.f32 0.0, %v760
        %v772 = vmul.f32 %v771, 1.442695
        %v773 = vpow.pop %v772
        %v774 = vmul.f32 %v770, %v773
        %v775 = vld [vmem:[#allocation5] sm:$0x1]
        %v776 = vsub.f32 %v753, %v760
        %v777 = vmul.f32 %v776, 1.442695
        %v778 = vpow.pop %v777
        %v779 = vmul.f32 %v775, %v778
        %v780 = vadd.f32 %v779, %v774
        %781 = vst.msk [vmem:[#allocation5] sm:$0x1] %vm741, %v780
        %782 = vst.msk [vmem:[#allocation4] sm:$0x1] %vm741, %v760
        %v783 = vsub.f32 %v732, %v745
        %v784 = vmul.f32 %v783, 1.442695
        %v785 = vpow.pop %v784
        %v786 = vadd.f32 %v752, %v785
        %v787 = vsel %vm727, 0.0, %v719
        %v788 = vsel %vm729, %v787, -inf
        %789 = vmax.xlane.f32.xlu0 %v788
        %v790 = vpop.xlane.xlu0 %789
        %v791 = vld [vmem:[#allocation6] sm:$0x1]
        %v792 = vrot.slane %v788, 4
        %v793 = vmax.f32 %v788, %v792
        %v794 = vrot.slane %v793, 2
        %v795 = vmax.f32 %v793, %v794
        %v796 = vrot.slane %v795, 1
        %v797 = vmax.f32 %v795, %v796
        %v798 = vmax.f32 %v791, %v797
        %799 = vst.msk [vmem:[#allocation6] sm:$0x1] %vm741, %v798
        %v800 = vlog2.pop %v752
        %v801 = vmul.f32 %v800, 0.6931472
        %v802 = vadd.f32 %v801, %v745
        %v803 = vsub.f32 %v732, %v802
        %v804 = vld [vmem:[#allocation7] sm:$0x1]
        %v805 = vrot.slane %v790, 4
        %v806 = vmax.f32 %v790, %v805
        %v807 = vrot.slane %v806, 2
        %v808 = vmax.f32 %v806, %v807
        %v809 = vrot.slane %v808, 1
        %v810 = vmax.f32 %v808, %v809
        %v811 = vmax.f32 %v804, %v810
        %v813 = vlaneseq
        %v814 = vshrl.u32 %v813, 7
        %v815 = vsub.s32 0, %v814
        %v816 = vrot.slane %v811, %v815
        %v818 = vsub.f32 %v790, %v816
        %v819 = vmul.f32 %v818, 1.442695
        %v820 = vpow.pop %v819
        %v821 = vsub.f32 %v804, %v811
        %v822 = vmul.f32 %v821, 1.442695
        %v823 = vpow.pop %v822
        %v824 = vld [vmem:[#allocation8] sm:$0x1]
        %v825 = vmul.f32 %v824, %v823
        %vm826 = vcmask 7168
        %v827 = vsel %vm826, %v820, 0.0
        %v828 = vrot.slane %v827, 4
        %v829 = vadd.f32 %v827, %v828
        %v830 = vrot.slane %v829, 2
        %v831 = vadd.f32 %v829, %v830
        %v832 = vrot.slane %v831, 1
        %v833 = vadd.f32 %v831, %v832
        %v834 = vadd.f32 %v825, %v833
        %vm835 = vcmask 0
        %836 = vst.msk [vmem:[#allocation8] sm:$0x1] %vm835, %v834
        %v837 = vld [vmem:[#allocation9] sm:$0x1]
        %v838 = vmul.f32 %v837, %v823
        %v839 = vmul.f32 %v820, %v803
        %v840 = vsel %vm826, %v839, 0.0
        %v841 = vrot.slane %v840, 4
        %v842 = vadd.f32 %v840, %v841
        %v843 = vrot.slane %v842, 2
        %v844 = vadd.f32 %v842, %v843
        %v845 = vrot.slane %v844, 1
        %v846 = vadd.f32 %v844, %v845
        %v847 = vadd.f32 %v838, %v846
        %848 = vst.msk [vmem:[#allocation9] sm:$0x1] %vm835, %v847
        %849 = vst.msk [vmem:[#allocation7] sm:$0x1] %vm835, %v811
        %v850 = vrcp.pop %v786
        %v851 = vmul.f32 %v785, %v850
        %v852 = vsub.f32 1.0, %v851
        %v853 = vmul.f32 %v852, %v852
        %v854 = vld [vmem:[#allocation11] sm:$0x1]
        %v855 = vadd.f32 %v851, 1e-08
        %v856 = vlog2.pop %v855
        %v857 = vmul.f32 %v856, 0.6931472
        %v858 = vmul.f32 %v853, %v857
        %v859 = vrot.slane %v858, 4
        %v860 = vadd.f32 %v858, %v859
        %v861 = vrot.slane %v860, 2
        %v862 = vadd.f32 %v860, %v861
        %v863 = vrot.slane %v862, 1
        %v864 = vadd.f32 %v862, %v863
        %v865 = vadd.f32 %v854, %v864
        %866 = vst.msk [vmem:[#allocation11] sm:$0x1] %vm835, %v865
        %p867 = scmp.eq.s32.totalorder %s29, 1
        // Predicated region
        $region65: #{tpu_custom_call.1} parent=43 // pred_check
          %p868 = pneg %p867
        $region66: #{tpu_custom_call.1} parent=43 // pred_check_branch
          %870 = sbr.rel (%p868) target = $region68
        $region67: #{tpu_custom_call.1} parent=43 // pred_region
          %v871 = vld [vmem:[#allocation3] sm:$0x1]
          %v872 = vld [vmem:[#allocation4] sm:$0x1]
          %v873 = vld [vmem:[#allocation5] sm:$0x1]
          %v874 = vsub.f32 %v871, %v872
          %v875 = vmul.f32 %v874, 1.442695
          %v876 = vpow.pop %v875
          %v877 = vadd.f32 %v873, %v876
          %v878 = vld [vmem:[#allocation9] sm:$0x1]
          %v879 = vld [vmem:[#allocation8] sm:$0x1]
          %v880 = vrcp.pop %v879
          %v881 = vmul.f32 %v878, %v880
          %v882 = vsub.f32 0.0, %v881
          %v883 = vlog2.pop %v873
          %v884 = vmul.f32 %v883, 0.6931472
          %v885 = vadd.f32 %v884, %v872
          %v886 = vld [vmem:[#allocation6] sm:$0x1]
          %v887 = vsel %vm741, %v886, -inf
          %888 = vmax.xlane.f32.xlu0 %v887
          %v889 = vpop.xlane.xlu0 %888
          %v890 = vsub.f32 %v886, %v889
          %v891 = vmul.f32 %v890, 1.442695
          %v892 = vpow.pop %v891
          %v893 = vsub.f32 %v871, %v885
          %v894 = vmul.f32 %v892, %v893
          %v895 = vsel %vm741, %v894, 0.0
          %896 = vadd.xlane.f32.xlu0 %v895
          %v897 = vpop.xlane.xlu0 %896
          %v898 = vsel %vm741, %v892, 0.0
          %899 = vadd.xlane.f32.xlu0 %v898
          %v900 = vpop.xlane.xlu0 %899
          %v901 = vrcp.pop %v900
          %v902 = vmul.f32 %v897, %v901
          %v903 = vsub.f32 0.0, %v902
          %v904 = vadd.f32 %v882, %v903
          %v905 = vmul.f32 %v904, 0.5
          %v906 = vrcp.pop %v877
          %v907 = vmul.f32 %v876, %v906
          %v908 = vsub.f32 1.0, %v907
          %v909 = vmul.f32 %v908, %v908
          %v910 = vadd.f32 %v907, 1e-08
          %v911 = vlog2.pop %v910
          %v912 = vmul.f32 %v911, 0.6931472
          %v913 = vmul.f32 %v909, %v912
          %v914 = vsel %vm741, %v913, 0.0
          %915 = vadd.xlane.f32.xlu0 %v914
          %v916 = vpop.xlane.xlu0 %915
          %v917 = vsub.f32 0.0, %v916
          %v918 = vmul.f32 %v917, 0.0625
          %v919 = vld [vmem:[#allocation11] sm:$0x1]
          %v920 = vsub.f32 0.0, %v919
          %v921 = vmul.f32 %v920, 0.0625
          %v922 = vmul.f32 %v905, 0.5
          %v923 = vadd.f32 %v921, %v918
          %v924 = vmul.f32 %v923, 0.25
          %v925 = vadd.f32 %v922, %v924
          %926 = vst.msk [vmem:[#allocation20] sm:$0x1] %vm835, %v925
        $region68: #{tpu_custom_call.1} parent=43 // pred_fallthru
          _
        %s927 = sand.u32 %s29, 1
        %s928 = scalar_lea.sflag [#allocation22], %s927
        %s929 = sand.u32 %s189, 1
        %s930 = smul.addr %s929, 8
        %s931 = scalar_lea.vmem [#allocation21], %s930
        // Predicated region
        $region69: #{tpu_custom_call.1} parent=43 // pred_check
          %p932 = pneg %p173
        $region70: #{tpu_custom_call.1} parent=43 // pred_check_branch
          %934 = sbr.rel (%p932) target = $region72
        $region71: #{tpu_custom_call.1} parent=43 // pred_region
          %s936 = ssub.s32 16, 16
          %937 = vsyncadd [#allocation14], %s936
          %s939 = sshll.u32 [#allocation20], 4
          %s940 = int_to_ptr.vmem [resolvable:$true] %s939
          %942 = dma.vmem_to_hbm [thread:$0]  %s940, 16, %s6, [#allocation14]
        $region72: #{tpu_custom_call.1} parent=43 // pred_fallthru
          _
        // Predicated region
        $region73: #{tpu_custom_call.1} parent=43 // pred_check
          %p943 = pneg %p199
        $region74: #{tpu_custom_call.1} parent=43 // pred_check_branch
          %945 = sbr.rel (%p943) target = $region76
        $region75: #{tpu_custom_call.1} parent=43 // pred_region
          %s947 = ssub.s32 128, 128
          %948 = vsyncadd %s928, %s947
          %s949 = smul.addr %s29, 128
          %s950 = scalar_lea.hbm %s7, %s949
          %s952 = sshll.u32 %s931, 4
          %s953 = int_to_ptr.vmem [resolvable:$true] %s952
          %955 = dma.vmem_to_hbm [thread:$0]  %s953, 128, %s950, %s928
        $region76: #{tpu_custom_call.1} parent=43 // pred_fallthru
          _
        // Predicated region
        $region77: #{tpu_custom_call.1} parent=43 // pred_check
          %p956 = pneg %p220
        $region78: #{tpu_custom_call.1} parent=43 // pred_check_branch
          %958 = sbr.rel (%p956) target = $region80
        $region79: #{tpu_custom_call.1} parent=43 // pred_region
          %s960 = ssub.s32 256, 256
          %961 = vsyncadd [#allocation22], %s960
          %s962 = sshll.u32 [#allocation23], 4
          %s963 = int_to_ptr.vmem [resolvable:$true] %s962
          %968 = dma.vmem_to_hbm [thread:$0]  %s963, 256, %s8, [#allocation22], 128, 128, 8
        $region80: #{tpu_custom_call.1} parent=43 // pred_fallthru
          _
        // Predicated region
        $region81: #{tpu_custom_call.1} parent=43 // pred_check
          %p969 = pneg %p173
        $region82: #{tpu_custom_call.1} parent=43 // pred_check_branch
          %971 = sbr.rel (%p969) target = $region84
        $region83: #{tpu_custom_call.1} parent=43 // pred_region
          %972 = dma.done [#allocation14], 16
        $region84: #{tpu_custom_call.1} parent=43 // pred_fallthru
          _
        // Predicated region
        $region85: #{tpu_custom_call.1} parent=43 // pred_check
          %p973 = pneg %p220
        $region86: #{tpu_custom_call.1} parent=43 // pred_check_branch
          %975 = sbr.rel (%p973) target = $region88
        $region87: #{tpu_custom_call.1} parent=43 // pred_region
          %976 = dma.done [#allocation22], 256
        $region88: #{tpu_custom_call.1} parent=43 // pred_fallthru
          _
      $region44: #{tpu_custom_call.1} parent=5 // pred_fallthru
        _
      %p977 = scmp.le.s32.totalorder 2, %s24
      // Predicated region
      $region89: #{tpu_custom_call.1} parent=5 // pred_check
        %p978 = pneg %p977
      $region90: #{tpu_custom_call.1} parent=5 // pred_check_branch
        %980 = sbr.rel (%p978) target = $region92
      $region91: #{tpu_custom_call.1} parent=5 // pred_region
        %s981 = ssub.s32 %s24, 2
        // Predicated region
        $region93: #{tpu_custom_call.1} parent=91 // pred_check
          %p982 = pneg %p205
        $region94: #{tpu_custom_call.1} parent=91 // pred_check_branch
          %984 = sbr.rel (%p982) target = $region96
        $region95: #{tpu_custom_call.1} parent=91 // pred_region
          %s985 = sand.u32 %s30, 1
          %s986 = scalar_lea.sflag [#allocation22], %s985
          %s987 = sand.u32 %s190, 1
          %s988 = smul.addr %s987, 8
          %s989 = scalar_lea.vmem [#allocation21], %s988
          %990 = dma.done %s986, 128
        $region96: #{tpu_custom_call.1} parent=91 // pred_fallthru
          _
      $region92: #{tpu_custom_call.1} parent=5 // pred_fallthru
        _
    $region6: #{tpu_custom_call.1} parent=1 // loop_footer
      %s28 = sadd.s32 1, %s24
    $region7: #{tpu_custom_call.1} parent=1 // loop_footer_branch
      %23 = sbr.rel target = $region3
    $region8: #{tpu_custom_call.1} parent=1 // loop_exit
      _
    %991 = vsyncpa [#allocation13], 1
    %s992 = scalar_lea.sflag [#allocation13], 1
    %993 = vsyncpa %s992, 1
    %994 = vsyncpa [#allocation16], 1
    %995 = vsyncpa [#allocation19], 1
    %996 = vsyncpa [#allocation14], 1
    %s997 = scalar_lea.sflag [#allocation14], 1
    %998 = vsyncpa %s997, 1
    %999 = vsyncpa [#allocation22], 1
    %s1000 = scalar_lea.sflag [#allocation22], 1
    %1001 = vsyncpa %s1000, 1

</llo_original>
